<compile_context>
chip_gen: v5e
topology: v5e:2x2
jax: 0.10.0
libtpu: 0.0.40
codegen_flags: <defaults>
</compile_context>

<pallas_src>
import jax
import jax.numpy as jnp
from jax import lax
from jax.experimental import pallas as pl
from jax.experimental.pallas import tpu as pltpu

BETA = 0.9
NUM_HIDDEN = 100
NUM_OUTPUTS = 2
NUM_STEPS = 25
THRESHOLD = 1.0

TILE_B = 8          # batch tile (sublane aligned)
LANE = 128          # lane width


def _round_up(x, m):
    return ((x + m - 1) // m) * m


def snn_kernel(x_ref, w1_ref, b1_ref, w2_ref, b2_ref, w3_ref, b3_ref, rec_ref):
    # ---- hoist all loop-invariant loads / broadcasts out of the time loop ----
    x = x_ref[...]                                   # [TB, Dp]
    w1 = w1_ref[...]                                 # [Dp, Hp]
    w2 = w2_ref[...]                                 # [Hp, Hp]
    w3 = w3_ref[...]                                 # [Hp, Op]
    TB = x.shape[0]
    Hp = w1.shape[1]
    Op = w3.shape[1]
    b1 = jnp.broadcast_to(b1_ref[...], (TB, Hp))
    b2 = jnp.broadcast_to(b2_ref[...], (TB, Hp))
    b3 = jnp.broadcast_to(b3_ref[...], (TB, Op))

    # fc1 input never changes across time steps -> compute its current once.
    cur1 = jnp.dot(x, w1, preferred_element_type=jnp.float32) + b1

    def heaviside(v):
        return (v > THRESHOLD).astype(jnp.float32)

    def step(t, carry):
        mem1, mem2, mem3 = carry

        # Layer 1 (Leaky)
        rst1 = heaviside(mem1)
        mem1 = BETA * mem1 + cur1 - rst1 * THRESHOLD
        spk1 = heaviside(mem1)

        # Layer 2 (fc2 + Leaky)
        cur2 = jnp.dot(spk1, w2, preferred_element_type=jnp.float32) + b2
        rst2 = heaviside(mem2)
        mem2 = BETA * mem2 + cur2 - rst2 * THRESHOLD
        spk2 = heaviside(mem2)

        # Layer 3 (fc3 + Leaky)
        cur3 = jnp.dot(spk2, w3, preferred_element_type=jnp.float32) + b3
        rst3 = heaviside(mem3)
        mem3 = BETA * mem3 + cur3 - rst3 * THRESHOLD
        spk3 = heaviside(mem3)

        # single fused, lane-dense store per step: [spk | mem] along lanes
        rec_ref[t] = jnp.concatenate([spk3, mem3], axis=-1)
        return (mem1, mem2, mem3)

    # mem*.init_leaky() -> zeros
    init = (jnp.zeros((TB, Hp), jnp.float32),
            jnp.zeros((TB, Hp), jnp.float32),
            jnp.zeros((TB, Op), jnp.float32))
    # Small static trip count: fully unroll so the LLO scheduler can overlap
    # VPU work of step t with the MXU work of step t+1.
    lax.fori_loop(0, NUM_STEPS, step, init, unroll=True)


def snn_forward(x, params):
    """Runs the full 25-step SNN forward in a single Pallas kernel."""
    w1, b1, w2, b2, w3, b3 = params
    B, D = x.shape
    H = w1.shape[1]
    O = w3.shape[1]

    Bp = _round_up(B, TILE_B)
    Dp = _round_up(D, LANE)
    Hp = _round_up(H, LANE)
    Op = _round_up(O, LANE)

    f32 = jnp.float32
    xp = jnp.zeros((Bp, Dp), f32).at[:B, :D].set(x.astype(f32))
    w1p = jnp.zeros((Dp, Hp), f32).at[:D, :H].set(w1)
    b1p = jnp.zeros((1, Hp), f32).at[:, :H].set(b1)
    w2p = jnp.zeros((Hp, Hp), f32).at[:H, :H].set(w2)
    b2p = jnp.zeros((1, Hp), f32).at[:, :H].set(b2)
    w3p = jnp.zeros((Hp, Op), f32).at[:H, :O].set(w3)
    b3p = jnp.zeros((1, Op), f32).at[:, :O].set(b3)

    grid = (Bp // TILE_B,)
    rec = pl.pallas_call(
        snn_kernel,
        out_shape=jax.ShapeDtypeStruct((NUM_STEPS, Bp, 2 * Op), f32),
        grid_spec=pltpu.PrefetchScalarGridSpec(
            num_scalar_prefetch=0,
            grid=grid,
            in_specs=[
                pl.BlockSpec((TILE_B, Dp), lambda i: (i, 0)),   # x (batch-tiled)
                pl.BlockSpec((Dp, Hp), lambda i: (0, 0)),       # w1
                pl.BlockSpec((1, Hp), lambda i: (0, 0)),        # b1
                pl.BlockSpec((Hp, Hp), lambda i: (0, 0)),       # w2
                pl.BlockSpec((1, Hp), lambda i: (0, 0)),        # b2
                pl.BlockSpec((Hp, Op), lambda i: (0, 0)),       # w3
                pl.BlockSpec((1, Op), lambda i: (0, 0)),        # b3
            ],
            out_specs=pl.BlockSpec((NUM_STEPS, TILE_B, 2 * Op),
                                   lambda i: (0, i, 0)),
        ),
        compiler_params=pltpu.CompilerParams(
            dimension_semantics=("parallel",)),
    )(xp, w1p, b1p, w2p, b2p, w3p, b3p)

    # slice the real batch / output lanes back out
    spk_rec = rec[:, :B, :O]
    mem_rec = rec[:, :B, Op:Op + O]
    return spk_rec, mem_rec


def make_linear_params(kw, kb, fan_in, fan_out):
    # Mirror torch.nn.Linear default init: U(-1/sqrt(fan_in), 1/sqrt(fan_in))
    bound = 1.0 / (fan_in ** 0.5)
    w = jax.random.uniform(kw, (fan_in, fan_out), jnp.float32, -bound, bound)
    b = jax.random.uniform(kb, (1, fan_out), jnp.float32, -bound, bound)
    return w, b


if __name__ == "__main__":
    key = jax.random.PRNGKey(0)
    ks = jax.random.split(key, 7)

    B = 2          # batch
    D_IN = 16      # num_inputs (input_dim was unspecified upstream; small choice)

    w1, b1 = make_linear_params(ks[0], ks[1], D_IN, NUM_HIDDEN)
    w2, b2 = make_linear_params(ks[2], ks[3], NUM_HIDDEN, NUM_HIDDEN)
    w3, b3 = make_linear_params(ks[4], ks[5], NUM_HIDDEN, NUM_OUTPUTS)
    x = jax.random.uniform(ks[6], (B, D_IN), jnp.float32)

    spk_rec, mem_rec = snn_forward(x, (w1, b1, w2, b2, w3, b3))
    jax.block_until_ready((spk_rec, mem_rec))

    assert spk_rec.shape == (NUM_STEPS, B, NUM_OUTPUTS)
    assert mem_rec.shape == (NUM_STEPS, B, NUM_OUTPUTS)
    assert spk_rec.dtype == jnp.float32 and mem_rec.dtype == jnp.float32
    # spikes must be binary
    assert bool(jnp.all((spk_rec == 0.0) | (spk_rec == 1.0)))

    print("KERNEL_OK")
</pallas_src>

<mosaic_0001>
module attributes {stable_mosaic.version = 11 : i64} {
  func.func @snn_kernel(%arg0: i32, %arg1: memref<8x128xf32, #tpu.memory_space<vmem>>, %arg2: memref<128x128xf32, #tpu.memory_space<vmem>>, %arg3: memref<1x128xf32, #tpu.memory_space<vmem>>, %arg4: memref<128x128xf32, #tpu.memory_space<vmem>>, %arg5: memref<1x128xf32, #tpu.memory_space<vmem>>, %arg6: memref<128x128xf32, #tpu.memory_space<vmem>>, %arg7: memref<1x128xf32, #tpu.memory_space<vmem>>, %arg8: memref<25x8x256xf32, #tpu.memory_space<vmem>>) attributes {dimension_semantics = [#tpu.dimension_semantics<parallel>], iteration_bounds = array<i64: 1>, scalar_prefetch = 0 : i64, scratch_operands = 0 : i64, tpu.core_type = #tpu.core_type<tc>, window_params = [{transform_indices = @transform_0, window_bounds = array<i64: 8, 128>}, {pipeline_mode = #tpu.pipeline_mode<synchronous>, transform_indices = @transform_1, window_bounds = array<i64: 128, 128>}, {pipeline_mode = #tpu.pipeline_mode<synchronous>, transform_indices = @transform_2, window_bounds = array<i64: 1, 128>}, {pipeline_mode = #tpu.pipeline_mode<synchronous>, transform_indices = @transform_3, window_bounds = array<i64: 128, 128>}, {pipeline_mode = #tpu.pipeline_mode<synchronous>, transform_indices = @transform_4, window_bounds = array<i64: 1, 128>}, {pipeline_mode = #tpu.pipeline_mode<synchronous>, transform_indices = @transform_5, window_bounds = array<i64: 128, 128>}, {pipeline_mode = #tpu.pipeline_mode<synchronous>, transform_indices = @transform_6, window_bounds = array<i64: 1, 128>}, {transform_indices = @transform_7, window_bounds = array<i64: 25, 8, 256>}]} {
    %c0 = arith.constant 0 : index
    %c0_0 = arith.constant 0 : index
    %0 = vector.load %arg1[%c0, %c0_0] : memref<8x128xf32, #tpu.memory_space<vmem>>, vector<8x128xf32>
    %c0_1 = arith.constant 0 : index
    %c0_2 = arith.constant 0 : index
    %1 = vector.load %arg2[%c0_1, %c0_2] : memref<128x128xf32, #tpu.memory_space<vmem>>, vector<128x128xf32>
    %c0_3 = arith.constant 0 : index
    %c0_4 = arith.constant 0 : index
    %2 = vector.load %arg4[%c0_3, %c0_4] : memref<128x128xf32, #tpu.memory_space<vmem>>, vector<128x128xf32>
    %c0_5 = arith.constant 0 : index
    %c0_6 = arith.constant 0 : index
    %3 = vector.load %arg6[%c0_5, %c0_6] : memref<128x128xf32, #tpu.memory_space<vmem>>, vector<128x128xf32>
    %c0_7 = arith.constant 0 : index
    %c0_8 = arith.constant 0 : index
    %4 = vector.load %arg3[%c0_7, %c0_8] : memref<1x128xf32, #tpu.memory_space<vmem>>, vector<1x128xf32>
    %5 = vector.shape_cast %4 : vector<1x128xf32> to vector<1x128xf32>
    %6 = vector.broadcast %5 : vector<1x128xf32> to vector<8x128xf32>
    %c0_9 = arith.constant 0 : index
    %c0_10 = arith.constant 0 : index
    %7 = vector.load %arg5[%c0_9, %c0_10] : memref<1x128xf32, #tpu.memory_space<vmem>>, vector<1x128xf32>
    %8 = vector.shape_cast %7 : vector<1x128xf32> to vector<1x128xf32>
    %9 = vector.broadcast %8 : vector<1x128xf32> to vector<8x128xf32>
    %c0_11 = arith.constant 0 : index
    %c0_12 = arith.constant 0 : index
    %10 = vector.load %arg7[%c0_11, %c0_12] : memref<1x128xf32, #tpu.memory_space<vmem>>, vector<1x128xf32>
    %11 = vector.shape_cast %10 : vector<1x128xf32> to vector<1x128xf32>
    %12 = vector.broadcast %11 : vector<1x128xf32> to vector<8x128xf32>
    %cst = arith.constant dense<0.000000e+00> : vector<8x128xf32>
    %13 = tpu.matmul %0, %1, %cst {dimension_numbers = #tpu.dot_dimension_numbers<[1], [0], [0], [1], [0, 0, 1, 1], [], []>} : vector<8x128xf32>, vector<128x128xf32>, vector<8x128xf32> -> vector<8x128xf32>
    %14 = arith.addf %13, %6 : vector<8x128xf32>
    %cst_13 = arith.constant 0.000000e+00 : f32
    %15 = vector.broadcast %cst_13 : f32 to vector<8x128xf32>
    %cst_14 = arith.constant 0.000000e+00 : f32
    %16 = vector.broadcast %cst_14 : f32 to vector<8x128xf32>
    %cst_15 = arith.constant 0.000000e+00 : f32
    %17 = vector.broadcast %cst_15 : f32 to vector<8x128xf32>
    %c0_i32 = arith.constant 0 : i32
    %cst_16 = arith.constant 1.000000e+00 : f32
    %18 = vector.broadcast %cst_16 : f32 to vector<8x128xf32>
    %19 = arith.cmpf ogt, %15, %18 : vector<8x128xf32>
    %20 = arith.extui %19 : vector<8x128xi1> to vector<8x128xi32>
    %21 = arith.sitofp %20 : vector<8x128xi32> to vector<8x128xf32>
    %cst_17 = arith.constant 0.899999976 : f32
    %22 = vector.broadcast %cst_17 : f32 to vector<8x128xf32>
    %23 = arith.mulf %22, %15 : vector<8x128xf32>
    %24 = arith.addf %23, %14 : vector<8x128xf32>
    %cst_18 = arith.constant 1.000000e+00 : f32
    %25 = vector.broadcast %cst_18 : f32 to vector<8x128xf32>
    %26 = arith.mulf %21, %25 : vector<8x128xf32>
    %27 = arith.subf %24, %26 : vector<8x128xf32>
    %cst_19 = arith.constant 1.000000e+00 : f32
    %28 = vector.broadcast %cst_19 : f32 to vector<8x128xf32>
    %29 = arith.cmpf ogt, %27, %28 : vector<8x128xf32>
    %30 = arith.extui %29 : vector<8x128xi1> to vector<8x128xi32>
    %31 = arith.sitofp %30 : vector<8x128xi32> to vector<8x128xf32>
    %cst_20 = arith.constant dense<0.000000e+00> : vector<8x128xf32>
    %32 = tpu.matmul %31, %2, %cst_20 {dimension_numbers = #tpu.dot_dimension_numbers<[1], [0], [0], [1], [0, 0, 1, 1], [], []>} : vector<8x128xf32>, vector<128x128xf32>, vector<8x128xf32> -> vector<8x128xf32>
    %33 = arith.addf %32, %9 : vector<8x128xf32>
    %cst_21 = arith.constant 1.000000e+00 : f32
    %34 = vector.broadcast %cst_21 : f32 to vector<8x128xf32>
    %35 = arith.cmpf ogt, %16, %34 : vector<8x128xf32>
    %36 = arith.extui %35 : vector<8x128xi1> to vector<8x128xi32>
    %37 = arith.sitofp %36 : vector<8x128xi32> to vector<8x128xf32>
    %cst_22 = arith.constant 0.899999976 : f32
    %38 = vector.broadcast %cst_22 : f32 to vector<8x128xf32>
    %39 = arith.mulf %38, %16 : vector<8x128xf32>
    %40 = arith.addf %39, %33 : vector<8x128xf32>
    %cst_23 = arith.constant 1.000000e+00 : f32
    %41 = vector.broadcast %cst_23 : f32 to vector<8x128xf32>
    %42 = arith.mulf %37, %41 : vector<8x128xf32>
    %43 = arith.subf %40, %42 : vector<8x128xf32>
    %cst_24 = arith.constant 1.000000e+00 : f32
    %44 = vector.broadcast %cst_24 : f32 to vector<8x128xf32>
    %45 = arith.cmpf ogt, %43, %44 : vector<8x128xf32>
    %46 = arith.extui %45 : vector<8x128xi1> to vector<8x128xi32>
    %47 = arith.sitofp %46 : vector<8x128xi32> to vector<8x128xf32>
    %cst_25 = arith.constant dense<0.000000e+00> : vector<8x128xf32>
    %48 = tpu.matmul %47, %3, %cst_25 {dimension_numbers = #tpu.dot_dimension_numbers<[1], [0], [0], [1], [0, 0, 1, 1], [], []>} : vector<8x128xf32>, vector<128x128xf32>, vector<8x128xf32> -> vector<8x128xf32>
    %49 = arith.addf %48, %12 : vector<8x128xf32>
    %cst_26 = arith.constant 1.000000e+00 : f32
    %50 = vector.broadcast %cst_26 : f32 to vector<8x128xf32>
    %51 = arith.cmpf ogt, %17, %50 : vector<8x128xf32>
    %52 = arith.extui %51 : vector<8x128xi1> to vector<8x128xi32>
    %53 = arith.sitofp %52 : vector<8x128xi32> to vector<8x128xf32>
    %cst_27 = arith.constant 0.899999976 : f32
    %54 = vector.broadcast %cst_27 : f32 to vector<8x128xf32>
    %55 = arith.mulf %54, %17 : vector<8x128xf32>
    %56 = arith.addf %55, %49 : vector<8x128xf32>
    %cst_28 = arith.constant 1.000000e+00 : f32
    %57 = vector.broadcast %cst_28 : f32 to vector<8x128xf32>
    %58 = arith.mulf %53, %57 : vector<8x128xf32>
    %59 = arith.subf %56, %58 : vector<8x128xf32>
    %cst_29 = arith.constant 1.000000e+00 : f32
    %60 = vector.broadcast %cst_29 : f32 to vector<8x128xf32>
    %61 = arith.cmpf ogt, %59, %60 : vector<8x128xf32>
    %62 = arith.extui %61 : vector<8x128xi1> to vector<8x128xi32>
    %63 = arith.sitofp %62 : vector<8x128xi32> to vector<8x128xf32>
    %64 = tpu.concatenate %63, %59 in 1 : vector<8x128xf32>, vector<8x128xf32> -> vector<8x256xf32>
    %65 = arith.index_cast %c0_i32 : i32 to index
    %c0_30 = arith.constant 0 : index
    %c0_31 = arith.constant 0 : index
    %66 = vector.load %arg8[%65, %c0_30, %c0_31] : memref<25x8x256xf32, #tpu.memory_space<vmem>>, vector<1x8x256xf32>
    %67 = vector.shape_cast %66 : vector<1x8x256xf32> to vector<8x256xf32>
    %68 = vector.shape_cast %64 : vector<8x256xf32> to vector<1x8x256xf32>
    tpu.vector_store %arg8[%65, %c0_30, %c0_31], %68 {strides = array<i32>} : memref<25x8x256xf32, #tpu.memory_space<vmem>>, vector<1x8x256xf32>,
    %c1_i32 = arith.constant 1 : i32
    %cst_32 = arith.constant 1.000000e+00 : f32
    %69 = vector.broadcast %cst_32 : f32 to vector<8x128xf32>
    %70 = arith.cmpf ogt, %27, %69 : vector<8x128xf32>
    %71 = arith.extui %70 : vector<8x128xi1> to vector<8x128xi32>
    %72 = arith.sitofp %71 : vector<8x128xi32> to vector<8x128xf32>
    %cst_33 = arith.constant 0.899999976 : f32
    %73 = vector.broadcast %cst_33 : f32 to vector<8x128xf32>
    %74 = arith.mulf %73, %27 : vector<8x128xf32>
    %75 = arith.addf %74, %14 : vector<8x128xf32>
    %cst_34 = arith.constant 1.000000e+00 : f32
    %76 = vector.broadcast %cst_34 : f32 to vector<8x128xf32>
    %77 = arith.mulf %72, %76 : vector<8x128xf32>
    %78 = arith.subf %75, %77 : vector<8x128xf32>
    %cst_35 = arith.constant 1.000000e+00 : f32
    %79 = vector.broadcast %cst_35 : f32 to vector<8x128xf32>
    %80 = arith.cmpf ogt, %78, %79 : vector<8x128xf32>
    %81 = arith.extui %80 : vector<8x128xi1> to vector<8x128xi32>
    %82 = arith.sitofp %81 : vector<8x128xi32> to vector<8x128xf32>
    %cst_36 = arith.constant dense<0.000000e+00> : vector<8x128xf32>
    %83 = tpu.matmul %82, %2, %cst_36 {dimension_numbers = #tpu.dot_dimension_numbers<[1], [0], [0], [1], [0, 0, 1, 1], [], []>} : vector<8x128xf32>, vector<128x128xf32>, vector<8x128xf32> -> vector<8x128xf32>
    %84 = arith.addf %83, %9 : vector<8x128xf32>
    %cst_37 = arith.constant 1.000000e+00 : f32
    %85 = vector.broadcast %cst_37 : f32 to vector<8x128xf32>
    %86 = arith.cmpf ogt, %43, %85 : vector<8x128xf32>
    %87 = arith.extui %86 : vector<8x128xi1> to vector<8x128xi32>
    %88 = arith.sitofp %87 : vector<8x128xi32> to vector<8x128xf32>
    %cst_38 = arith.constant 0.899999976 : f32
    %89 = vector.broadcast %cst_38 : f32 to vector<8x128xf32>
    %90 = arith.mulf %89, %43 : vector<8x128xf32>
    %91 = arith.addf %90, %84 : vector<8x128xf32>
    %cst_39 = arith.constant 1.000000e+00 : f32
    %92 = vector.broadcast %cst_39 : f32 to vector<8x128xf32>
    %93 = arith.mulf %88, %92 : vector<8x128xf32>
    %94 = arith.subf %91, %93 : vector<8x128xf32>
    %cst_40 = arith.constant 1.000000e+00 : f32
    %95 = vector.broadcast %cst_40 : f32 to vector<8x128xf32>
    %96 = arith.cmpf ogt, %94, %95 : vector<8x128xf32>
    %97 = arith.extui %96 : vector<8x128xi1> to vector<8x128xi32>
    %98 = arith.sitofp %97 : vector<8x128xi32> to vector<8x128xf32>
    %cst_41 = arith.constant dense<0.000000e+00> : vector<8x128xf32>
    %99 = tpu.matmul %98, %3, %cst_41 {dimension_numbers = #tpu.dot_dimension_numbers<[1], [0], [0], [1], [0, 0, 1, 1], [], []>} : vector<8x128xf32>, vector<128x128xf32>, vector<8x128xf32> -> vector<8x128xf32>
    %100 = arith.addf %99, %12 : vector<8x128xf32>
    %cst_42 = arith.constant 1.000000e+00 : f32
    %101 = vector.broadcast %cst_42 : f32 to vector<8x128xf32>
    %102 = arith.cmpf ogt, %59, %101 : vector<8x128xf32>
    %103 = arith.extui %102 : vector<8x128xi1> to vector<8x128xi32>
    %104 = arith.sitofp %103 : vector<8x128xi32> to vector<8x128xf32>
    %cst_43 = arith.constant 0.899999976 : f32
    %105 = vector.broadcast %cst_43 : f32 to vector<8x128xf32>
    %106 = arith.mulf %105, %59 : vector<8x128xf32>
    %107 = arith.addf %106, %100 : vector<8x128xf32>
    %cst_44 = arith.constant 1.000000e+00 : f32
    %108 = vector.broadcast %cst_44 : f32 to vector<8x128xf32>
    %109 = arith.mulf %104, %108 : vector<8x128xf32>
    %110 = arith.subf %107, %109 : vector<8x128xf32>
    %cst_45 = arith.constant 1.000000e+00 : f32
    %111 = vector.broadcast %cst_45 : f32 to vector<8x128xf32>
    %112 = arith.cmpf ogt, %110, %111 : vector<8x128xf32>
    %113 = arith.extui %112 : vector<8x128xi1> to vector<8x128xi32>
    %114 = arith.sitofp %113 : vector<8x128xi32> to vector<8x128xf32>
    %115 = tpu.concatenate %114, %110 in 1 : vector<8x128xf32>, vector<8x128xf32> -> vector<8x256xf32>
    %116 = arith.index_cast %c1_i32 : i32 to index
    %c0_46 = arith.constant 0 : index
    %c0_47 = arith.constant 0 : index
    %117 = vector.load %arg8[%116, %c0_46, %c0_47] : memref<25x8x256xf32, #tpu.memory_space<vmem>>, vector<1x8x256xf32>
    %118 = vector.shape_cast %117 : vector<1x8x256xf32> to vector<8x256xf32>
    %119 = vector.shape_cast %115 : vector<8x256xf32> to vector<1x8x256xf32>
    tpu.vector_store %arg8[%116, %c0_46, %c0_47], %119 {strides = array<i32>} : memref<25x8x256xf32, #tpu.memory_space<vmem>>, vector<1x8x256xf32>,
    %c2_i32 = arith.constant 2 : i32
    %cst_48 = arith.constant 1.000000e+00 : f32
    %120 = vector.broadcast %cst_48 : f32 to vector<8x128xf32>
    %121 = arith.cmpf ogt, %78, %120 : vector<8x128xf32>
    %122 = arith.extui %121 : vector<8x128xi1> to vector<8x128xi32>
    %123 = arith.sitofp %122 : vector<8x128xi32> to vector<8x128xf32>
    %cst_49 = arith.constant 0.899999976 : f32
    %124 = vector.broadcast %cst_49 : f32 to vector<8x128xf32>
    %125 = arith.mulf %124, %78 : vector<8x128xf32>
    %126 = arith.addf %125, %14 : vector<8x128xf32>
    %cst_50 = arith.constant 1.000000e+00 : f32
    %127 = vector.broadcast %cst_50 : f32 to vector<8x128xf32>
    %128 = arith.mulf %123, %127 : vector<8x128xf32>
    %129 = arith.subf %126, %128 : vector<8x128xf32>
    %cst_51 = arith.constant 1.000000e+00 : f32
    %130 = vector.broadcast %cst_51 : f32 to vector<8x128xf32>
    %131 = arith.cmpf ogt, %129, %130 : vector<8x128xf32>
    %132 = arith.extui %131 : vector<8x128xi1> to vector<8x128xi32>
    %133 = arith.sitofp %132 : vector<8x128xi32> to vector<8x128xf32>
    %cst_52 = arith.constant dense<0.000000e+00> : vector<8x128xf32>
    %134 = tpu.matmul %133, %2, %cst_52 {dimension_numbers = #tpu.dot_dimension_numbers<[1], [0], [0], [1], [0, 0, 1, 1], [], []>} : vector<8x128xf32>, vector<128x128xf32>, vector<8x128xf32> -> vector<8x128xf32>
    %135 = arith.addf %134, %9 : vector<8x128xf32>
    %cst_53 = arith.constant 1.000000e+00 : f32
    %136 = vector.broadcast %cst_53 : f32 to vector<8x128xf32>
    %137 = arith.cmpf ogt, %94, %136 : vector<8x128xf32>
    %138 = arith.extui %137 : vector<8x128xi1> to vector<8x128xi32>
    %139 = arith.sitofp %138 : vector<8x128xi32> to vector<8x128xf32>
    %cst_54 = arith.constant 0.899999976 : f32
    %140 = vector.broadcast %cst_54 : f32 to vector<8x128xf32>
    %141 = arith.mulf %140, %94 : vector<8x128xf32>
    %142 = arith.addf %141, %135 : vector<8x128xf32>
    %cst_55 = arith.constant 1.000000e+00 : f32
    %143 = vector.broadcast %cst_55 : f32 to vector<8x128xf32>
    %144 = arith.mulf %139, %143 : vector<8x128xf32>
    %145 = arith.subf %142, %144 : vector<8x128xf32>
    %cst_56 = arith.constant 1.000000e+00 : f32
    %146 = vector.broadcast %cst_56 : f32 to vector<8x128xf32>
    %147 = arith.cmpf ogt, %145, %146 : vector<8x128xf32>
    %148 = arith.extui %147 : vector<8x128xi1> to vector<8x128xi32>
    %149 = arith.sitofp %148 : vector<8x128xi32> to vector<8x128xf32>
    %cst_57 = arith.constant dense<0.000000e+00> : vector<8x128xf32>
    %150 = tpu.matmul %149, %3, %cst_57 {dimension_numbers = #tpu.dot_dimension_numbers<[1], [0], [0], [1], [0, 0, 1, 1], [], []>} : vector<8x128xf32>, vector<128x128xf32>, vector<8x128xf32> -> vector<8x128xf32>
    %151 = arith.addf %150, %12 : vector<8x128xf32>
    %cst_58 = arith.constant 1.000000e+00 : f32
    %152 = vector.broadcast %cst_58 : f32 to vector<8x128xf32>
    %153 = arith.cmpf ogt, %110, %152 : vector<8x128xf32>
    %154 = arith.extui %153 : vector<8x128xi1> to vector<8x128xi32>
    %155 = arith.sitofp %154 : vector<8x128xi32> to vector<8x128xf32>
    %cst_59 = arith.constant 0.899999976 : f32
    %156 = vector.broadcast %cst_59 : f32 to vector<8x128xf32>
    %157 = arith.mulf %156, %110 : vector<8x128xf32>
    %158 = arith.addf %157, %151 : vector<8x128xf32>
    %cst_60 = arith.constant 1.000000e+00 : f32
    %159 = vector.broadcast %cst_60 : f32 to vector<8x128xf32>
    %160 = arith.mulf %155, %159 : vector<8x128xf32>
    %161 = arith.subf %158, %160 : vector<8x128xf32>
    %cst_61 = arith.constant 1.000000e+00 : f32
    %162 = vector.broadcast %cst_61 : f32 to vector<8x128xf32>
    %163 = arith.cmpf ogt, %161, %162 : vector<8x128xf32>
    %164 = arith.extui %163 : vector<8x128xi1> to vector<8x128xi32>
    %165 = arith.sitofp %164 : vector<8x128xi32> to vector<8x128xf32>
    %166 = tpu.concatenate %165, %161 in 1 : vector<8x128xf32>, vector<8x128xf32> -> vector<8x256xf32>
    %167 = arith.index_cast %c2_i32 : i32 to index
    %c0_62 = arith.constant 0 : index
    %c0_63 = arith.constant 0 : index
    %168 = vector.load %arg8[%167, %c0_62, %c0_63] : memref<25x8x256xf32, #tpu.memory_space<vmem>>, vector<1x8x256xf32>
    %169 = vector.shape_cast %168 : vector<1x8x256xf32> to vector<8x256xf32>
    %170 = vector.shape_cast %166 : vector<8x256xf32> to vector<1x8x256xf32>
    tpu.vector_store %arg8[%167, %c0_62, %c0_63], %170 {strides = array<i32>} : memref<25x8x256xf32, #tpu.memory_space<vmem>>, vector<1x8x256xf32>,
    %c3_i32 = arith.constant 3 : i32
    %cst_64 = arith.constant 1.000000e+00 : f32
    %171 = vector.broadcast %cst_64 : f32 to vector<8x128xf32>
    %172 = arith.cmpf ogt, %129, %171 : vector<8x128xf32>
    %173 = arith.extui %172 : vector<8x128xi1> to vector<8x128xi32>
    %174 = arith.sitofp %173 : vector<8x128xi32> to vector<8x128xf32>
    %cst_65 = arith.constant 0.899999976 : f32
    %175 = vector.broadcast %cst_65 : f32 to vector<8x128xf32>
    %176 = arith.mulf %175, %129 : vector<8x128xf32>
    %177 = arith.addf %176, %14 : vector<8x128xf32>
    %cst_66 = arith.constant 1.000000e+00 : f32
    %178 = vector.broadcast %cst_66 : f32 to vector<8x128xf32>
    %179 = arith.mulf %174, %178 : vector<8x128xf32>
    %180 = arith.subf %177, %179 : vector<8x128xf32>
    %cst_67 = arith.constant 1.000000e+00 : f32
    %181 = vector.broadcast %cst_67 : f32 to vector<8x128xf32>
    %182 = arith.cmpf ogt, %180, %181 : vector<8x128xf32>
    %183 = arith.extui %182 : vector<8x128xi1> to vector<8x128xi32>
    %184 = arith.sitofp %183 : vector<8x128xi32> to vector<8x128xf32>
    %cst_68 = arith.constant dense<0.000000e+00> : vector<8x128xf32>
    %185 = tpu.matmul %184, %2, %cst_68 {dimension_numbers = #tpu.dot_dimension_numbers<[1], [0], [0], [1], [0, 0, 1, 1], [], []>} : vector<8x128xf32>, vector<128x128xf32>, vector<8x128xf32> -> vector<8x128xf32>
    %186 = arith.addf %185, %9 : vector<8x128xf32>
    %cst_69 = arith.constant 1.000000e+00 : f32
    %187 = vector.broadcast %cst_69 : f32 to vector<8x128xf32>
    %188 = arith.cmpf ogt, %145, %187 : vector<8x128xf32>
    %189 = arith.extui %188 : vector<8x128xi1> to vector<8x128xi32>
    %190 = arith.sitofp %189 : vector<8x128xi32> to vector<8x128xf32>
    %cst_70 = arith.constant 0.899999976 : f32
    %191 = vector.broadcast %cst_70 : f32 to vector<8x128xf32>
    %192 = arith.mulf %191, %145 : vector<8x128xf32>
    %193 = arith.addf %192, %186 : vector<8x128xf32>
    %cst_71 = arith.constant 1.000000e+00 : f32
    %194 = vector.broadcast %cst_71 : f32 to vector<8x128xf32>
    %195 = arith.mulf %190, %194 : vector<8x128xf32>
    %196 = arith.subf %193, %195 : vector<8x128xf32>
    %cst_72 = arith.constant 1.000000e+00 : f32
    %197 = vector.broadcast %cst_72 : f32 to vector<8x128xf32>
    %198 = arith.cmpf ogt, %196, %197 : vector<8x128xf32>
    %199 = arith.extui %198 : vector<8x128xi1> to vector<8x128xi32>
    %200 = arith.sitofp %199 : vector<8x128xi32> to vector<8x128xf32>
    %cst_73 = arith.constant dense<0.000000e+00> : vector<8x128xf32>
    %201 = tpu.matmul %200, %3, %cst_73 {dimension_numbers = #tpu.dot_dimension_numbers<[1], [0], [0], [1], [0, 0, 1, 1], [], []>} : vector<8x128xf32>, vector<128x128xf32>, vector<8x128xf32> -> vector<8x128xf32>
    %202 = arith.addf %201, %12 : vector<8x128xf32>
    %cst_74 = arith.constant 1.000000e+00 : f32
    %203 = vector.broadcast %cst_74 : f32 to vector<8x128xf32>
    %204 = arith.cmpf ogt, %161, %203 : vector<8x128xf32>
    %205 = arith.extui %204 : vector<8x128xi1> to vector<8x128xi32>
    %206 = arith.sitofp %205 : vector<8x128xi32> to vector<8x128xf32>
    %cst_75 = arith.constant 0.899999976 : f32
    %207 = vector.broadcast %cst_75 : f32 to vector<8x128xf32>
    %208 = arith.mulf %207, %161 : vector<8x128xf32>
    %209 = arith.addf %208, %202 : vector<8x128xf32>
    %cst_76 = arith.constant 1.000000e+00 : f32
    %210 = vector.broadcast %cst_76 : f32 to vector<8x128xf32>
    %211 = arith.mulf %206, %210 : vector<8x128xf32>
    %212 = arith.subf %209, %211 : vector<8x128xf32>
    %cst_77 = arith.constant 1.000000e+00 : f32
    %213 = vector.broadcast %cst_77 : f32 to vector<8x128xf32>
    %214 = arith.cmpf ogt, %212, %213 : vector<8x128xf32>
    %215 = arith.extui %214 : vector<8x128xi1> to vector<8x128xi32>
    %216 = arith.sitofp %215 : vector<8x128xi32> to vector<8x128xf32>
    %217 = tpu.concatenate %216, %212 in 1 : vector<8x128xf32>, vector<8x128xf32> -> vector<8x256xf32>
    %218 = arith.index_cast %c3_i32 : i32 to index
    %c0_78 = arith.constant 0 : index
    %c0_79 = arith.constant 0 : index
    %219 = vector.load %arg8[%218, %c0_78, %c0_79] : memref<25x8x256xf32, #tpu.memory_space<vmem>>, vector<1x8x256xf32>
    %220 = vector.shape_cast %219 : vector<1x8x256xf32> to vector<8x256xf32>
    %221 = vector.shape_cast %217 : vector<8x256xf32> to vector<1x8x256xf32>
    tpu.vector_store %arg8[%218, %c0_78, %c0_79], %221 {strides = array<i32>} : memref<25x8x256xf32, #tpu.memory_space<vmem>>, vector<1x8x256xf32>,
    %c4_i32 = arith.constant 4 : i32
    %cst_80 = arith.constant 1.000000e+00 : f32
    %222 = vector.broadcast %cst_80 : f32 to vector<8x128xf32>
    %223 = arith.cmpf ogt, %180, %222 : vector<8x128xf32>
    %224 = arith.extui %223 : vector<8x128xi1> to vector<8x128xi32>
    %225 = arith.sitofp %224 : vector<8x128xi32> to vector<8x128xf32>
    %cst_81 = arith.constant 0.899999976 : f32
    %226 = vector.broadcast %cst_81 : f32 to vector<8x128xf32>
    %227 = arith.mulf %226, %180 : vector<8x128xf32>
    %228 = arith.addf %227, %14 : vector<8x128xf32>
    %cst_82 = arith.constant 1.000000e+00 : f32
    %229 = vector.broadcast %cst_82 : f32 to vector<8x128xf32>
    %230 = arith.mulf %225, %229 : vector<8x128xf32>
    %231 = arith.subf %228, %230 : vector<8x128xf32>
    %cst_83 = arith.constant 1.000000e+00 : f32
    %232 = vector.broadcast %cst_83 : f32 to vector<8x128xf32>
    %233 = arith.cmpf ogt, %231, %232 : vector<8x128xf32>
    %234 = arith.extui %233 : vector<8x128xi1> to vector<8x128xi32>
    %235 = arith.sitofp %234 : vector<8x128xi32> to vector<8x128xf32>
    %cst_84 = arith.constant dense<0.000000e+00> : vector<8x128xf32>
    %236 = tpu.matmul %235, %2, %cst_84 {dimension_numbers = #tpu.dot_dimension_numbers<[1], [0], [0], [1], [0, 0, 1, 1], [], []>} : vector<8x128xf32>, vector<128x128xf32>, vector<8x128xf32> -> vector<8x128xf32>
    %237 = arith.addf %236, %9 : vector<8x128xf32>
    %cst_85 = arith.constant 1.000000e+00 : f32
    %238 = vector.broadcast %cst_85 : f32 to vector<8x128xf32>
    %239 = arith.cmpf ogt, %196, %238 : vector<8x128xf32>
    %240 = arith.extui %239 : vector<8x128xi1> to vector<8x128xi32>
    %241 = arith.sitofp %240 : vector<8x128xi32> to vector<8x128xf32>
    %cst_86 = arith.constant 0.899999976 : f32
    %242 = vector.broadcast %cst_86 : f32 to vector<8x128xf32>
    %243 = arith.mulf %242, %196 : vector<8x128xf32>
    %244 = arith.addf %243, %237 : vector<8x128xf32>
    %cst_87 = arith.constant 1.000000e+00 : f32
    %245 = vector.broadcast %cst_87 : f32 to vector<8x128xf32>
    %246 = arith.mulf %241, %245 : vector<8x128xf32>
    %247 = arith.subf %244, %246 : vector<8x128xf32>
    %cst_88 = arith.constant 1.000000e+00 : f32
    %248 = vector.broadcast %cst_88 : f32 to vector<8x128xf32>
    %249 = arith.cmpf ogt, %247, %248 : vector<8x128xf32>
    %250 = arith.extui %249 : vector<8x128xi1> to vector<8x128xi32>
    %251 = arith.sitofp %250 : vector<8x128xi32> to vector<8x128xf32>
    %cst_89 = arith.constant dense<0.000000e+00> : vector<8x128xf32>
    %252 = tpu.matmul %251, %3, %cst_89 {dimension_numbers = #tpu.dot_dimension_numbers<[1], [0], [0], [1], [0, 0, 1, 1], [], []>} : vector<8x128xf32>, vector<128x128xf32>, vector<8x128xf32> -> vector<8x128xf32>
    %253 = arith.addf %252, %12 : vector<8x128xf32>
    %cst_90 = arith.constant 1.000000e+00 : f32
    %254 = vector.broadcast %cst_90 : f32 to vector<8x128xf32>
    %255 = arith.cmpf ogt, %212, %254 : vector<8x128xf32>
    %256 = arith.extui %255 : vector<8x128xi1> to vector<8x128xi32>
    %257 = arith.sitofp %256 : vector<8x128xi32> to vector<8x128xf32>
    %cst_91 = arith.constant 0.899999976 : f32
    %258 = vector.broadcast %cst_91 : f32 to vector<8x128xf32>
    %259 = arith.mulf %258, %212 : vector<8x128xf32>
    %260 = arith.addf %259, %253 : vector<8x128xf32>
    %cst_92 = arith.constant 1.000000e+00 : f32
    %261 = vector.broadcast %cst_92 : f32 to vector<8x128xf32>
    %262 = arith.mulf %257, %261 : vector<8x128xf32>
    %263 = arith.subf %260, %262 : vector<8x128xf32>
    %cst_93 = arith.constant 1.000000e+00 : f32
    %264 = vector.broadcast %cst_93 : f32 to vector<8x128xf32>
    %265 = arith.cmpf ogt, %263, %264 : vector<8x128xf32>
    %266 = arith.extui %265 : vector<8x128xi1> to vector<8x128xi32>
    %267 = arith.sitofp %266 : vector<8x128xi32> to vector<8x128xf32>
    %268 = tpu.concatenate %267, %263 in 1 : vector<8x128xf32>, vector<8x128xf32> -> vector<8x256xf32>
    %269 = arith.index_cast %c4_i32 : i32 to index
    %c0_94 = arith.constant 0 : index
    %c0_95 = arith.constant 0 : index
    %270 = vector.load %arg8[%269, %c0_94, %c0_95] : memref<25x8x256xf32, #tpu.memory_space<vmem>>, vector<1x8x256xf32>
    %271 = vector.shape_cast %270 : vector<1x8x256xf32> to vector<8x256xf32>
    %272 = vector.shape_cast %268 : vector<8x256xf32> to vector<1x8x256xf32>
    tpu.vector_store %arg8[%269, %c0_94, %c0_95], %272 {strides = array<i32>} : memref<25x8x256xf32, #tpu.memory_space<vmem>>, vector<1x8x256xf32>,
    %c5_i32 = arith.constant 5 : i32
    %cst_96 = arith.constant 1.000000e+00 : f32
    %273 = vector.broadcast %cst_96 : f32 to vector<8x128xf32>
    %274 = arith.cmpf ogt, %231, %273 : vector<8x128xf32>
    %275 = arith.extui %274 : vector<8x128xi1> to vector<8x128xi32>
    %276 = arith.sitofp %275 : vector<8x128xi32> to vector<8x128xf32>
    %cst_97 = arith.constant 0.899999976 : f32
    %277 = vector.broadcast %cst_97 : f32 to vector<8x128xf32>
    %278 = arith.mulf %277, %231 : vector<8x128xf32>
    %279 = arith.addf %278, %14 : vector<8x128xf32>
    %cst_98 = arith.constant 1.000000e+00 : f32
    %280 = vector.broadcast %cst_98 : f32 to vector<8x128xf32>
    %281 = arith.mulf %276, %280 : vector<8x128xf32>
    %282 = arith.subf %279, %281 : vector<8x128xf32>
    %cst_99 = arith.constant 1.000000e+00 : f32
    %283 = vector.broadcast %cst_99 : f32 to vector<8x128xf32>
    %284 = arith.cmpf ogt, %282, %283 : vector<8x128xf32>
    %285 = arith.extui %284 : vector<8x128xi1> to vector<8x128xi32>
    %286 = arith.sitofp %285 : vector<8x128xi32> to vector<8x128xf32>
    %cst_100 = arith.constant dense<0.000000e+00> : vector<8x128xf32>
    %287 = tpu.matmul %286, %2, %cst_100 {dimension_numbers = #tpu.dot_dimension_numbers<[1], [0], [0], [1], [0, 0, 1, 1], [], []>} : vector<8x128xf32>, vector<128x128xf32>, vector<8x128xf32> -> vector<8x128xf32>
    %288 = arith.addf %287, %9 : vector<8x128xf32>
    %cst_101 = arith.constant 1.000000e+00 : f32
    %289 = vector.broadcast %cst_101 : f32 to vector<8x128xf32>
    %290 = arith.cmpf ogt, %247, %289 : vector<8x128xf32>
    %291 = arith.extui %290 : vector<8x128xi1> to vector<8x128xi32>
    %292 = arith.sitofp %291 : vector<8x128xi32> to vector<8x128xf32>
    %cst_102 = arith.constant 0.899999976 : f32
    %293 = vector.broadcast %cst_102 : f32 to vector<8x128xf32>
    %294 = arith.mulf %293, %247 : vector<8x128xf32>
    %295 = arith.addf %294, %288 : vector<8x128xf32>
    %cst_103 = arith.constant 1.000000e+00 : f32
    %296 = vector.broadcast %cst_103 : f32 to vector<8x128xf32>
    %297 = arith.mulf %292, %296 : vector<8x128xf32>
    %298 = arith.subf %295, %297 : vector<8x128xf32>
    %cst_104 = arith.constant 1.000000e+00 : f32
    %299 = vector.broadcast %cst_104 : f32 to vector<8x128xf32>
    %300 = arith.cmpf ogt, %298, %299 : vector<8x128xf32>
    %301 = arith.extui %300 : vector<8x128xi1> to vector<8x128xi32>
    %302 = arith.sitofp %301 : vector<8x128xi32> to vector<8x128xf32>
    %cst_105 = arith.constant dense<0.000000e+00> : vector<8x128xf32>
    %303 = tpu.matmul %302, %3, %cst_105 {dimension_numbers = #tpu.dot_dimension_numbers<[1], [0], [0], [1], [0, 0, 1, 1], [], []>} : vector<8x128xf32>, vector<128x128xf32>, vector<8x128xf32> -> vector<8x128xf32>
    %304 = arith.addf %303, %12 : vector<8x128xf32>
    %cst_106 = arith.constant 1.000000e+00 : f32
    %305 = vector.broadcast %cst_106 : f32 to vector<8x128xf32>
    %306 = arith.cmpf ogt, %263, %305 : vector<8x128xf32>
    %307 = arith.extui %306 : vector<8x128xi1> to vector<8x128xi32>
    %308 = arith.sitofp %307 : vector<8x128xi32> to vector<8x128xf32>
    %cst_107 = arith.constant 0.899999976 : f32
    %309 = vector.broadcast %cst_107 : f32 to vector<8x128xf32>
    %310 = arith.mulf %309, %263 : vector<8x128xf32>
    %311 = arith.addf %310, %304 : vector<8x128xf32>
    %cst_108 = arith.constant 1.000000e+00 : f32
    %312 = vector.broadcast %cst_108 : f32 to vector<8x128xf32>
    %313 = arith.mulf %308, %312 : vector<8x128xf32>
    %314 = arith.subf %311, %313 : vector<8x128xf32>
    %cst_109 = arith.constant 1.000000e+00 : f32
    %315 = vector.broadcast %cst_109 : f32 to vector<8x128xf32>
    %316 = arith.cmpf ogt, %314, %315 : vector<8x128xf32>
    %317 = arith.extui %316 : vector<8x128xi1> to vector<8x128xi32>
    %318 = arith.sitofp %317 : vector<8x128xi32> to vector<8x128xf32>
    %319 = tpu.concatenate %318, %314 in 1 : vector<8x128xf32>, vector<8x128xf32> -> vector<8x256xf32>
    %320 = arith.index_cast %c5_i32 : i32 to index
    %c0_110 = arith.constant 0 : index
    %c0_111 = arith.constant 0 : index
    %321 = vector.load %arg8[%320, %c0_110, %c0_111] : memref<25x8x256xf32, #tpu.memory_space<vmem>>, vector<1x8x256xf32>
    %322 = vector.shape_cast %321 : vector<1x8x256xf32> to vector<8x256xf32>
    %323 = vector.shape_cast %319 : vector<8x256xf32> to vector<1x8x256xf32>
    tpu.vector_store %arg8[%320, %c0_110, %c0_111], %323 {strides = array<i32>} : memref<25x8x256xf32, #tpu.memory_space<vmem>>, vector<1x8x256xf32>,
    %c6_i32 = arith.constant 6 : i32
    %cst_112 = arith.constant 1.000000e+00 : f32
    %324 = vector.broadcast %cst_112 : f32 to vector<8x128xf32>
    %325 = arith.cmpf ogt, %282, %324 : vector<8x128xf32>
    %326 = arith.extui %325 : vector<8x128xi1> to vector<8x128xi32>
    %327 = arith.sitofp %326 : vector<8x128xi32> to vector<8x128xf32>
    %cst_113 = arith.constant 0.899999976 : f32
    %328 = vector.broadcast %cst_113 : f32 to vector<8x128xf32>
    %329 = arith.mulf %328, %282 : vector<8x128xf32>
    %330 = arith.addf %329, %14 : vector<8x128xf32>
    %cst_114 = arith.constant 1.000000e+00 : f32
    %331 = vector.broadcast %cst_114 : f32 to vector<8x128xf32>
    %332 = arith.mulf %327, %331 : vector<8x128xf32>
    %333 = arith.subf %330, %332 : vector<8x128xf32>
    %cst_115 = arith.constant 1.000000e+00 : f32
    %334 = vector.broadcast %cst_115 : f32 to vector<8x128xf32>
    %335 = arith.cmpf ogt, %333, %334 : vector<8x128xf32>
    %336 = arith.extui %335 : vector<8x128xi1> to vector<8x128xi32>
    %337 = arith.sitofp %336 : vector<8x128xi32> to vector<8x128xf32>
    %cst_116 = arith.constant dense<0.000000e+00> : vector<8x128xf32>
    %338 = tpu.matmul %337, %2, %cst_116 {dimension_numbers = #tpu.dot_dimension_numbers<[1], [0], [0], [1], [0, 0, 1, 1], [], []>} : vector<8x128xf32>, vector<128x128xf32>, vector<8x128xf32> -> vector<8x128xf32>
    %339 = arith.addf %338, %9 : vector<8x128xf32>
    %cst_117 = arith.constant 1.000000e+00 : f32
    %340 = vector.broadcast %cst_117 : f32 to vector<8x128xf32>
    %341 = arith.cmpf ogt, %298, %340 : vector<8x128xf32>
    %342 = arith.extui %341 : vector<8x128xi1> to vector<8x128xi32>
    %343 = arith.sitofp %342 : vector<8x128xi32> to vector<8x128xf32>
    %cst_118 = arith.constant 0.899999976 : f32
    %344 = vector.broadcast %cst_118 : f32 to vector<8x128xf32>
    %345 = arith.mulf %344, %298 : vector<8x128xf32>
    %346 = arith.addf %345, %339 : vector<8x128xf32>
    %cst_119 = arith.constant 1.000000e+00 : f32
    %347 = vector.broadcast %cst_119 : f32 to vector<8x128xf32>
    %348 = arith.mulf %343, %347 : vector<8x128xf32>
    %349 = arith.subf %346, %348 : vector<8x128xf32>
    %cst_120 = arith.constant 1.000000e+00 : f32
    %350 = vector.broadcast %cst_120 : f32 to vector<8x128xf32>
    %351 = arith.cmpf ogt, %349, %350 : vector<8x128xf32>
    %352 = arith.extui %351 : vector<8x128xi1> to vector<8x128xi32>
    %353 = arith.sitofp %352 : vector<8x128xi32> to vector<8x128xf32>
    %cst_121 = arith.constant dense<0.000000e+00> : vector<8x128xf32>
    %354 = tpu.matmul %353, %3, %cst_121 {dimension_numbers = #tpu.dot_dimension_numbers<[1], [0], [0], [1], [0, 0, 1, 1], [], []>} : vector<8x128xf32>, vector<128x128xf32>, vector<8x128xf32> -> vector<8x128xf32>
    %355 = arith.addf %354, %12 : vector<8x128xf32>
    %cst_122 = arith.constant 1.000000e+00 : f32
    %356 = vector.broadcast %cst_122 : f32 to vector<8x128xf32>
    %357 = arith.cmpf ogt, %314, %356 : vector<8x128xf32>
    %358 = arith.extui %357 : vector<8x128xi1> to vector<8x128xi32>
    %359 = arith.sitofp %358 : vector<8x128xi32> to vector<8x128xf32>
    %cst_123 = arith.constant 0.899999976 : f32
    %360 = vector.broadcast %cst_123 : f32 to vector<8x128xf32>
    %361 = arith.mulf %360, %314 : vector<8x128xf32>
    %362 = arith.addf %361, %355 : vector<8x128xf32>
    %cst_124 = arith.constant 1.000000e+00 : f32
    %363 = vector.broadcast %cst_124 : f32 to vector<8x128xf32>
    %364 = arith.mulf %359, %363 : vector<8x128xf32>
    %365 = arith.subf %362, %364 : vector<8x128xf32>
    %cst_125 = arith.constant 1.000000e+00 : f32
    %366 = vector.broadcast %cst_125 : f32 to vector<8x128xf32>
    %367 = arith.cmpf ogt, %365, %366 : vector<8x128xf32>
    %368 = arith.extui %367 : vector<8x128xi1> to vector<8x128xi32>
    %369 = arith.sitofp %368 : vector<8x128xi32> to vector<8x128xf32>
    %370 = tpu.concatenate %369, %365 in 1 : vector<8x128xf32>, vector<8x128xf32> -> vector<8x256xf32>
    %371 = arith.index_cast %c6_i32 : i32 to index
    %c0_126 = arith.constant 0 : index
    %c0_127 = arith.constant 0 : index
    %372 = vector.load %arg8[%371, %c0_126, %c0_127] : memref<25x8x256xf32, #tpu.memory_space<vmem>>, vector<1x8x256xf32>
    %373 = vector.shape_cast %372 : vector<1x8x256xf32> to vector<8x256xf32>
    %374 = vector.shape_cast %370 : vector<8x256xf32> to vector<1x8x256xf32>
    tpu.vector_store %arg8[%371, %c0_126, %c0_127], %374 {strides = array<i32>} : memref<25x8x256xf32, #tpu.memory_space<vmem>>, vector<1x8x256xf32>,
    %c7_i32 = arith.constant 7 : i32
    %cst_128 = arith.constant 1.000000e+00 : f32
    %375 = vector.broadcast %cst_128 : f32 to vector<8x128xf32>
    %376 = arith.cmpf ogt, %333, %375 : vector<8x128xf32>
    %377 = arith.extui %376 : vector<8x128xi1> to vector<8x128xi32>
    %378 = arith.sitofp %377 : vector<8x128xi32> to vector<8x128xf32>
    %cst_129 = arith.constant 0.899999976 : f32
    %379 = vector.broadcast %cst_129 : f32 to vector<8x128xf32>
    %380 = arith.mulf %379, %333 : vector<8x128xf32>
    %381 = arith.addf %380, %14 : vector<8x128xf32>
    %cst_130 = arith.constant 1.000000e+00 : f32
    %382 = vector.broadcast %cst_130 : f32 to vector<8x128xf32>
    %383 = arith.mulf %378, %382 : vector<8x128xf32>
    %384 = arith.subf %381, %383 : vector<8x128xf32>
    %cst_131 = arith.constant 1.000000e+00 : f32
    %385 = vector.broadcast %cst_131 : f32 to vector<8x128xf32>
    %386 = arith.cmpf ogt, %384, %385 : vector<8x128xf32>
    %387 = arith.extui %386 : vector<8x128xi1> to vector<8x128xi32>
    %388 = arith.sitofp %387 : vector<8x128xi32> to vector<8x128xf32>
    %cst_132 = arith.constant dense<0.000000e+00> : vector<8x128xf32>
    %389 = tpu.matmul %388, %2, %cst_132 {dimension_numbers = #tpu.dot_dimension_numbers<[1], [0], [0], [1], [0, 0, 1, 1], [], []>} : vector<8x128xf32>, vector<128x128xf32>, vector<8x128xf32> -> vector<8x128xf32>
    %390 = arith.addf %389, %9 : vector<8x128xf32>
    %cst_133 = arith.constant 1.000000e+00 : f32
    %391 = vector.broadcast %cst_133 : f32 to vector<8x128xf32>
    %392 = arith.cmpf ogt, %349, %391 : vector<8x128xf32>
    %393 = arith.extui %392 : vector<8x128xi1> to vector<8x128xi32>
    %394 = arith.sitofp %393 : vector<8x128xi32> to vector<8x128xf32>
    %cst_134 = arith.constant 0.899999976 : f32
    %395 = vector.broadcast %cst_134 : f32 to vector<8x128xf32>
    %396 = arith.mulf %395, %349 : vector<8x128xf32>
    %397 = arith.addf %396, %390 : vector<8x128xf32>
    %cst_135 = arith.constant 1.000000e+00 : f32
    %398 = vector.broadcast %cst_135 : f32 to vector<8x128xf32>
    %399 = arith.mulf %394, %398 : vector<8x128xf32>
    %400 = arith.subf %397, %399 : vector<8x128xf32>
    %cst_136 = arith.constant 1.000000e+00 : f32
    %401 = vector.broadcast %cst_136 : f32 to vector<8x128xf32>
    %402 = arith.cmpf ogt, %400, %401 : vector<8x128xf32>
    %403 = arith.extui %402 : vector<8x128xi1> to vector<8x128xi32>
    %404 = arith.sitofp %403 : vector<8x128xi32> to vector<8x128xf32>
    %cst_137 = arith.constant dense<0.000000e+00> : vector<8x128xf32>
    %405 = tpu.matmul %404, %3, %cst_137 {dimension_numbers = #tpu.dot_dimension_numbers<[1], [0], [0], [1], [0, 0, 1, 1], [], []>} : vector<8x128xf32>, vector<128x128xf32>, vector<8x128xf32> -> vector<8x128xf32>
    %406 = arith.addf %405, %12 : vector<8x128xf32>
    %cst_138 = arith.constant 1.000000e+00 : f32
    %407 = vector.broadcast %cst_138 : f32 to vector<8x128xf32>
    %408 = arith.cmpf ogt, %365, %407 : vector<8x128xf32>
    %409 = arith.extui %408 : vector<8x128xi1> to vector<8x128xi32>
    %410 = arith.sitofp %409 : vector<8x128xi32> to vector<8x128xf32>
    %cst_139 = arith.constant 0.899999976 : f32
    %411 = vector.broadcast %cst_139 : f32 to vector<8x128xf32>
    %412 = arith.mulf %411, %365 : vector<8x128xf32>
    %413 = arith.addf %412, %406 : vector<8x128xf32>
    %cst_140 = arith.constant 1.000000e+00 : f32
    %414 = vector.broadcast %cst_140 : f32 to vector<8x128xf32>
    %415 = arith.mulf %410, %414 : vector<8x128xf32>
    %416 = arith.subf %413, %415 : vector<8x128xf32>
    %cst_141 = arith.constant 1.000000e+00 : f32
    %417 = vector.broadcast %cst_141 : f32 to vector<8x128xf32>
    %418 = arith.cmpf ogt, %416, %417 : vector<8x128xf32>
    %419 = arith.extui %418 : vector<8x128xi1> to vector<8x128xi32>
    %420 = arith.sitofp %419 : vector<8x128xi32> to vector<8x128xf32>
    %421 = tpu.concatenate %420, %416 in 1 : vector<8x128xf32>, vector<8x128xf32> -> vector<8x256xf32>
    %422 = arith.index_cast %c7_i32 : i32 to index
    %c0_142 = arith.constant 0 : index
    %c0_143 = arith.constant 0 : index
    %423 = vector.load %arg8[%422, %c0_142, %c0_143] : memref<25x8x256xf32, #tpu.memory_space<vmem>>, vector<1x8x256xf32>
    %424 = vector.shape_cast %423 : vector<1x8x256xf32> to vector<8x256xf32>
    %425 = vector.shape_cast %421 : vector<8x256xf32> to vector<1x8x256xf32>
    tpu.vector_store %arg8[%422, %c0_142, %c0_143], %425 {strides = array<i32>} : memref<25x8x256xf32, #tpu.memory_space<vmem>>, vector<1x8x256xf32>,
    %c8_i32 = arith.constant 8 : i32
    %cst_144 = arith.constant 1.000000e+00 : f32
    %426 = vector.broadcast %cst_144 : f32 to vector<8x128xf32>
    %427 = arith.cmpf ogt, %384, %426 : vector<8x128xf32>
    %428 = arith.extui %427 : vector<8x128xi1> to vector<8x128xi32>
    %429 = arith.sitofp %428 : vector<8x128xi32> to vector<8x128xf32>
    %cst_145 = arith.constant 0.899999976 : f32
    %430 = vector.broadcast %cst_145 : f32 to vector<8x128xf32>
    %431 = arith.mulf %430, %384 : vector<8x128xf32>
    %432 = arith.addf %431, %14 : vector<8x128xf32>
    %cst_146 = arith.constant 1.000000e+00 : f32
    %433 = vector.broadcast %cst_146 : f32 to vector<8x128xf32>
    %434 = arith.mulf %429, %433 : vector<8x128xf32>
    %435 = arith.subf %432, %434 : vector<8x128xf32>
    %cst_147 = arith.constant 1.000000e+00 : f32
    %436 = vector.broadcast %cst_147 : f32 to vector<8x128xf32>
    %437 = arith.cmpf ogt, %435, %436 : vector<8x128xf32>
    %438 = arith.extui %437 : vector<8x128xi1> to vector<8x128xi32>
    %439 = arith.sitofp %438 : vector<8x128xi32> to vector<8x128xf32>
    %cst_148 = arith.constant dense<0.000000e+00> : vector<8x128xf32>
    %440 = tpu.matmul %439, %2, %cst_148 {dimension_numbers = #tpu.dot_dimension_numbers<[1], [0], [0], [1], [0, 0, 1, 1], [], []>} : vector<8x128xf32>, vector<128x128xf32>, vector<8x128xf32> -> vector<8x128xf32>
    %441 = arith.addf %440, %9 : vector<8x128xf32>
    %cst_149 = arith.constant 1.000000e+00 : f32
    %442 = vector.broadcast %cst_149 : f32 to vector<8x128xf32>
    %443 = arith.cmpf ogt, %400, %442 : vector<8x128xf32>
    %444 = arith.extui %443 : vector<8x128xi1> to vector<8x128xi32>
    %445 = arith.sitofp %444 : vector<8x128xi32> to vector<8x128xf32>
    %cst_150 = arith.constant 0.899999976 : f32
    %446 = vector.broadcast %cst_150 : f32 to vector<8x128xf32>
    %447 = arith.mulf %446, %400 : vector<8x128xf32>
    %448 = arith.addf %447, %441 : vector<8x128xf32>
    %cst_151 = arith.constant 1.000000e+00 : f32
    %449 = vector.broadcast %cst_151 : f32 to vector<8x128xf32>
    %450 = arith.mulf %445, %449 : vector<8x128xf32>
    %451 = arith.subf %448, %450 : vector<8x128xf32>
    %cst_152 = arith.constant 1.000000e+00 : f32
    %452 = vector.broadcast %cst_152 : f32 to vector<8x128xf32>
    %453 = arith.cmpf ogt, %451, %452 : vector<8x128xf32>
    %454 = arith.extui %453 : vector<8x128xi1> to vector<8x128xi32>
    %455 = arith.sitofp %454 : vector<8x128xi32> to vector<8x128xf32>
    %cst_153 = arith.constant dense<0.000000e+00> : vector<8x128xf32>
    %456 = tpu.matmul %455, %3, %cst_153 {dimension_numbers = #tpu.dot_dimension_numbers<[1], [0], [0], [1], [0, 0, 1, 1], [], []>} : vector<8x128xf32>, vector<128x128xf32>, vector<8x128xf32> -> vector<8x128xf32>
    %457 = arith.addf %456, %12 : vector<8x128xf32>
    %cst_154 = arith.constant 1.000000e+00 : f32
    %458 = vector.broadcast %cst_154 : f32 to vector<8x128xf32>
    %459 = arith.cmpf ogt, %416, %458 : vector<8x128xf32>
    %460 = arith.extui %459 : vector<8x128xi1> to vector<8x128xi32>
    %461 = arith.sitofp %460 : vector<8x128xi32> to vector<8x128xf32>
    %cst_155 = arith.constant 0.899999976 : f32
    %462 = vector.broadcast %cst_155 : f32 to vector<8x128xf32>
    %463 = arith.mulf %462, %416 : vector<8x128xf32>
    %464 = arith.addf %463, %457 : vector<8x128xf32>
    %cst_156 = arith.constant 1.000000e+00 : f32
    %465 = vector.broadcast %cst_156 : f32 to vector<8x128xf32>
    %466 = arith.mulf %461, %465 : vector<8x128xf32>
    %467 = arith.subf %464, %466 : vector<8x128xf32>
    %cst_157 = arith.constant 1.000000e+00 : f32
    %468 = vector.broadcast %cst_157 : f32 to vector<8x128xf32>
    %469 = arith.cmpf ogt, %467, %468 : vector<8x128xf32>
    %470 = arith.extui %469 : vector<8x128xi1> to vector<8x128xi32>
    %471 = arith.sitofp %470 : vector<8x128xi32> to vector<8x128xf32>
    %472 = tpu.concatenate %471, %467 in 1 : vector<8x128xf32>, vector<8x128xf32> -> vector<8x256xf32>
    %473 = arith.index_cast %c8_i32 : i32 to index
    %c0_158 = arith.constant 0 : index
    %c0_159 = arith.constant 0 : index
    %474 = vector.load %arg8[%473, %c0_158, %c0_159] : memref<25x8x256xf32, #tpu.memory_space<vmem>>, vector<1x8x256xf32>
    %475 = vector.shape_cast %474 : vector<1x8x256xf32> to vector<8x256xf32>
    %476 = vector.shape_cast %472 : vector<8x256xf32> to vector<1x8x256xf32>
    tpu.vector_store %arg8[%473, %c0_158, %c0_159], %476 {strides = array<i32>} : memref<25x8x256xf32, #tpu.memory_space<vmem>>, vector<1x8x256xf32>,
    %c9_i32 = arith.constant 9 : i32
    %cst_160 = arith.constant 1.000000e+00 : f32
    %477 = vector.broadcast %cst_160 : f32 to vector<8x128xf32>
    %478 = arith.cmpf ogt, %435, %477 : vector<8x128xf32>
    %479 = arith.extui %478 : vector<8x128xi1> to vector<8x128xi32>
    %480 = arith.sitofp %479 : vector<8x128xi32> to vector<8x128xf32>
    %cst_161 = arith.constant 0.899999976 : f32
    %481 = vector.broadcast %cst_161 : f32 to vector<8x128xf32>
    %482 = arith.mulf %481, %435 : vector<8x128xf32>
    %483 = arith.addf %482, %14 : vector<8x128xf32>
    %cst_162 = arith.constant 1.000000e+00 : f32
    %484 = vector.broadcast %cst_162 : f32 to vector<8x128xf32>
    %485 = arith.mulf %480, %484 : vector<8x128xf32>
    %486 = arith.subf %483, %485 : vector<8x128xf32>
    %cst_163 = arith.constant 1.000000e+00 : f32
    %487 = vector.broadcast %cst_163 : f32 to vector<8x128xf32>
    %488 = arith.cmpf ogt, %486, %487 : vector<8x128xf32>
    %489 = arith.extui %488 : vector<8x128xi1> to vector<8x128xi32>
    %490 = arith.sitofp %489 : vector<8x128xi32> to vector<8x128xf32>
    %cst_164 = arith.constant dense<0.000000e+00> : vector<8x128xf32>
    %491 = tpu.matmul %490, %2, %cst_164 {dimension_numbers = #tpu.dot_dimension_numbers<[1], [0], [0], [1], [0, 0, 1, 1], [], []>} : vector<8x128xf32>, vector<128x128xf32>, vector<8x128xf32> -> vector<8x128xf32>
    %492 = arith.addf %491, %9 : vector<8x128xf32>
    %cst_165 = arith.constant 1.000000e+00 : f32
    %493 = vector.broadcast %cst_165 : f32 to vector<8x128xf32>
    %494 = arith.cmpf ogt, %451, %493 : vector<8x128xf32>
    %495 = arith.extui %494 : vector<8x128xi1> to vector<8x128xi32>
    %496 = arith.sitofp %495 : vector<8x128xi32> to vector<8x128xf32>
    %cst_166 = arith.constant 0.899999976 : f32
    %497 = vector.broadcast %cst_166 : f32 to vector<8x128xf32>
    %498 = arith.mulf %497, %451 : vector<8x128xf32>
    %499 = arith.addf %498, %492 : vector<8x128xf32>
    %cst_167 = arith.constant 1.000000e+00 : f32
    %500 = vector.broadcast %cst_167 : f32 to vector<8x128xf32>
    %501 = arith.mulf %496, %500 : vector<8x128xf32>
    %502 = arith.subf %499, %501 : vector<8x128xf32>
    %cst_168 = arith.constant 1.000000e+00 : f32
    %503 = vector.broadcast %cst_168 : f32 to vector<8x128xf32>
    %504 = arith.cmpf ogt, %502, %503 : vector<8x128xf32>
    %505 = arith.extui %504 : vector<8x128xi1> to vector<8x128xi32>
    %506 = arith.sitofp %505 : vector<8x128xi32> to vector<8x128xf32>
    %cst_169 = arith.constant dense<0.000000e+00> : vector<8x128xf32>
    %507 = tpu.matmul %506, %3, %cst_169 {dimension_numbers = #tpu.dot_dimension_numbers<[1], [0], [0], [1], [0, 0, 1, 1], [], []>} : vector<8x128xf32>, vector<128x128xf32>, vector<8x128xf32> -> vector<8x128xf32>
    %508 = arith.addf %507, %12 : vector<8x128xf32>
    %cst_170 = arith.constant 1.000000e+00 : f32
    %509 = vector.broadcast %cst_170 : f32 to vector<8x128xf32>
    %510 = arith.cmpf ogt, %467, %509 : vector<8x128xf32>
    %511 = arith.extui %510 : vector<8x128xi1> to vector<8x128xi32>
    %512 = arith.sitofp %511 : vector<8x128xi32> to vector<8x128xf32>
    %cst_171 = arith.constant 0.899999976 : f32
    %513 = vector.broadcast %cst_171 : f32 to vector<8x128xf32>
    %514 = arith.mulf %513, %467 : vector<8x128xf32>
    %515 = arith.addf %514, %508 : vector<8x128xf32>
    %cst_172 = arith.constant 1.000000e+00 : f32
    %516 = vector.broadcast %cst_172 : f32 to vector<8x128xf32>
    %517 = arith.mulf %512, %516 : vector<8x128xf32>
    %518 = arith.subf %515, %517 : vector<8x128xf32>
    %cst_173 = arith.constant 1.000000e+00 : f32
    %519 = vector.broadcast %cst_173 : f32 to vector<8x128xf32>
    %520 = arith.cmpf ogt, %518, %519 : vector<8x128xf32>
    %521 = arith.extui %520 : vector<8x128xi1> to vector<8x128xi32>
    %522 = arith.sitofp %521 : vector<8x128xi32> to vector<8x128xf32>
    %523 = tpu.concatenate %522, %518 in 1 : vector<8x128xf32>, vector<8x128xf32> -> vector<8x256xf32>
    %524 = arith.index_cast %c9_i32 : i32 to index
    %c0_174 = arith.constant 0 : index
    %c0_175 = arith.constant 0 : index
    %525 = vector.load %arg8[%524, %c0_174, %c0_175] : memref<25x8x256xf32, #tpu.memory_space<vmem>>, vector<1x8x256xf32>
    %526 = vector.shape_cast %525 : vector<1x8x256xf32> to vector<8x256xf32>
    %527 = vector.shape_cast %523 : vector<8x256xf32> to vector<1x8x256xf32>
    tpu.vector_store %arg8[%524, %c0_174, %c0_175], %527 {strides = array<i32>} : memref<25x8x256xf32, #tpu.memory_space<vmem>>, vector<1x8x256xf32>,
    %c10_i32 = arith.constant 10 : i32
    %cst_176 = arith.constant 1.000000e+00 : f32
    %528 = vector.broadcast %cst_176 : f32 to vector<8x128xf32>
    %529 = arith.cmpf ogt, %486, %528 : vector<8x128xf32>
    %530 = arith.extui %529 : vector<8x128xi1> to vector<8x128xi32>
    %531 = arith.sitofp %530 : vector<8x128xi32> to vector<8x128xf32>
    %cst_177 = arith.constant 0.899999976 : f32
    %532 = vector.broadcast %cst_177 : f32 to vector<8x128xf32>
    %533 = arith.mulf %532, %486 : vector<8x128xf32>
    %534 = arith.addf %533, %14 : vector<8x128xf32>
    %cst_178 = arith.constant 1.000000e+00 : f32
    %535 = vector.broadcast %cst_178 : f32 to vector<8x128xf32>
    %536 = arith.mulf %531, %535 : vector<8x128xf32>
    %537 = arith.subf %534, %536 : vector<8x128xf32>
    %cst_179 = arith.constant 1.000000e+00 : f32
    %538 = vector.broadcast %cst_179 : f32 to vector<8x128xf32>
    %539 = arith.cmpf ogt, %537, %538 : vector<8x128xf32>
    %540 = arith.extui %539 : vector<8x128xi1> to vector<8x128xi32>
    %541 = arith.sitofp %540 : vector<8x128xi32> to vector<8x128xf32>
    %cst_180 = arith.constant dense<0.000000e+00> : vector<8x128xf32>
    %542 = tpu.matmul %541, %2, %cst_180 {dimension_numbers = #tpu.dot_dimension_numbers<[1], [0], [0], [1], [0, 0, 1, 1], [], []>} : vector<8x128xf32>, vector<128x128xf32>, vector<8x128xf32> -> vector<8x128xf32>
    %543 = arith.addf %542, %9 : vector<8x128xf32>
    %cst_181 = arith.constant 1.000000e+00 : f32
    %544 = vector.broadcast %cst_181 : f32 to vector<8x128xf32>
    %545 = arith.cmpf ogt, %502, %544 : vector<8x128xf32>
    %546 = arith.extui %545 : vector<8x128xi1> to vector<8x128xi32>
    %547 = arith.sitofp %546 : vector<8x128xi32> to vector<8x128xf32>
    %cst_182 = arith.constant 0.899999976 : f32
    %548 = vector.broadcast %cst_182 : f32 to vector<8x128xf32>
    %549 = arith.mulf %548, %502 : vector<8x128xf32>
    %550 = arith.addf %549, %543 : vector<8x128xf32>
    %cst_183 = arith.constant 1.000000e+00 : f32
    %551 = vector.broadcast %cst_183 : f32 to vector<8x128xf32>
    %552 = arith.mulf %547, %551 : vector<8x128xf32>
    %553 = arith.subf %550, %552 : vector<8x128xf32>
    %cst_184 = arith.constant 1.000000e+00 : f32
    %554 = vector.broadcast %cst_184 : f32 to vector<8x128xf32>
    %555 = arith.cmpf ogt, %553, %554 : vector<8x128xf32>
    %556 = arith.extui %555 : vector<8x128xi1> to vector<8x128xi32>
    %557 = arith.sitofp %556 : vector<8x128xi32> to vector<8x128xf32>
    %cst_185 = arith.constant dense<0.000000e+00> : vector<8x128xf32>
    %558 = tpu.matmul %557, %3, %cst_185 {dimension_numbers = #tpu.dot_dimension_numbers<[1], [0], [0], [1], [0, 0, 1, 1], [], []>} : vector<8x128xf32>, vector<128x128xf32>, vector<8x128xf32> -> vector<8x128xf32>
    %559 = arith.addf %558, %12 : vector<8x128xf32>
    %cst_186 = arith.constant 1.000000e+00 : f32
    %560 = vector.broadcast %cst_186 : f32 to vector<8x128xf32>
    %561 = arith.cmpf ogt, %518, %560 : vector<8x128xf32>
    %562 = arith.extui %561 : vector<8x128xi1> to vector<8x128xi32>
    %563 = arith.sitofp %562 : vector<8x128xi32> to vector<8x128xf32>
    %cst_187 = arith.constant 0.899999976 : f32
    %564 = vector.broadcast %cst_187 : f32 to vector<8x128xf32>
    %565 = arith.mulf %564, %518 : vector<8x128xf32>
    %566 = arith.addf %565, %559 : vector<8x128xf32>
    %cst_188 = arith.constant 1.000000e+00 : f32
    %567 = vector.broadcast %cst_188 : f32 to vector<8x128xf32>
    %568 = arith.mulf %563, %567 : vector<8x128xf32>
    %569 = arith.subf %566, %568 : vector<8x128xf32>
    %cst_189 = arith.constant 1.000000e+00 : f32
    %570 = vector.broadcast %cst_189 : f32 to vector<8x128xf32>
    %571 = arith.cmpf ogt, %569, %570 : vector<8x128xf32>
    %572 = arith.extui %571 : vector<8x128xi1> to vector<8x128xi32>
    %573 = arith.sitofp %572 : vector<8x128xi32> to vector<8x128xf32>
    %574 = tpu.concatenate %573, %569 in 1 : vector<8x128xf32>, vector<8x128xf32> -> vector<8x256xf32>
    %575 = arith.index_cast %c10_i32 : i32 to index
    %c0_190 = arith.constant 0 : index
    %c0_191 = arith.constant 0 : index
    %576 = vector.load %arg8[%575, %c0_190, %c0_191] : memref<25x8x256xf32, #tpu.memory_space<vmem>>, vector<1x8x256xf32>
    %577 = vector.shape_cast %576 : vector<1x8x256xf32> to vector<8x256xf32>
    %578 = vector.shape_cast %574 : vector<8x256xf32> to vector<1x8x256xf32>
    tpu.vector_store %arg8[%575, %c0_190, %c0_191], %578 {strides = array<i32>} : memref<25x8x256xf32, #tpu.memory_space<vmem>>, vector<1x8x256xf32>,
    %c11_i32 = arith.constant 11 : i32
    %cst_192 = arith.constant 1.000000e+00 : f32
    %579 = vector.broadcast %cst_192 : f32 to vector<8x128xf32>
    %580 = arith.cmpf ogt, %537, %579 : vector<8x128xf32>
    %581 = arith.extui %580 : vector<8x128xi1> to vector<8x128xi32>
    %582 = arith.sitofp %581 : vector<8x128xi32> to vector<8x128xf32>
    %cst_193 = arith.constant 0.899999976 : f32
    %583 = vector.broadcast %cst_193 : f32 to vector<8x128xf32>
    %584 = arith.mulf %583, %537 : vector<8x128xf32>
    %585 = arith.addf %584, %14 : vector<8x128xf32>
    %cst_194 = arith.constant 1.000000e+00 : f32
    %586 = vector.broadcast %cst_194 : f32 to vector<8x128xf32>
    %587 = arith.mulf %582, %586 : vector<8x128xf32>
    %588 = arith.subf %585, %587 : vector<8x128xf32>
    %cst_195 = arith.constant 1.000000e+00 : f32
    %589 = vector.broadcast %cst_195 : f32 to vector<8x128xf32>
    %590 = arith.cmpf ogt, %588, %589 : vector<8x128xf32>
    %591 = arith.extui %590 : vector<8x128xi1> to vector<8x128xi32>
    %592 = arith.sitofp %591 : vector<8x128xi32> to vector<8x128xf32>
    %cst_196 = arith.constant dense<0.000000e+00> : vector<8x128xf32>
    %593 = tpu.matmul %592, %2, %cst_196 {dimension_numbers = #tpu.dot_dimension_numbers<[1], [0], [0], [1], [0, 0, 1, 1], [], []>} : vector<8x128xf32>, vector<128x128xf32>, vector<8x128xf32> -> vector<8x128xf32>
    %594 = arith.addf %593, %9 : vector<8x128xf32>
    %cst_197 = arith.constant 1.000000e+00 : f32
    %595 = vector.broadcast %cst_197 : f32 to vector<8x128xf32>
    %596 = arith.cmpf ogt, %553, %595 : vector<8x128xf32>
    %597 = arith.extui %596 : vector<8x128xi1> to vector<8x128xi32>
    %598 = arith.sitofp %597 : vector<8x128xi32> to vector<8x128xf32>
    %cst_198 = arith.constant 0.899999976 : f32
    %599 = vector.broadcast %cst_198 : f32 to vector<8x128xf32>
    %600 = arith.mulf %599, %553 : vector<8x128xf32>
    %601 = arith.addf %600, %594 : vector<8x128xf32>
    %cst_199 = arith.constant 1.000000e+00 : f32
    %602 = vector.broadcast %cst_199 : f32 to vector<8x128xf32>
    %603 = arith.mulf %598, %602 : vector<8x128xf32>
    %604 = arith.subf %601, %603 : vector<8x128xf32>
    %cst_200 = arith.constant 1.000000e+00 : f32
    %605 = vector.broadcast %cst_200 : f32 to vector<8x128xf32>
    %606 = arith.cmpf ogt, %604, %605 : vector<8x128xf32>
    %607 = arith.extui %606 : vector<8x128xi1> to vector<8x128xi32>
    %608 = arith.sitofp %607 : vector<8x128xi32> to vector<8x128xf32>
    %cst_201 = arith.constant dense<0.000000e+00> : vector<8x128xf32>
    %609 = tpu.matmul %608, %3, %cst_201 {dimension_numbers = #tpu.dot_dimension_numbers<[1], [0], [0], [1], [0, 0, 1, 1], [], []>} : vector<8x128xf32>, vector<128x128xf32>, vector<8x128xf32> -> vector<8x128xf32>
    %610 = arith.addf %609, %12 : vector<8x128xf32>
    %cst_202 = arith.constant 1.000000e+00 : f32
    %611 = vector.broadcast %cst_202 : f32 to vector<8x128xf32>
    %612 = arith.cmpf ogt, %569, %611 : vector<8x128xf32>
    %613 = arith.extui %612 : vector<8x128xi1> to vector<8x128xi32>
    %614 = arith.sitofp %613 : vector<8x128xi32> to vector<8x128xf32>
    %cst_203 = arith.constant 0.899999976 : f32
    %615 = vector.broadcast %cst_203 : f32 to vector<8x128xf32>
    %616 = arith.mulf %615, %569 : vector<8x128xf32>
    %617 = arith.addf %616, %610 : vector<8x128xf32>
    %cst_204 = arith.constant 1.000000e+00 : f32
    %618 = vector.broadcast %cst_204 : f32 to vector<8x128xf32>
    %619 = arith.mulf %614, %618 : vector<8x128xf32>
    %620 = arith.subf %617, %619 : vector<8x128xf32>
    %cst_205 = arith.constant 1.000000e+00 : f32
    %621 = vector.broadcast %cst_205 : f32 to vector<8x128xf32>
    %622 = arith.cmpf ogt, %620, %621 : vector<8x128xf32>
    %623 = arith.extui %622 : vector<8x128xi1> to vector<8x128xi32>
    %624 = arith.sitofp %623 : vector<8x128xi32> to vector<8x128xf32>
    %625 = tpu.concatenate %624, %620 in 1 : vector<8x128xf32>, vector<8x128xf32> -> vector<8x256xf32>
    %626 = arith.index_cast %c11_i32 : i32 to index
    %c0_206 = arith.constant 0 : index
    %c0_207 = arith.constant 0 : index
    %627 = vector.load %arg8[%626, %c0_206, %c0_207] : memref<25x8x256xf32, #tpu.memory_space<vmem>>, vector<1x8x256xf32>
    %628 = vector.shape_cast %627 : vector<1x8x256xf32> to vector<8x256xf32>
    %629 = vector.shape_cast %625 : vector<8x256xf32> to vector<1x8x256xf32>
    tpu.vector_store %arg8[%626, %c0_206, %c0_207], %629 {strides = array<i32>} : memref<25x8x256xf32, #tpu.memory_space<vmem>>, vector<1x8x256xf32>,
    %c12_i32 = arith.constant 12 : i32
    %cst_208 = arith.constant 1.000000e+00 : f32
    %630 = vector.broadcast %cst_208 : f32 to vector<8x128xf32>
    %631 = arith.cmpf ogt, %588, %630 : vector<8x128xf32>
    %632 = arith.extui %631 : vector<8x128xi1> to vector<8x128xi32>
    %633 = arith.sitofp %632 : vector<8x128xi32> to vector<8x128xf32>
    %cst_209 = arith.constant 0.899999976 : f32
    %634 = vector.broadcast %cst_209 : f32 to vector<8x128xf32>
    %635 = arith.mulf %634, %588 : vector<8x128xf32>
    %636 = arith.addf %635, %14 : vector<8x128xf32>
    %cst_210 = arith.constant 1.000000e+00 : f32
    %637 = vector.broadcast %cst_210 : f32 to vector<8x128xf32>
    %638 = arith.mulf %633, %637 : vector<8x128xf32>
    %639 = arith.subf %636, %638 : vector<8x128xf32>
    %cst_211 = arith.constant 1.000000e+00 : f32
    %640 = vector.broadcast %cst_211 : f32 to vector<8x128xf32>
    %641 = arith.cmpf ogt, %639, %640 : vector<8x128xf32>
    %642 = arith.extui %641 : vector<8x128xi1> to vector<8x128xi32>
    %643 = arith.sitofp %642 : vector<8x128xi32> to vector<8x128xf32>
    %cst_212 = arith.constant dense<0.000000e+00> : vector<8x128xf32>
    %644 = tpu.matmul %643, %2, %cst_212 {dimension_numbers = #tpu.dot_dimension_numbers<[1], [0], [0], [1], [0, 0, 1, 1], [], []>} : vector<8x128xf32>, vector<128x128xf32>, vector<8x128xf32> -> vector<8x128xf32>
    %645 = arith.addf %644, %9 : vector<8x128xf32>
    %cst_213 = arith.constant 1.000000e+00 : f32
    %646 = vector.broadcast %cst_213 : f32 to vector<8x128xf32>
    %647 = arith.cmpf ogt, %604, %646 : vector<8x128xf32>
    %648 = arith.extui %647 : vector<8x128xi1> to vector<8x128xi32>
    %649 = arith.sitofp %648 : vector<8x128xi32> to vector<8x128xf32>
    %cst_214 = arith.constant 0.899999976 : f32
    %650 = vector.broadcast %cst_214 : f32 to vector<8x128xf32>
    %651 = arith.mulf %650, %604 : vector<8x128xf32>
    %652 = arith.addf %651, %645 : vector<8x128xf32>
    %cst_215 = arith.constant 1.000000e+00 : f32
    %653 = vector.broadcast %cst_215 : f32 to vector<8x128xf32>
    %654 = arith.mulf %649, %653 : vector<8x128xf32>
    %655 = arith.subf %652, %654 : vector<8x128xf32>
    %cst_216 = arith.constant 1.000000e+00 : f32
    %656 = vector.broadcast %cst_216 : f32 to vector<8x128xf32>
    %657 = arith.cmpf ogt, %655, %656 : vector<8x128xf32>
    %658 = arith.extui %657 : vector<8x128xi1> to vector<8x128xi32>
    %659 = arith.sitofp %658 : vector<8x128xi32> to vector<8x128xf32>
    %cst_217 = arith.constant dense<0.000000e+00> : vector<8x128xf32>
    %660 = tpu.matmul %659, %3, %cst_217 {dimension_numbers = #tpu.dot_dimension_numbers<[1], [0], [0], [1], [0, 0, 1, 1], [], []>} : vector<8x128xf32>, vector<128x128xf32>, vector<8x128xf32> -> vector<8x128xf32>
    %661 = arith.addf %660, %12 : vector<8x128xf32>
    %cst_218 = arith.constant 1.000000e+00 : f32
    %662 = vector.broadcast %cst_218 : f32 to vector<8x128xf32>
    %663 = arith.cmpf ogt, %620, %662 : vector<8x128xf32>
    %664 = arith.extui %663 : vector<8x128xi1> to vector<8x128xi32>
    %665 = arith.sitofp %664 : vector<8x128xi32> to vector<8x128xf32>
    %cst_219 = arith.constant 0.899999976 : f32
    %666 = vector.broadcast %cst_219 : f32 to vector<8x128xf32>
    %667 = arith.mulf %666, %620 : vector<8x128xf32>
    %668 = arith.addf %667, %661 : vector<8x128xf32>
    %cst_220 = arith.constant 1.000000e+00 : f32
    %669 = vector.broadcast %cst_220 : f32 to vector<8x128xf32>
    %670 = arith.mulf %665, %669 : vector<8x128xf32>
    %671 = arith.subf %668, %670 : vector<8x128xf32>
    %cst_221 = arith.constant 1.000000e+00 : f32
    %672 = vector.broadcast %cst_221 : f32 to vector<8x128xf32>
    %673 = arith.cmpf ogt, %671, %672 : vector<8x128xf32>
    %674 = arith.extui %673 : vector<8x128xi1> to vector<8x128xi32>
    %675 = arith.sitofp %674 : vector<8x128xi32> to vector<8x128xf32>
    %676 = tpu.concatenate %675, %671 in 1 : vector<8x128xf32>, vector<8x128xf32> -> vector<8x256xf32>
    %677 = arith.index_cast %c12_i32 : i32 to index
    %c0_222 = arith.constant 0 : index
    %c0_223 = arith.constant 0 : index
    %678 = vector.load %arg8[%677, %c0_222, %c0_223] : memref<25x8x256xf32, #tpu.memory_space<vmem>>, vector<1x8x256xf32>
    %679 = vector.shape_cast %678 : vector<1x8x256xf32> to vector<8x256xf32>
    %680 = vector.shape_cast %676 : vector<8x256xf32> to vector<1x8x256xf32>
    tpu.vector_store %arg8[%677, %c0_222, %c0_223], %680 {strides = array<i32>} : memref<25x8x256xf32, #tpu.memory_space<vmem>>, vector<1x8x256xf32>,
    %c13_i32 = arith.constant 13 : i32
    %cst_224 = arith.constant 1.000000e+00 : f32
    %681 = vector.broadcast %cst_224 : f32 to vector<8x128xf32>
    %682 = arith.cmpf ogt, %639, %681 : vector<8x128xf32>
    %683 = arith.extui %682 : vector<8x128xi1> to vector<8x128xi32>
    %684 = arith.sitofp %683 : vector<8x128xi32> to vector<8x128xf32>
    %cst_225 = arith.constant 0.899999976 : f32
    %685 = vector.broadcast %cst_225 : f32 to vector<8x128xf32>
    %686 = arith.mulf %685, %639 : vector<8x128xf32>
    %687 = arith.addf %686, %14 : vector<8x128xf32>
    %cst_226 = arith.constant 1.000000e+00 : f32
    %688 = vector.broadcast %cst_226 : f32 to vector<8x128xf32>
    %689 = arith.mulf %684, %688 : vector<8x128xf32>
    %690 = arith.subf %687, %689 : vector<8x128xf32>
    %cst_227 = arith.constant 1.000000e+00 : f32
    %691 = vector.broadcast %cst_227 : f32 to vector<8x128xf32>
    %692 = arith.cmpf ogt, %690, %691 : vector<8x128xf32>
    %693 = arith.extui %692 : vector<8x128xi1> to vector<8x128xi32>
    %694 = arith.sitofp %693 : vector<8x128xi32> to vector<8x128xf32>
    %cst_228 = arith.constant dense<0.000000e+00> : vector<8x128xf32>
    %695 = tpu.matmul %694, %2, %cst_228 {dimension_numbers = #tpu.dot_dimension_numbers<[1], [0], [0], [1], [0, 0, 1, 1], [], []>} : vector<8x128xf32>, vector<128x128xf32>, vector<8x128xf32> -> vector<8x128xf32>
    %696 = arith.addf %695, %9 : vector<8x128xf32>
    %cst_229 = arith.constant 1.000000e+00 : f32
    %697 = vector.broadcast %cst_229 : f32 to vector<8x128xf32>
    %698 = arith.cmpf ogt, %655, %697 : vector<8x128xf32>
    %699 = arith.extui %698 : vector<8x128xi1> to vector<8x128xi32>
    %700 = arith.sitofp %699 : vector<8x128xi32> to vector<8x128xf32>
    %cst_230 = arith.constant 0.899999976 : f32
    %701 = vector.broadcast %cst_230 : f32 to vector<8x128xf32>
    %702 = arith.mulf %701, %655 : vector<8x128xf32>
    %703 = arith.addf %702, %696 : vector<8x128xf32>
    %cst_231 = arith.constant 1.000000e+00 : f32
    %704 = vector.broadcast %cst_231 : f32 to vector<8x128xf32>
    %705 = arith.mulf %700, %704 : vector<8x128xf32>
    %706 = arith.subf %703, %705 : vector<8x128xf32>
    %cst_232 = arith.constant 1.000000e+00 : f32
    %707 = vector.broadcast %cst_232 : f32 to vector<8x128xf32>
    %708 = arith.cmpf ogt, %706, %707 : vector<8x128xf32>
    %709 = arith.extui %708 : vector<8x128xi1> to vector<8x128xi32>
    %710 = arith.sitofp %709 : vector<8x128xi32> to vector<8x128xf32>
    %cst_233 = arith.constant dense<0.000000e+00> : vector<8x128xf32>
    %711 = tpu.matmul %710, %3, %cst_233 {dimension_numbers = #tpu.dot_dimension_numbers<[1], [0], [0], [1], [0, 0, 1, 1], [], []>} : vector<8x128xf32>, vector<128x128xf32>, vector<8x128xf32> -> vector<8x128xf32>
    %712 = arith.addf %711, %12 : vector<8x128xf32>
    %cst_234 = arith.constant 1.000000e+00 : f32
    %713 = vector.broadcast %cst_234 : f32 to vector<8x128xf32>
    %714 = arith.cmpf ogt, %671, %713 : vector<8x128xf32>
    %715 = arith.extui %714 : vector<8x128xi1> to vector<8x128xi32>
    %716 = arith.sitofp %715 : vector<8x128xi32> to vector<8x128xf32>
    %cst_235 = arith.constant 0.899999976 : f32
    %717 = vector.broadcast %cst_235 : f32 to vector<8x128xf32>
    %718 = arith.mulf %717, %671 : vector<8x128xf32>
    %719 = arith.addf %718, %712 : vector<8x128xf32>
    %cst_236 = arith.constant 1.000000e+00 : f32
    %720 = vector.broadcast %cst_236 : f32 to vector<8x128xf32>
    %721 = arith.mulf %716, %720 : vector<8x128xf32>
    %722 = arith.subf %719, %721 : vector<8x128xf32>
    %cst_237 = arith.constant 1.000000e+00 : f32
    %723 = vector.broadcast %cst_237 : f32 to vector<8x128xf32>
    %724 = arith.cmpf ogt, %722, %723 : vector<8x128xf32>
    %725 = arith.extui %724 : vector<8x128xi1> to vector<8x128xi32>
    %726 = arith.sitofp %725 : vector<8x128xi32> to vector<8x128xf32>
    %727 = tpu.concatenate %726, %722 in 1 : vector<8x128xf32>, vector<8x128xf32> -> vector<8x256xf32>
    %728 = arith.index_cast %c13_i32 : i32 to index
    %c0_238 = arith.constant 0 : index
    %c0_239 = arith.constant 0 : index
    %729 = vector.load %arg8[%728, %c0_238, %c0_239] : memref<25x8x256xf32, #tpu.memory_space<vmem>>, vector<1x8x256xf32>
    %730 = vector.shape_cast %729 : vector<1x8x256xf32> to vector<8x256xf32>
    %731 = vector.shape_cast %727 : vector<8x256xf32> to vector<1x8x256xf32>
    tpu.vector_store %arg8[%728, %c0_238, %c0_239], %731 {strides = array<i32>} : memref<25x8x256xf32, #tpu.memory_space<vmem>>, vector<1x8x256xf32>,
    %c14_i32 = arith.constant 14 : i32
    %cst_240 = arith.constant 1.000000e+00 : f32
    %732 = vector.broadcast %cst_240 : f32 to vector<8x128xf32>
    %733 = arith.cmpf ogt, %690, %732 : vector<8x128xf32>
    %734 = arith.extui %733 : vector<8x128xi1> to vector<8x128xi32>
    %735 = arith.sitofp %734 : vector<8x128xi32> to vector<8x128xf32>
    %cst_241 = arith.constant 0.899999976 : f32
    %736 = vector.broadcast %cst_241 : f32 to vector<8x128xf32>
    %737 = arith.mulf %736, %690 : vector<8x128xf32>
    %738 = arith.addf %737, %14 : vector<8x128xf32>
    %cst_242 = arith.constant 1.000000e+00 : f32
    %739 = vector.broadcast %cst_242 : f32 to vector<8x128xf32>
    %740 = arith.mulf %735, %739 : vector<8x128xf32>
    %741 = arith.subf %738, %740 : vector<8x128xf32>
    %cst_243 = arith.constant 1.000000e+00 : f32
    %742 = vector.broadcast %cst_243 : f32 to vector<8x128xf32>
    %743 = arith.cmpf ogt, %741, %742 : vector<8x128xf32>
    %744 = arith.extui %743 : vector<8x128xi1> to vector<8x128xi32>
    %745 = arith.sitofp %744 : vector<8x128xi32> to vector<8x128xf32>
    %cst_244 = arith.constant dense<0.000000e+00> : vector<8x128xf32>
    %746 = tpu.matmul %745, %2, %cst_244 {dimension_numbers = #tpu.dot_dimension_numbers<[1], [0], [0], [1], [0, 0, 1, 1], [], []>} : vector<8x128xf32>, vector<128x128xf32>, vector<8x128xf32> -> vector<8x128xf32>
    %747 = arith.addf %746, %9 : vector<8x128xf32>
    %cst_245 = arith.constant 1.000000e+00 : f32
    %748 = vector.broadcast %cst_245 : f32 to vector<8x128xf32>
    %749 = arith.cmpf ogt, %706, %748 : vector<8x128xf32>
    %750 = arith.extui %749 : vector<8x128xi1> to vector<8x128xi32>
    %751 = arith.sitofp %750 : vector<8x128xi32> to vector<8x128xf32>
    %cst_246 = arith.constant 0.899999976 : f32
    %752 = vector.broadcast %cst_246 : f32 to vector<8x128xf32>
    %753 = arith.mulf %752, %706 : vector<8x128xf32>
    %754 = arith.addf %753, %747 : vector<8x128xf32>
    %cst_247 = arith.constant 1.000000e+00 : f32
    %755 = vector.broadcast %cst_247 : f32 to vector<8x128xf32>
    %756 = arith.mulf %751, %755 : vector<8x128xf32>
    %757 = arith.subf %754, %756 : vector<8x128xf32>
    %cst_248 = arith.constant 1.000000e+00 : f32
    %758 = vector.broadcast %cst_248 : f32 to vector<8x128xf32>
    %759 = arith.cmpf ogt, %757, %758 : vector<8x128xf32>
    %760 = arith.extui %759 : vector<8x128xi1> to vector<8x128xi32>
    %761 = arith.sitofp %760 : vector<8x128xi32> to vector<8x128xf32>
    %cst_249 = arith.constant dense<0.000000e+00> : vector<8x128xf32>
    %762 = tpu.matmul %761, %3, %cst_249 {dimension_numbers = #tpu.dot_dimension_numbers<[1], [0], [0], [1], [0, 0, 1, 1], [], []>} : vector<8x128xf32>, vector<128x128xf32>, vector<8x128xf32> -> vector<8x128xf32>
    %763 = arith.addf %762, %12 : vector<8x128xf32>
    %cst_250 = arith.constant 1.000000e+00 : f32
    %764 = vector.broadcast %cst_250 : f32 to vector<8x128xf32>
    %765 = arith.cmpf ogt, %722, %764 : vector<8x128xf32>
    %766 = arith.extui %765 : vector<8x128xi1> to vector<8x128xi32>
    %767 = arith.sitofp %766 : vector<8x128xi32> to vector<8x128xf32>
    %cst_251 = arith.constant 0.899999976 : f32
    %768 = vector.broadcast %cst_251 : f32 to vector<8x128xf32>
    %769 = arith.mulf %768, %722 : vector<8x128xf32>
    %770 = arith.addf %769, %763 : vector<8x128xf32>
    %cst_252 = arith.constant 1.000000e+00 : f32
    %771 = vector.broadcast %cst_252 : f32 to vector<8x128xf32>
    %772 = arith.mulf %767, %771 : vector<8x128xf32>
    %773 = arith.subf %770, %772 : vector<8x128xf32>
    %cst_253 = arith.constant 1.000000e+00 : f32
    %774 = vector.broadcast %cst_253 : f32 to vector<8x128xf32>
    %775 = arith.cmpf ogt, %773, %774 : vector<8x128xf32>
    %776 = arith.extui %775 : vector<8x128xi1> to vector<8x128xi32>
    %777 = arith.sitofp %776 : vector<8x128xi32> to vector<8x128xf32>
    %778 = tpu.concatenate %777, %773 in 1 : vector<8x128xf32>, vector<8x128xf32> -> vector<8x256xf32>
    %779 = arith.index_cast %c14_i32 : i32 to index
    %c0_254 = arith.constant 0 : index
    %c0_255 = arith.constant 0 : index
    %780 = vector.load %arg8[%779, %c0_254, %c0_255] : memref<25x8x256xf32, #tpu.memory_space<vmem>>, vector<1x8x256xf32>
    %781 = vector.shape_cast %780 : vector<1x8x256xf32> to vector<8x256xf32>
    %782 = vector.shape_cast %778 : vector<8x256xf32> to vector<1x8x256xf32>
    tpu.vector_store %arg8[%779, %c0_254, %c0_255], %782 {strides = array<i32>} : memref<25x8x256xf32, #tpu.memory_space<vmem>>, vector<1x8x256xf32>,
    %c15_i32 = arith.constant 15 : i32
    %cst_256 = arith.constant 1.000000e+00 : f32
    %783 = vector.broadcast %cst_256 : f32 to vector<8x128xf32>
    %784 = arith.cmpf ogt, %741, %783 : vector<8x128xf32>
    %785 = arith.extui %784 : vector<8x128xi1> to vector<8x128xi32>
    %786 = arith.sitofp %785 : vector<8x128xi32> to vector<8x128xf32>
    %cst_257 = arith.constant 0.899999976 : f32
    %787 = vector.broadcast %cst_257 : f32 to vector<8x128xf32>
    %788 = arith.mulf %787, %741 : vector<8x128xf32>
    %789 = arith.addf %788, %14 : vector<8x128xf32>
    %cst_258 = arith.constant 1.000000e+00 : f32
    %790 = vector.broadcast %cst_258 : f32 to vector<8x128xf32>
    %791 = arith.mulf %786, %790 : vector<8x128xf32>
    %792 = arith.subf %789, %791 : vector<8x128xf32>
    %cst_259 = arith.constant 1.000000e+00 : f32
    %793 = vector.broadcast %cst_259 : f32 to vector<8x128xf32>
    %794 = arith.cmpf ogt, %792, %793 : vector<8x128xf32>
    %795 = arith.extui %794 : vector<8x128xi1> to vector<8x128xi32>
    %796 = arith.sitofp %795 : vector<8x128xi32> to vector<8x128xf32>
    %cst_260 = arith.constant dense<0.000000e+00> : vector<8x128xf32>
    %797 = tpu.matmul %796, %2, %cst_260 {dimension_numbers = #tpu.dot_dimension_numbers<[1], [0], [0], [1], [0, 0, 1, 1], [], []>} : vector<8x128xf32>, vector<128x128xf32>, vector<8x128xf32> -> vector<8x128xf32>
    %798 = arith.addf %797, %9 : vector<8x128xf32>
    %cst_261 = arith.constant 1.000000e+00 : f32
    %799 = vector.broadcast %cst_261 : f32 to vector<8x128xf32>
    %800 = arith.cmpf ogt, %757, %799 : vector<8x128xf32>
    %801 = arith.extui %800 : vector<8x128xi1> to vector<8x128xi32>
    %802 = arith.sitofp %801 : vector<8x128xi32> to vector<8x128xf32>
    %cst_262 = arith.constant 0.899999976 : f32
    %803 = vector.broadcast %cst_262 : f32 to vector<8x128xf32>
    %804 = arith.mulf %803, %757 : vector<8x128xf32>
    %805 = arith.addf %804, %798 : vector<8x128xf32>
    %cst_263 = arith.constant 1.000000e+00 : f32
    %806 = vector.broadcast %cst_263 : f32 to vector<8x128xf32>
    %807 = arith.mulf %802, %806 : vector<8x128xf32>
    %808 = arith.subf %805, %807 : vector<8x128xf32>
    %cst_264 = arith.constant 1.000000e+00 : f32
    %809 = vector.broadcast %cst_264 : f32 to vector<8x128xf32>
    %810 = arith.cmpf ogt, %808, %809 : vector<8x128xf32>
    %811 = arith.extui %810 : vector<8x128xi1> to vector<8x128xi32>
    %812 = arith.sitofp %811 : vector<8x128xi32> to vector<8x128xf32>
    %cst_265 = arith.constant dense<0.000000e+00> : vector<8x128xf32>
    %813 = tpu.matmul %812, %3, %cst_265 {dimension_numbers = #tpu.dot_dimension_numbers<[1], [0], [0], [1], [0, 0, 1, 1], [], []>} : vector<8x128xf32>, vector<128x128xf32>, vector<8x128xf32> -> vector<8x128xf32>
    %814 = arith.addf %813, %12 : vector<8x128xf32>
    %cst_266 = arith.constant 1.000000e+00 : f32
    %815 = vector.broadcast %cst_266 : f32 to vector<8x128xf32>
    %816 = arith.cmpf ogt, %773, %815 : vector<8x128xf32>
    %817 = arith.extui %816 : vector<8x128xi1> to vector<8x128xi32>
    %818 = arith.sitofp %817 : vector<8x128xi32> to vector<8x128xf32>
    %cst_267 = arith.constant 0.899999976 : f32
    %819 = vector.broadcast %cst_267 : f32 to vector<8x128xf32>
    %820 = arith.mulf %819, %773 : vector<8x128xf32>
    %821 = arith.addf %820, %814 : vector<8x128xf32>
    %cst_268 = arith.constant 1.000000e+00 : f32
    %822 = vector.broadcast %cst_268 : f32 to vector<8x128xf32>
    %823 = arith.mulf %818, %822 : vector<8x128xf32>
    %824 = arith.subf %821, %823 : vector<8x128xf32>
    %cst_269 = arith.constant 1.000000e+00 : f32
    %825 = vector.broadcast %cst_269 : f32 to vector<8x128xf32>
    %826 = arith.cmpf ogt, %824, %825 : vector<8x128xf32>
    %827 = arith.extui %826 : vector<8x128xi1> to vector<8x128xi32>
    %828 = arith.sitofp %827 : vector<8x128xi32> to vector<8x128xf32>
    %829 = tpu.concatenate %828, %824 in 1 : vector<8x128xf32>, vector<8x128xf32> -> vector<8x256xf32>
    %830 = arith.index_cast %c15_i32 : i32 to index
    %c0_270 = arith.constant 0 : index
    %c0_271 = arith.constant 0 : index
    %831 = vector.load %arg8[%830, %c0_270, %c0_271] : memref<25x8x256xf32, #tpu.memory_space<vmem>>, vector<1x8x256xf32>
    %832 = vector.shape_cast %831 : vector<1x8x256xf32> to vector<8x256xf32>
    %833 = vector.shape_cast %829 : vector<8x256xf32> to vector<1x8x256xf32>
    tpu.vector_store %arg8[%830, %c0_270, %c0_271], %833 {strides = array<i32>} : memref<25x8x256xf32, #tpu.memory_space<vmem>>, vector<1x8x256xf32>,
    %c16_i32 = arith.constant 16 : i32
    %cst_272 = arith.constant 1.000000e+00 : f32
    %834 = vector.broadcast %cst_272 : f32 to vector<8x128xf32>
    %835 = arith.cmpf ogt, %792, %834 : vector<8x128xf32>
    %836 = arith.extui %835 : vector<8x128xi1> to vector<8x128xi32>
    %837 = arith.sitofp %836 : vector<8x128xi32> to vector<8x128xf32>
    %cst_273 = arith.constant 0.899999976 : f32
    %838 = vector.broadcast %cst_273 : f32 to vector<8x128xf32>
    %839 = arith.mulf %838, %792 : vector<8x128xf32>
    %840 = arith.addf %839, %14 : vector<8x128xf32>
    %cst_274 = arith.constant 1.000000e+00 : f32
    %841 = vector.broadcast %cst_274 : f32 to vector<8x128xf32>
    %842 = arith.mulf %837, %841 : vector<8x128xf32>
    %843 = arith.subf %840, %842 : vector<8x128xf32>
    %cst_275 = arith.constant 1.000000e+00 : f32
    %844 = vector.broadcast %cst_275 : f32 to vector<8x128xf32>
    %845 = arith.cmpf ogt, %843, %844 : vector<8x128xf32>
    %846 = arith.extui %845 : vector<8x128xi1> to vector<8x128xi32>
    %847 = arith.sitofp %846 : vector<8x128xi32> to vector<8x128xf32>
    %cst_276 = arith.constant dense<0.000000e+00> : vector<8x128xf32>
    %848 = tpu.matmul %847, %2, %cst_276 {dimension_numbers = #tpu.dot_dimension_numbers<[1], [0], [0], [1], [0, 0, 1, 1], [], []>} : vector<8x128xf32>, vector<128x128xf32>, vector<8x128xf32> -> vector<8x128xf32>
    %849 = arith.addf %848, %9 : vector<8x128xf32>
    %cst_277 = arith.constant 1.000000e+00 : f32
    %850 = vector.broadcast %cst_277 : f32 to vector<8x128xf32>
    %851 = arith.cmpf ogt, %808, %850 : vector<8x128xf32>
    %852 = arith.extui %851 : vector<8x128xi1> to vector<8x128xi32>
    %853 = arith.sitofp %852 : vector<8x128xi32> to vector<8x128xf32>
    %cst_278 = arith.constant 0.899999976 : f32
    %854 = vector.broadcast %cst_278 : f32 to vector<8x128xf32>
    %855 = arith.mulf %854, %808 : vector<8x128xf32>
    %856 = arith.addf %855, %849 : vector<8x128xf32>
    %cst_279 = arith.constant 1.000000e+00 : f32
    %857 = vector.broadcast %cst_279 : f32 to vector<8x128xf32>
    %858 = arith.mulf %853, %857 : vector<8x128xf32>
    %859 = arith.subf %856, %858 : vector<8x128xf32>
    %cst_280 = arith.constant 1.000000e+00 : f32
    %860 = vector.broadcast %cst_280 : f32 to vector<8x128xf32>
    %861 = arith.cmpf ogt, %859, %860 : vector<8x128xf32>
    %862 = arith.extui %861 : vector<8x128xi1> to vector<8x128xi32>
    %863 = arith.sitofp %862 : vector<8x128xi32> to vector<8x128xf32>
    %cst_281 = arith.constant dense<0.000000e+00> : vector<8x128xf32>
    %864 = tpu.matmul %863, %3, %cst_281 {dimension_numbers = #tpu.dot_dimension_numbers<[1], [0], [0], [1], [0, 0, 1, 1], [], []>} : vector<8x128xf32>, vector<128x128xf32>, vector<8x128xf32> -> vector<8x128xf32>
    %865 = arith.addf %864, %12 : vector<8x128xf32>
    %cst_282 = arith.constant 1.000000e+00 : f32
    %866 = vector.broadcast %cst_282 : f32 to vector<8x128xf32>
    %867 = arith.cmpf ogt, %824, %866 : vector<8x128xf32>
    %868 = arith.extui %867 : vector<8x128xi1> to vector<8x128xi32>
    %869 = arith.sitofp %868 : vector<8x128xi32> to vector<8x128xf32>
    %cst_283 = arith.constant 0.899999976 : f32
    %870 = vector.broadcast %cst_283 : f32 to vector<8x128xf32>
    %871 = arith.mulf %870, %824 : vector<8x128xf32>
    %872 = arith.addf %871, %865 : vector<8x128xf32>
    %cst_284 = arith.constant 1.000000e+00 : f32
    %873 = vector.broadcast %cst_284 : f32 to vector<8x128xf32>
    %874 = arith.mulf %869, %873 : vector<8x128xf32>
    %875 = arith.subf %872, %874 : vector<8x128xf32>
    %cst_285 = arith.constant 1.000000e+00 : f32
    %876 = vector.broadcast %cst_285 : f32 to vector<8x128xf32>
    %877 = arith.cmpf ogt, %875, %876 : vector<8x128xf32>
    %878 = arith.extui %877 : vector<8x128xi1> to vector<8x128xi32>
    %879 = arith.sitofp %878 : vector<8x128xi32> to vector<8x128xf32>
    %880 = tpu.concatenate %879, %875 in 1 : vector<8x128xf32>, vector<8x128xf32> -> vector<8x256xf32>
    %881 = arith.index_cast %c16_i32 : i32 to index
    %c0_286 = arith.constant 0 : index
    %c0_287 = arith.constant 0 : index
    %882 = vector.load %arg8[%881, %c0_286, %c0_287] : memref<25x8x256xf32, #tpu.memory_space<vmem>>, vector<1x8x256xf32>
    %883 = vector.shape_cast %882 : vector<1x8x256xf32> to vector<8x256xf32>
    %884 = vector.shape_cast %880 : vector<8x256xf32> to vector<1x8x256xf32>
    tpu.vector_store %arg8[%881, %c0_286, %c0_287], %884 {strides = array<i32>} : memref<25x8x256xf32, #tpu.memory_space<vmem>>, vector<1x8x256xf32>,
    %c17_i32 = arith.constant 17 : i32
    %cst_288 = arith.constant 1.000000e+00 : f32
    %885 = vector.broadcast %cst_288 : f32 to vector<8x128xf32>
    %886 = arith.cmpf ogt, %843, %885 : vector<8x128xf32>
    %887 = arith.extui %886 : vector<8x128xi1> to vector<8x128xi32>
    %888 = arith.sitofp %887 : vector<8x128xi32> to vector<8x128xf32>
    %cst_289 = arith.constant 0.899999976 : f32
    %889 = vector.broadcast %cst_289 : f32 to vector<8x128xf32>
    %890 = arith.mulf %889, %843 : vector<8x128xf32>
    %891 = arith.addf %890, %14 : vector<8x128xf32>
    %cst_290 = arith.constant 1.000000e+00 : f32
    %892 = vector.broadcast %cst_290 : f32 to vector<8x128xf32>
    %893 = arith.mulf %888, %892 : vector<8x128xf32>
    %894 = arith.subf %891, %893 : vector<8x128xf32>
    %cst_291 = arith.constant 1.000000e+00 : f32
    %895 = vector.broadcast %cst_291 : f32 to vector<8x128xf32>
    %896 = arith.cmpf ogt, %894, %895 : vector<8x128xf32>
    %897 = arith.extui %896 : vector<8x128xi1> to vector<8x128xi32>
    %898 = arith.sitofp %897 : vector<8x128xi32> to vector<8x128xf32>
    %cst_292 = arith.constant dense<0.000000e+00> : vector<8x128xf32>
    %899 = tpu.matmul %898, %2, %cst_292 {dimension_numbers = #tpu.dot_dimension_numbers<[1], [0], [0], [1], [0, 0, 1, 1], [], []>} : vector<8x128xf32>, vector<128x128xf32>, vector<8x128xf32> -> vector<8x128xf32>
    %900 = arith.addf %899, %9 : vector<8x128xf32>
    %cst_293 = arith.constant 1.000000e+00 : f32
    %901 = vector.broadcast %cst_293 : f32 to vector<8x128xf32>
    %902 = arith.cmpf ogt, %859, %901 : vector<8x128xf32>
    %903 = arith.extui %902 : vector<8x128xi1> to vector<8x128xi32>
    %904 = arith.sitofp %903 : vector<8x128xi32> to vector<8x128xf32>
    %cst_294 = arith.constant 0.899999976 : f32
    %905 = vector.broadcast %cst_294 : f32 to vector<8x128xf32>
    %906 = arith.mulf %905, %859 : vector<8x128xf32>
    %907 = arith.addf %906, %900 : vector<8x128xf32>
    %cst_295 = arith.constant 1.000000e+00 : f32
    %908 = vector.broadcast %cst_295 : f32 to vector<8x128xf32>
    %909 = arith.mulf %904, %908 : vector<8x128xf32>
    %910 = arith.subf %907, %909 : vector<8x128xf32>
    %cst_296 = arith.constant 1.000000e+00 : f32
    %911 = vector.broadcast %cst_296 : f32 to vector<8x128xf32>
    %912 = arith.cmpf ogt, %910, %911 : vector<8x128xf32>
    %913 = arith.extui %912 : vector<8x128xi1> to vector<8x128xi32>
    %914 = arith.sitofp %913 : vector<8x128xi32> to vector<8x128xf32>
    %cst_297 = arith.constant dense<0.000000e+00> : vector<8x128xf32>
    %915 = tpu.matmul %914, %3, %cst_297 {dimension_numbers = #tpu.dot_dimension_numbers<[1], [0], [0], [1], [0, 0, 1, 1], [], []>} : vector<8x128xf32>, vector<128x128xf32>, vector<8x128xf32> -> vector<8x128xf32>
    %916 = arith.addf %915, %12 : vector<8x128xf32>
    %cst_298 = arith.constant 1.000000e+00 : f32
    %917 = vector.broadcast %cst_298 : f32 to vector<8x128xf32>
    %918 = arith.cmpf ogt, %875, %917 : vector<8x128xf32>
    %919 = arith.extui %918 : vector<8x128xi1> to vector<8x128xi32>
    %920 = arith.sitofp %919 : vector<8x128xi32> to vector<8x128xf32>
    %cst_299 = arith.constant 0.899999976 : f32
    %921 = vector.broadcast %cst_299 : f32 to vector<8x128xf32>
    %922 = arith.mulf %921, %875 : vector<8x128xf32>
    %923 = arith.addf %922, %916 : vector<8x128xf32>
    %cst_300 = arith.constant 1.000000e+00 : f32
    %924 = vector.broadcast %cst_300 : f32 to vector<8x128xf32>
    %925 = arith.mulf %920, %924 : vector<8x128xf32>
    %926 = arith.subf %923, %925 : vector<8x128xf32>
    %cst_301 = arith.constant 1.000000e+00 : f32
    %927 = vector.broadcast %cst_301 : f32 to vector<8x128xf32>
    %928 = arith.cmpf ogt, %926, %927 : vector<8x128xf32>
    %929 = arith.extui %928 : vector<8x128xi1> to vector<8x128xi32>
    %930 = arith.sitofp %929 : vector<8x128xi32> to vector<8x128xf32>
    %931 = tpu.concatenate %930, %926 in 1 : vector<8x128xf32>, vector<8x128xf32> -> vector<8x256xf32>
    %932 = arith.index_cast %c17_i32 : i32 to index
    %c0_302 = arith.constant 0 : index
    %c0_303 = arith.constant 0 : index
    %933 = vector.load %arg8[%932, %c0_302, %c0_303] : memref<25x8x256xf32, #tpu.memory_space<vmem>>, vector<1x8x256xf32>
    %934 = vector.shape_cast %933 : vector<1x8x256xf32> to vector<8x256xf32>
    %935 = vector.shape_cast %931 : vector<8x256xf32> to vector<1x8x256xf32>
    tpu.vector_store %arg8[%932, %c0_302, %c0_303], %935 {strides = array<i32>} : memref<25x8x256xf32, #tpu.memory_space<vmem>>, vector<1x8x256xf32>,
    %c18_i32 = arith.constant 18 : i32
    %cst_304 = arith.constant 1.000000e+00 : f32
    %936 = vector.broadcast %cst_304 : f32 to vector<8x128xf32>
    %937 = arith.cmpf ogt, %894, %936 : vector<8x128xf32>
    %938 = arith.extui %937 : vector<8x128xi1> to vector<8x128xi32>
    %939 = arith.sitofp %938 : vector<8x128xi32> to vector<8x128xf32>
    %cst_305 = arith.constant 0.899999976 : f32
    %940 = vector.broadcast %cst_305 : f32 to vector<8x128xf32>
    %941 = arith.mulf %940, %894 : vector<8x128xf32>
    %942 = arith.addf %941, %14 : vector<8x128xf32>
    %cst_306 = arith.constant 1.000000e+00 : f32
    %943 = vector.broadcast %cst_306 : f32 to vector<8x128xf32>
    %944 = arith.mulf %939, %943 : vector<8x128xf32>
    %945 = arith.subf %942, %944 : vector<8x128xf32>
    %cst_307 = arith.constant 1.000000e+00 : f32
    %946 = vector.broadcast %cst_307 : f32 to vector<8x128xf32>
    %947 = arith.cmpf ogt, %945, %946 : vector<8x128xf32>
    %948 = arith.extui %947 : vector<8x128xi1> to vector<8x128xi32>
    %949 = arith.sitofp %948 : vector<8x128xi32> to vector<8x128xf32>
    %cst_308 = arith.constant dense<0.000000e+00> : vector<8x128xf32>
    %950 = tpu.matmul %949, %2, %cst_308 {dimension_numbers = #tpu.dot_dimension_numbers<[1], [0], [0], [1], [0, 0, 1, 1], [], []>} : vector<8x128xf32>, vector<128x128xf32>, vector<8x128xf32> -> vector<8x128xf32>
    %951 = arith.addf %950, %9 : vector<8x128xf32>
    %cst_309 = arith.constant 1.000000e+00 : f32
    %952 = vector.broadcast %cst_309 : f32 to vector<8x128xf32>
    %953 = arith.cmpf ogt, %910, %952 : vector<8x128xf32>
    %954 = arith.extui %953 : vector<8x128xi1> to vector<8x128xi32>
    %955 = arith.sitofp %954 : vector<8x128xi32> to vector<8x128xf32>
    %cst_310 = arith.constant 0.899999976 : f32
    %956 = vector.broadcast %cst_310 : f32 to vector<8x128xf32>
    %957 = arith.mulf %956, %910 : vector<8x128xf32>
    %958 = arith.addf %957, %951 : vector<8x128xf32>
    %cst_311 = arith.constant 1.000000e+00 : f32
    %959 = vector.broadcast %cst_311 : f32 to vector<8x128xf32>
    %960 = arith.mulf %955, %959 : vector<8x128xf32>
    %961 = arith.subf %958, %960 : vector<8x128xf32>
    %cst_312 = arith.constant 1.000000e+00 : f32
    %962 = vector.broadcast %cst_312 : f32 to vector<8x128xf32>
    %963 = arith.cmpf ogt, %961, %962 : vector<8x128xf32>
    %964 = arith.extui %963 : vector<8x128xi1> to vector<8x128xi32>
    %965 = arith.sitofp %964 : vector<8x128xi32> to vector<8x128xf32>
    %cst_313 = arith.constant dense<0.000000e+00> : vector<8x128xf32>
    %966 = tpu.matmul %965, %3, %cst_313 {dimension_numbers = #tpu.dot_dimension_numbers<[1], [0], [0], [1], [0, 0, 1, 1], [], []>} : vector<8x128xf32>, vector<128x128xf32>, vector<8x128xf32> -> vector<8x128xf32>
    %967 = arith.addf %966, %12 : vector<8x128xf32>
    %cst_314 = arith.constant 1.000000e+00 : f32
    %968 = vector.broadcast %cst_314 : f32 to vector<8x128xf32>
    %969 = arith.cmpf ogt, %926, %968 : vector<8x128xf32>
    %970 = arith.extui %969 : vector<8x128xi1> to vector<8x128xi32>
    %971 = arith.sitofp %970 : vector<8x128xi32> to vector<8x128xf32>
    %cst_315 = arith.constant 0.899999976 : f32
    %972 = vector.broadcast %cst_315 : f32 to vector<8x128xf32>
    %973 = arith.mulf %972, %926 : vector<8x128xf32>
    %974 = arith.addf %973, %967 : vector<8x128xf32>
    %cst_316 = arith.constant 1.000000e+00 : f32
    %975 = vector.broadcast %cst_316 : f32 to vector<8x128xf32>
    %976 = arith.mulf %971, %975 : vector<8x128xf32>
    %977 = arith.subf %974, %976 : vector<8x128xf32>
    %cst_317 = arith.constant 1.000000e+00 : f32
    %978 = vector.broadcast %cst_317 : f32 to vector<8x128xf32>
    %979 = arith.cmpf ogt, %977, %978 : vector<8x128xf32>
    %980 = arith.extui %979 : vector<8x128xi1> to vector<8x128xi32>
    %981 = arith.sitofp %980 : vector<8x128xi32> to vector<8x128xf32>
    %982 = tpu.concatenate %981, %977 in 1 : vector<8x128xf32>, vector<8x128xf32> -> vector<8x256xf32>
    %983 = arith.index_cast %c18_i32 : i32 to index
    %c0_318 = arith.constant 0 : index
    %c0_319 = arith.constant 0 : index
    %984 = vector.load %arg8[%983, %c0_318, %c0_319] : memref<25x8x256xf32, #tpu.memory_space<vmem>>, vector<1x8x256xf32>
    %985 = vector.shape_cast %984 : vector<1x8x256xf32> to vector<8x256xf32>
    %986 = vector.shape_cast %982 : vector<8x256xf32> to vector<1x8x256xf32>
    tpu.vector_store %arg8[%983, %c0_318, %c0_319], %986 {strides = array<i32>} : memref<25x8x256xf32, #tpu.memory_space<vmem>>, vector<1x8x256xf32>,
    %c19_i32 = arith.constant 19 : i32
    %cst_320 = arith.constant 1.000000e+00 : f32
    %987 = vector.broadcast %cst_320 : f32 to vector<8x128xf32>
    %988 = arith.cmpf ogt, %945, %987 : vector<8x128xf32>
    %989 = arith.extui %988 : vector<8x128xi1> to vector<8x128xi32>
    %990 = arith.sitofp %989 : vector<8x128xi32> to vector<8x128xf32>
    %cst_321 = arith.constant 0.899999976 : f32
    %991 = vector.broadcast %cst_321 : f32 to vector<8x128xf32>
    %992 = arith.mulf %991, %945 : vector<8x128xf32>
    %993 = arith.addf %992, %14 : vector<8x128xf32>
    %cst_322 = arith.constant 1.000000e+00 : f32
    %994 = vector.broadcast %cst_322 : f32 to vector<8x128xf32>
    %995 = arith.mulf %990, %994 : vector<8x128xf32>
    %996 = arith.subf %993, %995 : vector<8x128xf32>
    %cst_323 = arith.constant 1.000000e+00 : f32
    %997 = vector.broadcast %cst_323 : f32 to vector<8x128xf32>
    %998 = arith.cmpf ogt, %996, %997 : vector<8x128xf32>
    %999 = arith.extui %998 : vector<8x128xi1> to vector<8x128xi32>
    %1000 = arith.sitofp %999 : vector<8x128xi32> to vector<8x128xf32>
    %cst_324 = arith.constant dense<0.000000e+00> : vector<8x128xf32>
    %1001 = tpu.matmul %1000, %2, %cst_324 {dimension_numbers = #tpu.dot_dimension_numbers<[1], [0], [0], [1], [0, 0, 1, 1], [], []>} : vector<8x128xf32>, vector<128x128xf32>, vector<8x128xf32> -> vector<8x128xf32>
    %1002 = arith.addf %1001, %9 : vector<8x128xf32>
    %cst_325 = arith.constant 1.000000e+00 : f32
    %1003 = vector.broadcast %cst_325 : f32 to vector<8x128xf32>
    %1004 = arith.cmpf ogt, %961, %1003 : vector<8x128xf32>
    %1005 = arith.extui %1004 : vector<8x128xi1> to vector<8x128xi32>
    %1006 = arith.sitofp %1005 : vector<8x128xi32> to vector<8x128xf32>
    %cst_326 = arith.constant 0.899999976 : f32
    %1007 = vector.broadcast %cst_326 : f32 to vector<8x128xf32>
    %1008 = arith.mulf %1007, %961 : vector<8x128xf32>
    %1009 = arith.addf %1008, %1002 : vector<8x128xf32>
    %cst_327 = arith.constant 1.000000e+00 : f32
    %1010 = vector.broadcast %cst_327 : f32 to vector<8x128xf32>
    %1011 = arith.mulf %1006, %1010 : vector<8x128xf32>
    %1012 = arith.subf %1009, %1011 : vector<8x128xf32>
    %cst_328 = arith.constant 1.000000e+00 : f32
    %1013 = vector.broadcast %cst_328 : f32 to vector<8x128xf32>
    %1014 = arith.cmpf ogt, %1012, %1013 : vector<8x128xf32>
    %1015 = arith.extui %1014 : vector<8x128xi1> to vector<8x128xi32>
    %1016 = arith.sitofp %1015 : vector<8x128xi32> to vector<8x128xf32>
    %cst_329 = arith.constant dense<0.000000e+00> : vector<8x128xf32>
    %1017 = tpu.matmul %1016, %3, %cst_329 {dimension_numbers = #tpu.dot_dimension_numbers<[1], [0], [0], [1], [0, 0, 1, 1], [], []>} : vector<8x128xf32>, vector<128x128xf32>, vector<8x128xf32> -> vector<8x128xf32>
    %1018 = arith.addf %1017, %12 : vector<8x128xf32>
    %cst_330 = arith.constant 1.000000e+00 : f32
    %1019 = vector.broadcast %cst_330 : f32 to vector<8x128xf32>
    %1020 = arith.cmpf ogt, %977, %1019 : vector<8x128xf32>
    %1021 = arith.extui %1020 : vector<8x128xi1> to vector<8x128xi32>
    %1022 = arith.sitofp %1021 : vector<8x128xi32> to vector<8x128xf32>
    %cst_331 = arith.constant 0.899999976 : f32
    %1023 = vector.broadcast %cst_331 : f32 to vector<8x128xf32>
    %1024 = arith.mulf %1023, %977 : vector<8x128xf32>
    %1025 = arith.addf %1024, %1018 : vector<8x128xf32>
    %cst_332 = arith.constant 1.000000e+00 : f32
    %1026 = vector.broadcast %cst_332 : f32 to vector<8x128xf32>
    %1027 = arith.mulf %1022, %1026 : vector<8x128xf32>
    %1028 = arith.subf %1025, %1027 : vector<8x128xf32>
    %cst_333 = arith.constant 1.000000e+00 : f32
    %1029 = vector.broadcast %cst_333 : f32 to vector<8x128xf32>
    %1030 = arith.cmpf ogt, %1028, %1029 : vector<8x128xf32>
    %1031 = arith.extui %1030 : vector<8x128xi1> to vector<8x128xi32>
    %1032 = arith.sitofp %1031 : vector<8x128xi32> to vector<8x128xf32>
    %1033 = tpu.concatenate %1032, %1028 in 1 : vector<8x128xf32>, vector<8x128xf32> -> vector<8x256xf32>
    %1034 = arith.index_cast %c19_i32 : i32 to index
    %c0_334 = arith.constant 0 : index
    %c0_335 = arith.constant 0 : index
    %1035 = vector.load %arg8[%1034, %c0_334, %c0_335] : memref<25x8x256xf32, #tpu.memory_space<vmem>>, vector<1x8x256xf32>
    %1036 = vector.shape_cast %1035 : vector<1x8x256xf32> to vector<8x256xf32>
    %1037 = vector.shape_cast %1033 : vector<8x256xf32> to vector<1x8x256xf32>
    tpu.vector_store %arg8[%1034, %c0_334, %c0_335], %1037 {strides = array<i32>} : memref<25x8x256xf32, #tpu.memory_space<vmem>>, vector<1x8x256xf32>,
    %c20_i32 = arith.constant 20 : i32
    %cst_336 = arith.constant 1.000000e+00 : f32
    %1038 = vector.broadcast %cst_336 : f32 to vector<8x128xf32>
    %1039 = arith.cmpf ogt, %996, %1038 : vector<8x128xf32>
    %1040 = arith.extui %1039 : vector<8x128xi1> to vector<8x128xi32>
    %1041 = arith.sitofp %1040 : vector<8x128xi32> to vector<8x128xf32>
    %cst_337 = arith.constant 0.899999976 : f32
    %1042 = vector.broadcast %cst_337 : f32 to vector<8x128xf32>
    %1043 = arith.mulf %1042, %996 : vector<8x128xf32>
    %1044 = arith.addf %1043, %14 : vector<8x128xf32>
    %cst_338 = arith.constant 1.000000e+00 : f32
    %1045 = vector.broadcast %cst_338 : f32 to vector<8x128xf32>
    %1046 = arith.mulf %1041, %1045 : vector<8x128xf32>
    %1047 = arith.subf %1044, %1046 : vector<8x128xf32>
    %cst_339 = arith.constant 1.000000e+00 : f32
    %1048 = vector.broadcast %cst_339 : f32 to vector<8x128xf32>
    %1049 = arith.cmpf ogt, %1047, %1048 : vector<8x128xf32>
    %1050 = arith.extui %1049 : vector<8x128xi1> to vector<8x128xi32>
    %1051 = arith.sitofp %1050 : vector<8x128xi32> to vector<8x128xf32>
    %cst_340 = arith.constant dense<0.000000e+00> : vector<8x128xf32>
    %1052 = tpu.matmul %1051, %2, %cst_340 {dimension_numbers = #tpu.dot_dimension_numbers<[1], [0], [0], [1], [0, 0, 1, 1], [], []>} : vector<8x128xf32>, vector<128x128xf32>, vector<8x128xf32> -> vector<8x128xf32>
    %1053 = arith.addf %1052, %9 : vector<8x128xf32>
    %cst_341 = arith.constant 1.000000e+00 : f32
    %1054 = vector.broadcast %cst_341 : f32 to vector<8x128xf32>
    %1055 = arith.cmpf ogt, %1012, %1054 : vector<8x128xf32>
    %1056 = arith.extui %1055 : vector<8x128xi1> to vector<8x128xi32>
    %1057 = arith.sitofp %1056 : vector<8x128xi32> to vector<8x128xf32>
    %cst_342 = arith.constant 0.899999976 : f32
    %1058 = vector.broadcast %cst_342 : f32 to vector<8x128xf32>
    %1059 = arith.mulf %1058, %1012 : vector<8x128xf32>
    %1060 = arith.addf %1059, %1053 : vector<8x128xf32>
    %cst_343 = arith.constant 1.000000e+00 : f32
    %1061 = vector.broadcast %cst_343 : f32 to vector<8x128xf32>
    %1062 = arith.mulf %1057, %1061 : vector<8x128xf32>
    %1063 = arith.subf %1060, %1062 : vector<8x128xf32>
    %cst_344 = arith.constant 1.000000e+00 : f32
    %1064 = vector.broadcast %cst_344 : f32 to vector<8x128xf32>
    %1065 = arith.cmpf ogt, %1063, %1064 : vector<8x128xf32>
    %1066 = arith.extui %1065 : vector<8x128xi1> to vector<8x128xi32>
    %1067 = arith.sitofp %1066 : vector<8x128xi32> to vector<8x128xf32>
    %cst_345 = arith.constant dense<0.000000e+00> : vector<8x128xf32>
    %1068 = tpu.matmul %1067, %3, %cst_345 {dimension_numbers = #tpu.dot_dimension_numbers<[1], [0], [0], [1], [0, 0, 1, 1], [], []>} : vector<8x128xf32>, vector<128x128xf32>, vector<8x128xf32> -> vector<8x128xf32>
    %1069 = arith.addf %1068, %12 : vector<8x128xf32>
    %cst_346 = arith.constant 1.000000e+00 : f32
    %1070 = vector.broadcast %cst_346 : f32 to vector<8x128xf32>
    %1071 = arith.cmpf ogt, %1028, %1070 : vector<8x128xf32>
    %1072 = arith.extui %1071 : vector<8x128xi1> to vector<8x128xi32>
    %1073 = arith.sitofp %1072 : vector<8x128xi32> to vector<8x128xf32>
    %cst_347 = arith.constant 0.899999976 : f32
    %1074 = vector.broadcast %cst_347 : f32 to vector<8x128xf32>
    %1075 = arith.mulf %1074, %1028 : vector<8x128xf32>
    %1076 = arith.addf %1075, %1069 : vector<8x128xf32>
    %cst_348 = arith.constant 1.000000e+00 : f32
    %1077 = vector.broadcast %cst_348 : f32 to vector<8x128xf32>
    %1078 = arith.mulf %1073, %1077 : vector<8x128xf32>
    %1079 = arith.subf %1076, %1078 : vector<8x128xf32>
    %cst_349 = arith.constant 1.000000e+00 : f32
    %1080 = vector.broadcast %cst_349 : f32 to vector<8x128xf32>
    %1081 = arith.cmpf ogt, %1079, %1080 : vector<8x128xf32>
    %1082 = arith.extui %1081 : vector<8x128xi1> to vector<8x128xi32>
    %1083 = arith.sitofp %1082 : vector<8x128xi32> to vector<8x128xf32>
    %1084 = tpu.concatenate %1083, %1079 in 1 : vector<8x128xf32>, vector<8x128xf32> -> vector<8x256xf32>
    %1085 = arith.index_cast %c20_i32 : i32 to index
    %c0_350 = arith.constant 0 : index
    %c0_351 = arith.constant 0 : index
    %1086 = vector.load %arg8[%1085, %c0_350, %c0_351] : memref<25x8x256xf32, #tpu.memory_space<vmem>>, vector<1x8x256xf32>
    %1087 = vector.shape_cast %1086 : vector<1x8x256xf32> to vector<8x256xf32>
    %1088 = vector.shape_cast %1084 : vector<8x256xf32> to vector<1x8x256xf32>
    tpu.vector_store %arg8[%1085, %c0_350, %c0_351], %1088 {strides = array<i32>} : memref<25x8x256xf32, #tpu.memory_space<vmem>>, vector<1x8x256xf32>,
    %c21_i32 = arith.constant 21 : i32
    %cst_352 = arith.constant 1.000000e+00 : f32
    %1089 = vector.broadcast %cst_352 : f32 to vector<8x128xf32>
    %1090 = arith.cmpf ogt, %1047, %1089 : vector<8x128xf32>
    %1091 = arith.extui %1090 : vector<8x128xi1> to vector<8x128xi32>
    %1092 = arith.sitofp %1091 : vector<8x128xi32> to vector<8x128xf32>
    %cst_353 = arith.constant 0.899999976 : f32
    %1093 = vector.broadcast %cst_353 : f32 to vector<8x128xf32>
    %1094 = arith.mulf %1093, %1047 : vector<8x128xf32>
    %1095 = arith.addf %1094, %14 : vector<8x128xf32>
    %cst_354 = arith.constant 1.000000e+00 : f32
    %1096 = vector.broadcast %cst_354 : f32 to vector<8x128xf32>
    %1097 = arith.mulf %1092, %1096 : vector<8x128xf32>
    %1098 = arith.subf %1095, %1097 : vector<8x128xf32>
    %cst_355 = arith.constant 1.000000e+00 : f32
    %1099 = vector.broadcast %cst_355 : f32 to vector<8x128xf32>
    %1100 = arith.cmpf ogt, %1098, %1099 : vector<8x128xf32>
    %1101 = arith.extui %1100 : vector<8x128xi1> to vector<8x128xi32>
    %1102 = arith.sitofp %1101 : vector<8x128xi32> to vector<8x128xf32>
    %cst_356 = arith.constant dense<0.000000e+00> : vector<8x128xf32>
    %1103 = tpu.matmul %1102, %2, %cst_356 {dimension_numbers = #tpu.dot_dimension_numbers<[1], [0], [0], [1], [0, 0, 1, 1], [], []>} : vector<8x128xf32>, vector<128x128xf32>, vector<8x128xf32> -> vector<8x128xf32>
    %1104 = arith.addf %1103, %9 : vector<8x128xf32>
    %cst_357 = arith.constant 1.000000e+00 : f32
    %1105 = vector.broadcast %cst_357 : f32 to vector<8x128xf32>
    %1106 = arith.cmpf ogt, %1063, %1105 : vector<8x128xf32>
    %1107 = arith.extui %1106 : vector<8x128xi1> to vector<8x128xi32>
    %1108 = arith.sitofp %1107 : vector<8x128xi32> to vector<8x128xf32>
    %cst_358 = arith.constant 0.899999976 : f32
    %1109 = vector.broadcast %cst_358 : f32 to vector<8x128xf32>
    %1110 = arith.mulf %1109, %1063 : vector<8x128xf32>
    %1111 = arith.addf %1110, %1104 : vector<8x128xf32>
    %cst_359 = arith.constant 1.000000e+00 : f32
    %1112 = vector.broadcast %cst_359 : f32 to vector<8x128xf32>
    %1113 = arith.mulf %1108, %1112 : vector<8x128xf32>
    %1114 = arith.subf %1111, %1113 : vector<8x128xf32>
    %cst_360 = arith.constant 1.000000e+00 : f32
    %1115 = vector.broadcast %cst_360 : f32 to vector<8x128xf32>
    %1116 = arith.cmpf ogt, %1114, %1115 : vector<8x128xf32>
    %1117 = arith.extui %1116 : vector<8x128xi1> to vector<8x128xi32>
    %1118 = arith.sitofp %1117 : vector<8x128xi32> to vector<8x128xf32>
    %cst_361 = arith.constant dense<0.000000e+00> : vector<8x128xf32>
    %1119 = tpu.matmul %1118, %3, %cst_361 {dimension_numbers = #tpu.dot_dimension_numbers<[1], [0], [0], [1], [0, 0, 1, 1], [], []>} : vector<8x128xf32>, vector<128x128xf32>, vector<8x128xf32> -> vector<8x128xf32>
    %1120 = arith.addf %1119, %12 : vector<8x128xf32>
    %cst_362 = arith.constant 1.000000e+00 : f32
    %1121 = vector.broadcast %cst_362 : f32 to vector<8x128xf32>
    %1122 = arith.cmpf ogt, %1079, %1121 : vector<8x128xf32>
    %1123 = arith.extui %1122 : vector<8x128xi1> to vector<8x128xi32>
    %1124 = arith.sitofp %1123 : vector<8x128xi32> to vector<8x128xf32>
    %cst_363 = arith.constant 0.899999976 : f32
    %1125 = vector.broadcast %cst_363 : f32 to vector<8x128xf32>
    %1126 = arith.mulf %1125, %1079 : vector<8x128xf32>
    %1127 = arith.addf %1126, %1120 : vector<8x128xf32>
    %cst_364 = arith.constant 1.000000e+00 : f32
    %1128 = vector.broadcast %cst_364 : f32 to vector<8x128xf32>
    %1129 = arith.mulf %1124, %1128 : vector<8x128xf32>
    %1130 = arith.subf %1127, %1129 : vector<8x128xf32>
    %cst_365 = arith.constant 1.000000e+00 : f32
    %1131 = vector.broadcast %cst_365 : f32 to vector<8x128xf32>
    %1132 = arith.cmpf ogt, %1130, %1131 : vector<8x128xf32>
    %1133 = arith.extui %1132 : vector<8x128xi1> to vector<8x128xi32>
    %1134 = arith.sitofp %1133 : vector<8x128xi32> to vector<8x128xf32>
    %1135 = tpu.concatenate %1134, %1130 in 1 : vector<8x128xf32>, vector<8x128xf32> -> vector<8x256xf32>
    %1136 = arith.index_cast %c21_i32 : i32 to index
    %c0_366 = arith.constant 0 : index
    %c0_367 = arith.constant 0 : index
    %1137 = vector.load %arg8[%1136, %c0_366, %c0_367] : memref<25x8x256xf32, #tpu.memory_space<vmem>>, vector<1x8x256xf32>
    %1138 = vector.shape_cast %1137 : vector<1x8x256xf32> to vector<8x256xf32>
    %1139 = vector.shape_cast %1135 : vector<8x256xf32> to vector<1x8x256xf32>
    tpu.vector_store %arg8[%1136, %c0_366, %c0_367], %1139 {strides = array<i32>} : memref<25x8x256xf32, #tpu.memory_space<vmem>>, vector<1x8x256xf32>,
    %c22_i32 = arith.constant 22 : i32
    %cst_368 = arith.constant 1.000000e+00 : f32
    %1140 = vector.broadcast %cst_368 : f32 to vector<8x128xf32>
    %1141 = arith.cmpf ogt, %1098, %1140 : vector<8x128xf32>
    %1142 = arith.extui %1141 : vector<8x128xi1> to vector<8x128xi32>
    %1143 = arith.sitofp %1142 : vector<8x128xi32> to vector<8x128xf32>
    %cst_369 = arith.constant 0.899999976 : f32
    %1144 = vector.broadcast %cst_369 : f32 to vector<8x128xf32>
    %1145 = arith.mulf %1144, %1098 : vector<8x128xf32>
    %1146 = arith.addf %1145, %14 : vector<8x128xf32>
    %cst_370 = arith.constant 1.000000e+00 : f32
    %1147 = vector.broadcast %cst_370 : f32 to vector<8x128xf32>
    %1148 = arith.mulf %1143, %1147 : vector<8x128xf32>
    %1149 = arith.subf %1146, %1148 : vector<8x128xf32>
    %cst_371 = arith.constant 1.000000e+00 : f32
    %1150 = vector.broadcast %cst_371 : f32 to vector<8x128xf32>
    %1151 = arith.cmpf ogt, %1149, %1150 : vector<8x128xf32>
    %1152 = arith.extui %1151 : vector<8x128xi1> to vector<8x128xi32>
    %1153 = arith.sitofp %1152 : vector<8x128xi32> to vector<8x128xf32>
    %cst_372 = arith.constant dense<0.000000e+00> : vector<8x128xf32>
    %1154 = tpu.matmul %1153, %2, %cst_372 {dimension_numbers = #tpu.dot_dimension_numbers<[1], [0], [0], [1], [0, 0, 1, 1], [], []>} : vector<8x128xf32>, vector<128x128xf32>, vector<8x128xf32> -> vector<8x128xf32>
    %1155 = arith.addf %1154, %9 : vector<8x128xf32>
    %cst_373 = arith.constant 1.000000e+00 : f32
    %1156 = vector.broadcast %cst_373 : f32 to vector<8x128xf32>
    %1157 = arith.cmpf ogt, %1114, %1156 : vector<8x128xf32>
    %1158 = arith.extui %1157 : vector<8x128xi1> to vector<8x128xi32>
    %1159 = arith.sitofp %1158 : vector<8x128xi32> to vector<8x128xf32>
    %cst_374 = arith.constant 0.899999976 : f32
    %1160 = vector.broadcast %cst_374 : f32 to vector<8x128xf32>
    %1161 = arith.mulf %1160, %1114 : vector<8x128xf32>
    %1162 = arith.addf %1161, %1155 : vector<8x128xf32>
    %cst_375 = arith.constant 1.000000e+00 : f32
    %1163 = vector.broadcast %cst_375 : f32 to vector<8x128xf32>
    %1164 = arith.mulf %1159, %1163 : vector<8x128xf32>
    %1165 = arith.subf %1162, %1164 : vector<8x128xf32>
    %cst_376 = arith.constant 1.000000e+00 : f32
    %1166 = vector.broadcast %cst_376 : f32 to vector<8x128xf32>
    %1167 = arith.cmpf ogt, %1165, %1166 : vector<8x128xf32>
    %1168 = arith.extui %1167 : vector<8x128xi1> to vector<8x128xi32>
    %1169 = arith.sitofp %1168 : vector<8x128xi32> to vector<8x128xf32>
    %cst_377 = arith.constant dense<0.000000e+00> : vector<8x128xf32>
    %1170 = tpu.matmul %1169, %3, %cst_377 {dimension_numbers = #tpu.dot_dimension_numbers<[1], [0], [0], [1], [0, 0, 1, 1], [], []>} : vector<8x128xf32>, vector<128x128xf32>, vector<8x128xf32> -> vector<8x128xf32>
    %1171 = arith.addf %1170, %12 : vector<8x128xf32>
    %cst_378 = arith.constant 1.000000e+00 : f32
    %1172 = vector.broadcast %cst_378 : f32 to vector<8x128xf32>
    %1173 = arith.cmpf ogt, %1130, %1172 : vector<8x128xf32>
    %1174 = arith.extui %1173 : vector<8x128xi1> to vector<8x128xi32>
    %1175 = arith.sitofp %1174 : vector<8x128xi32> to vector<8x128xf32>
    %cst_379 = arith.constant 0.899999976 : f32
    %1176 = vector.broadcast %cst_379 : f32 to vector<8x128xf32>
    %1177 = arith.mulf %1176, %1130 : vector<8x128xf32>
    %1178 = arith.addf %1177, %1171 : vector<8x128xf32>
    %cst_380 = arith.constant 1.000000e+00 : f32
    %1179 = vector.broadcast %cst_380 : f32 to vector<8x128xf32>
    %1180 = arith.mulf %1175, %1179 : vector<8x128xf32>
    %1181 = arith.subf %1178, %1180 : vector<8x128xf32>
    %cst_381 = arith.constant 1.000000e+00 : f32
    %1182 = vector.broadcast %cst_381 : f32 to vector<8x128xf32>
    %1183 = arith.cmpf ogt, %1181, %1182 : vector<8x128xf32>
    %1184 = arith.extui %1183 : vector<8x128xi1> to vector<8x128xi32>
    %1185 = arith.sitofp %1184 : vector<8x128xi32> to vector<8x128xf32>
    %1186 = tpu.concatenate %1185, %1181 in 1 : vector<8x128xf32>, vector<8x128xf32> -> vector<8x256xf32>
    %1187 = arith.index_cast %c22_i32 : i32 to index
    %c0_382 = arith.constant 0 : index
    %c0_383 = arith.constant 0 : index
    %1188 = vector.load %arg8[%1187, %c0_382, %c0_383] : memref<25x8x256xf32, #tpu.memory_space<vmem>>, vector<1x8x256xf32>
    %1189 = vector.shape_cast %1188 : vector<1x8x256xf32> to vector<8x256xf32>
    %1190 = vector.shape_cast %1186 : vector<8x256xf32> to vector<1x8x256xf32>
    tpu.vector_store %arg8[%1187, %c0_382, %c0_383], %1190 {strides = array<i32>} : memref<25x8x256xf32, #tpu.memory_space<vmem>>, vector<1x8x256xf32>,
    %c23_i32 = arith.constant 23 : i32
    %cst_384 = arith.constant 1.000000e+00 : f32
    %1191 = vector.broadcast %cst_384 : f32 to vector<8x128xf32>
    %1192 = arith.cmpf ogt, %1149, %1191 : vector<8x128xf32>
    %1193 = arith.extui %1192 : vector<8x128xi1> to vector<8x128xi32>
    %1194 = arith.sitofp %1193 : vector<8x128xi32> to vector<8x128xf32>
    %cst_385 = arith.constant 0.899999976 : f32
    %1195 = vector.broadcast %cst_385 : f32 to vector<8x128xf32>
    %1196 = arith.mulf %1195, %1149 : vector<8x128xf32>
    %1197 = arith.addf %1196, %14 : vector<8x128xf32>
    %cst_386 = arith.constant 1.000000e+00 : f32
    %1198 = vector.broadcast %cst_386 : f32 to vector<8x128xf32>
    %1199 = arith.mulf %1194, %1198 : vector<8x128xf32>
    %1200 = arith.subf %1197, %1199 : vector<8x128xf32>
    %cst_387 = arith.constant 1.000000e+00 : f32
    %1201 = vector.broadcast %cst_387 : f32 to vector<8x128xf32>
    %1202 = arith.cmpf ogt, %1200, %1201 : vector<8x128xf32>
    %1203 = arith.extui %1202 : vector<8x128xi1> to vector<8x128xi32>
    %1204 = arith.sitofp %1203 : vector<8x128xi32> to vector<8x128xf32>
    %cst_388 = arith.constant dense<0.000000e+00> : vector<8x128xf32>
    %1205 = tpu.matmul %1204, %2, %cst_388 {dimension_numbers = #tpu.dot_dimension_numbers<[1], [0], [0], [1], [0, 0, 1, 1], [], []>} : vector<8x128xf32>, vector<128x128xf32>, vector<8x128xf32> -> vector<8x128xf32>
    %1206 = arith.addf %1205, %9 : vector<8x128xf32>
    %cst_389 = arith.constant 1.000000e+00 : f32
    %1207 = vector.broadcast %cst_389 : f32 to vector<8x128xf32>
    %1208 = arith.cmpf ogt, %1165, %1207 : vector<8x128xf32>
    %1209 = arith.extui %1208 : vector<8x128xi1> to vector<8x128xi32>
    %1210 = arith.sitofp %1209 : vector<8x128xi32> to vector<8x128xf32>
    %cst_390 = arith.constant 0.899999976 : f32
    %1211 = vector.broadcast %cst_390 : f32 to vector<8x128xf32>
    %1212 = arith.mulf %1211, %1165 : vector<8x128xf32>
    %1213 = arith.addf %1212, %1206 : vector<8x128xf32>
    %cst_391 = arith.constant 1.000000e+00 : f32
    %1214 = vector.broadcast %cst_391 : f32 to vector<8x128xf32>
    %1215 = arith.mulf %1210, %1214 : vector<8x128xf32>
    %1216 = arith.subf %1213, %1215 : vector<8x128xf32>
    %cst_392 = arith.constant 1.000000e+00 : f32
    %1217 = vector.broadcast %cst_392 : f32 to vector<8x128xf32>
    %1218 = arith.cmpf ogt, %1216, %1217 : vector<8x128xf32>
    %1219 = arith.extui %1218 : vector<8x128xi1> to vector<8x128xi32>
    %1220 = arith.sitofp %1219 : vector<8x128xi32> to vector<8x128xf32>
    %cst_393 = arith.constant dense<0.000000e+00> : vector<8x128xf32>
    %1221 = tpu.matmul %1220, %3, %cst_393 {dimension_numbers = #tpu.dot_dimension_numbers<[1], [0], [0], [1], [0, 0, 1, 1], [], []>} : vector<8x128xf32>, vector<128x128xf32>, vector<8x128xf32> -> vector<8x128xf32>
    %1222 = arith.addf %1221, %12 : vector<8x128xf32>
    %cst_394 = arith.constant 1.000000e+00 : f32
    %1223 = vector.broadcast %cst_394 : f32 to vector<8x128xf32>
    %1224 = arith.cmpf ogt, %1181, %1223 : vector<8x128xf32>
    %1225 = arith.extui %1224 : vector<8x128xi1> to vector<8x128xi32>
    %1226 = arith.sitofp %1225 : vector<8x128xi32> to vector<8x128xf32>
    %cst_395 = arith.constant 0.899999976 : f32
    %1227 = vector.broadcast %cst_395 : f32 to vector<8x128xf32>
    %1228 = arith.mulf %1227, %1181 : vector<8x128xf32>
    %1229 = arith.addf %1228, %1222 : vector<8x128xf32>
    %cst_396 = arith.constant 1.000000e+00 : f32
    %1230 = vector.broadcast %cst_396 : f32 to vector<8x128xf32>
    %1231 = arith.mulf %1226, %1230 : vector<8x128xf32>
    %1232 = arith.subf %1229, %1231 : vector<8x128xf32>
    %cst_397 = arith.constant 1.000000e+00 : f32
    %1233 = vector.broadcast %cst_397 : f32 to vector<8x128xf32>
    %1234 = arith.cmpf ogt, %1232, %1233 : vector<8x128xf32>
    %1235 = arith.extui %1234 : vector<8x128xi1> to vector<8x128xi32>
    %1236 = arith.sitofp %1235 : vector<8x128xi32> to vector<8x128xf32>
    %1237 = tpu.concatenate %1236, %1232 in 1 : vector<8x128xf32>, vector<8x128xf32> -> vector<8x256xf32>
    %1238 = arith.index_cast %c23_i32 : i32 to index
    %c0_398 = arith.constant 0 : index
    %c0_399 = arith.constant 0 : index
    %1239 = vector.load %arg8[%1238, %c0_398, %c0_399] : memref<25x8x256xf32, #tpu.memory_space<vmem>>, vector<1x8x256xf32>
    %1240 = vector.shape_cast %1239 : vector<1x8x256xf32> to vector<8x256xf32>
    %1241 = vector.shape_cast %1237 : vector<8x256xf32> to vector<1x8x256xf32>
    tpu.vector_store %arg8[%1238, %c0_398, %c0_399], %1241 {strides = array<i32>} : memref<25x8x256xf32, #tpu.memory_space<vmem>>, vector<1x8x256xf32>,
    %c24_i32 = arith.constant 24 : i32
    %cst_400 = arith.constant 1.000000e+00 : f32
    %1242 = vector.broadcast %cst_400 : f32 to vector<8x128xf32>
    %1243 = arith.cmpf ogt, %1200, %1242 : vector<8x128xf32>
    %1244 = arith.extui %1243 : vector<8x128xi1> to vector<8x128xi32>
    %1245 = arith.sitofp %1244 : vector<8x128xi32> to vector<8x128xf32>
    %cst_401 = arith.constant 0.899999976 : f32
    %1246 = vector.broadcast %cst_401 : f32 to vector<8x128xf32>
    %1247 = arith.mulf %1246, %1200 : vector<8x128xf32>
    %1248 = arith.addf %1247, %14 : vector<8x128xf32>
    %cst_402 = arith.constant 1.000000e+00 : f32
    %1249 = vector.broadcast %cst_402 : f32 to vector<8x128xf32>
    %1250 = arith.mulf %1245, %1249 : vector<8x128xf32>
    %1251 = arith.subf %1248, %1250 : vector<8x128xf32>
    %cst_403 = arith.constant 1.000000e+00 : f32
    %1252 = vector.broadcast %cst_403 : f32 to vector<8x128xf32>
    %1253 = arith.cmpf ogt, %1251, %1252 : vector<8x128xf32>
    %1254 = arith.extui %1253 : vector<8x128xi1> to vector<8x128xi32>
    %1255 = arith.sitofp %1254 : vector<8x128xi32> to vector<8x128xf32>
    %cst_404 = arith.constant dense<0.000000e+00> : vector<8x128xf32>
    %1256 = tpu.matmul %1255, %2, %cst_404 {dimension_numbers = #tpu.dot_dimension_numbers<[1], [0], [0], [1], [0, 0, 1, 1], [], []>} : vector<8x128xf32>, vector<128x128xf32>, vector<8x128xf32> -> vector<8x128xf32>
    %1257 = arith.addf %1256, %9 : vector<8x128xf32>
    %cst_405 = arith.constant 1.000000e+00 : f32
    %1258 = vector.broadcast %cst_405 : f32 to vector<8x128xf32>
    %1259 = arith.cmpf ogt, %1216, %1258 : vector<8x128xf32>
    %1260 = arith.extui %1259 : vector<8x128xi1> to vector<8x128xi32>
    %1261 = arith.sitofp %1260 : vector<8x128xi32> to vector<8x128xf32>
    %cst_406 = arith.constant 0.899999976 : f32
    %1262 = vector.broadcast %cst_406 : f32 to vector<8x128xf32>
    %1263 = arith.mulf %1262, %1216 : vector<8x128xf32>
    %1264 = arith.addf %1263, %1257 : vector<8x128xf32>
    %cst_407 = arith.constant 1.000000e+00 : f32
    %1265 = vector.broadcast %cst_407 : f32 to vector<8x128xf32>
    %1266 = arith.mulf %1261, %1265 : vector<8x128xf32>
    %1267 = arith.subf %1264, %1266 : vector<8x128xf32>
    %cst_408 = arith.constant 1.000000e+00 : f32
    %1268 = vector.broadcast %cst_408 : f32 to vector<8x128xf32>
    %1269 = arith.cmpf ogt, %1267, %1268 : vector<8x128xf32>
    %1270 = arith.extui %1269 : vector<8x128xi1> to vector<8x128xi32>
    %1271 = arith.sitofp %1270 : vector<8x128xi32> to vector<8x128xf32>
    %cst_409 = arith.constant dense<0.000000e+00> : vector<8x128xf32>
    %1272 = tpu.matmul %1271, %3, %cst_409 {dimension_numbers = #tpu.dot_dimension_numbers<[1], [0], [0], [1], [0, 0, 1, 1], [], []>} : vector<8x128xf32>, vector<128x128xf32>, vector<8x128xf32> -> vector<8x128xf32>
    %1273 = arith.addf %1272, %12 : vector<8x128xf32>
    %cst_410 = arith.constant 1.000000e+00 : f32
    %1274 = vector.broadcast %cst_410 : f32 to vector<8x128xf32>
    %1275 = arith.cmpf ogt, %1232, %1274 : vector<8x128xf32>
    %1276 = arith.extui %1275 : vector<8x128xi1> to vector<8x128xi32>
    %1277 = arith.sitofp %1276 : vector<8x128xi32> to vector<8x128xf32>
    %cst_411 = arith.constant 0.899999976 : f32
    %1278 = vector.broadcast %cst_411 : f32 to vector<8x128xf32>
    %1279 = arith.mulf %1278, %1232 : vector<8x128xf32>
    %1280 = arith.addf %1279, %1273 : vector<8x128xf32>
    %cst_412 = arith.constant 1.000000e+00 : f32
    %1281 = vector.broadcast %cst_412 : f32 to vector<8x128xf32>
    %1282 = arith.mulf %1277, %1281 : vector<8x128xf32>
    %1283 = arith.subf %1280, %1282 : vector<8x128xf32>
    %cst_413 = arith.constant 1.000000e+00 : f32
    %1284 = vector.broadcast %cst_413 : f32 to vector<8x128xf32>
    %1285 = arith.cmpf ogt, %1283, %1284 : vector<8x128xf32>
    %1286 = arith.extui %1285 : vector<8x128xi1> to vector<8x128xi32>
    %1287 = arith.sitofp %1286 : vector<8x128xi32> to vector<8x128xf32>
    %1288 = tpu.concatenate %1287, %1283 in 1 : vector<8x128xf32>, vector<8x128xf32> -> vector<8x256xf32>
    %1289 = arith.index_cast %c24_i32 : i32 to index
    %c0_414 = arith.constant 0 : index
    %c0_415 = arith.constant 0 : index
    %1290 = vector.load %arg8[%1289, %c0_414, %c0_415] : memref<25x8x256xf32, #tpu.memory_space<vmem>>, vector<1x8x256xf32>
    %1291 = vector.shape_cast %1290 : vector<1x8x256xf32> to vector<8x256xf32>
    %1292 = vector.shape_cast %1288 : vector<8x256xf32> to vector<1x8x256xf32>
    tpu.vector_store %arg8[%1289, %c0_414, %c0_415], %1292 {strides = array<i32>} : memref<25x8x256xf32, #tpu.memory_space<vmem>>, vector<1x8x256xf32>,
    %c25_i32 = arith.constant 25 : i32
    return
  }
  func.func @transform_0(%arg0: i32) -> (i32, i32) {
    %c0_i32 = arith.constant 0 : i32
    %c0_i32_0 = arith.constant 0 : i32
    return %arg0, %c0_i32 : i32, i32
  }
  func.func @transform_1(%arg0: i32) -> (i32, i32) {
    %c0_i32 = arith.constant 0 : i32
    %c0_i32_0 = arith.constant 0 : i32
    %c0_i32_1 = arith.constant 0 : i32
    return %c0_i32, %c0_i32_0 : i32, i32
  }
  func.func @transform_2(%arg0: i32) -> (i32, i32) {
    %c0_i32 = arith.constant 0 : i32
    %c0_i32_0 = arith.constant 0 : i32
    %c0_i32_1 = arith.constant 0 : i32
    return %c0_i32, %c0_i32_0 : i32, i32
  }
  func.func @transform_3(%arg0: i32) -> (i32, i32) {
    %c0_i32 = arith.constant 0 : i32
    %c0_i32_0 = arith.constant 0 : i32
    %c0_i32_1 = arith.constant 0 : i32
    return %c0_i32, %c0_i32_0 : i32, i32
  }
  func.func @transform_4(%arg0: i32) -> (i32, i32) {
    %c0_i32 = arith.constant 0 : i32
    %c0_i32_0 = arith.constant 0 : i32
    %c0_i32_1 = arith.constant 0 : i32
    return %c0_i32, %c0_i32_0 : i32, i32
  }
  func.func @transform_5(%arg0: i32) -> (i32, i32) {
    %c0_i32 = arith.constant 0 : i32
    %c0_i32_0 = arith.constant 0 : i32
    %c0_i32_1 = arith.constant 0 : i32
    return %c0_i32, %c0_i32_0 : i32, i32
  }
  func.func @transform_6(%arg0: i32) -> (i32, i32) {
    %c0_i32 = arith.constant 0 : i32
    %c0_i32_0 = arith.constant 0 : i32
    %c0_i32_1 = arith.constant 0 : i32
    return %c0_i32, %c0_i32_0 : i32, i32
  }
  func.func @transform_7(%arg0: i32) -> (i32, i32, i32) {
    %c0_i32 = arith.constant 0 : i32
    %c0_i32_0 = arith.constant 0 : i32
    %c0_i32_1 = arith.constant 0 : i32
    return %c0_i32, %arg0, %c0_i32_0 : i32, i32, i32
  }
}

</mosaic_0001>

<llo_original>
// kernel: tpu_custom_call.1
$region0: #{tpu_custom_call.1}
  #allocation0 [shape = 'u32[]', space=smem, size = 0x4, offset = 0x4, fixed_abs, tag = 'smem constant byte address 0x4 - core index']
  #allocation1 [shape = 'u32[72,128]{1,0:T(1,128)}', space=vmem, size = 0x9000, scoped, tag = 'internal scratch']
  %s0 = inlined_call_operand.hbm [shape: f32[8,128], index: 0, kind: input, shape index: {}]
  %s1 = inlined_call_operand.hbm [shape: f32[128,128], index: 1, kind: input, shape index: {}]
  %s2 = inlined_call_operand.vmem [shape: f32[1,128], index: 2, kind: input, shape index: {}]
  %s3 = inlined_call_operand.hbm [shape: f32[128,128], index: 3, kind: input, shape index: {}]
  %s4 = inlined_call_operand.vmem [shape: f32[1,128], index: 4, kind: input, shape index: {}]
  %s5 = inlined_call_operand.hbm [shape: f32[128,128], index: 5, kind: input, shape index: {}]
  %s6 = inlined_call_operand.vmem [shape: f32[1,128], index: 6, kind: input, shape index: {}]
  %s7 = inlined_call_operand.hbm [shape: f32[25,8,256], index: 7, kind: output, shape index: {}]
  %s8 = sld [smem:[#allocation0]]
  $region54: #{tpu_custom_call.1} parent=0
    _
  %s10 = ssub.s32 1, %s8
  %s11 = scalar_select 0, %s10, %s8
  $region1: #{tpu_custom_call.1} parent=0
    #allocation2 [shape = 'u8[4096]{0}', space=vmem, size = 0x1000, scoped, tag = 'input window, operand 0, single buffered']
    #allocation3 [shape = 's32[1]{0}', space=sflag, size = 0x4, scoped, tag = 'scoped memory for tpu_custom_call.1']
    #allocation4 [shape = 's32[1]{0}', space=sflag, size = 0x4, scoped, tag = 'scoped memory for tpu_custom_call.1']
    #allocation5 [shape = 'u8[65536]{0}', space=vmem, size = 0x10000, scoped, tag = 'input window, operand 1, single buffered']
    #allocation6 [shape = 's32[1]{0}', space=sflag, size = 0x4, scoped, tag = 'scoped memory for tpu_custom_call.1']
    #allocation7 [shape = 'u8[65536]{0}', space=vmem, size = 0x10000, scoped, tag = 'input window, operand 3, single buffered']
    #allocation8 [shape = 'u8[65536]{0}', space=vmem, size = 0x10000, scoped, tag = 'input window, operand 5, single buffered']
    #allocation9 [shape = 's32[1]{0}', space=sflag, size = 0x4, scoped, tag = 'scoped memory for tpu_custom_call.1']
    #allocation10 [shape = 'u8[204800]{0}', space=vmem, size = 0x32000, scoped, tag = 'output window, operand 0, single buffered']
    %12 = vsyncpa [#allocation3], 0
    %13 = vsyncpa [#allocation6], 0
    %14 = vsyncpa [#allocation9], 0
    %15 = vsyncpa [#allocation4], 0
    // Predicated region
    $region2: #{tpu_custom_call.1} parent=1 // pred_check
      _
    $region3: #{tpu_custom_call.1} parent=1 // pred_check_branch
      %17 = sbr.rel (0) target = $region5
    $region4: #{tpu_custom_call.1} parent=1 // pred_region
      %19 = vsyncadd [#allocation3], 0
      %s21 = sshll.u32 %s0, 4
      %s22 = int_to_ptr.hbm [resolvable:$true] %s21
      %s23 = sshll.u32 [#allocation2], 4
      %s24 = int_to_ptr.vmem [resolvable:$true] %s23
      %26 = dma.hbm_to_vmem [thread:$0]  %s22, 128, %s24, [#allocation3]
    $region5: #{tpu_custom_call.1} parent=1 // pred_fallthru
      _
    // Predicated region
    $region6: #{tpu_custom_call.1} parent=1 // pred_check
      _
    $region7: #{tpu_custom_call.1} parent=1 // pred_check_branch
      %28 = sbr.rel (0) target = $region9
    $region8: #{tpu_custom_call.1} parent=1 // pred_region
      %30 = vsyncadd [#allocation6], 0
      %s31 = sshll.u32 %s1, 4
      %s32 = int_to_ptr.hbm [resolvable:$true] %s31
      %s33 = sshll.u32 [#allocation5], 4
      %s34 = int_to_ptr.vmem [resolvable:$true] %s33
      %39 = dma.hbm_to_vmem [thread:$0]  %s32, 2048, %s34, [#allocation6], 128, 128, 8
    $region9: #{tpu_custom_call.1} parent=1 // pred_fallthru
      _
    // Predicated region
    $region10: #{tpu_custom_call.1} parent=1 // pred_check
      _
    $region11: #{tpu_custom_call.1} parent=1 // pred_check_branch
      %41 = sbr.rel (0) target = $region13
    $region12: #{tpu_custom_call.1} parent=1 // pred_region
      _
    $region13: #{tpu_custom_call.1} parent=1 // pred_fallthru
      _
    // Predicated region
    $region14: #{tpu_custom_call.1} parent=1 // pred_check
      _
    $region15: #{tpu_custom_call.1} parent=1 // pred_check_branch
      %43 = sbr.rel (0) target = $region17
    $region16: #{tpu_custom_call.1} parent=1 // pred_region
      %45 = vsyncadd [#allocation6], 0
      %s46 = sshll.u32 %s3, 4
      %s47 = int_to_ptr.hbm [resolvable:$true] %s46
      %s48 = sshll.u32 [#allocation7], 4
      %s49 = int_to_ptr.vmem [resolvable:$true] %s48
      %54 = dma.hbm_to_vmem [thread:$0]  %s47, 2048, %s49, [#allocation6], 128, 128, 8
    $region17: #{tpu_custom_call.1} parent=1 // pred_fallthru
      _
    // Predicated region
    $region18: #{tpu_custom_call.1} parent=1 // pred_check
      _
    $region19: #{tpu_custom_call.1} parent=1 // pred_check_branch
      %56 = sbr.rel (0) target = $region21
    $region20: #{tpu_custom_call.1} parent=1 // pred_region
      _
    $region21: #{tpu_custom_call.1} parent=1 // pred_fallthru
      _
    // Predicated region
    $region22: #{tpu_custom_call.1} parent=1 // pred_check
      _
    $region23: #{tpu_custom_call.1} parent=1 // pred_check_branch
      %58 = sbr.rel (0) target = $region25
    $region24: #{tpu_custom_call.1} parent=1 // pred_region
      %60 = vsyncadd [#allocation9], 0
      %s61 = sshll.u32 %s5, 4
      %s62 = int_to_ptr.hbm [resolvable:$true] %s61
      %s63 = sshll.u32 [#allocation8], 4
      %s64 = int_to_ptr.vmem [resolvable:$true] %s63
      %69 = dma.hbm_to_vmem [thread:$0]  %s62, 2048, %s64, [#allocation9], 128, 128, 8
    $region25: #{tpu_custom_call.1} parent=1 // pred_fallthru
      _
    // Predicated region
    $region26: #{tpu_custom_call.1} parent=1 // pred_check
      _
    $region27: #{tpu_custom_call.1} parent=1 // pred_check_branch
      %71 = sbr.rel (0) target = $region29
    $region28: #{tpu_custom_call.1} parent=1 // pred_region
      _
    $region29: #{tpu_custom_call.1} parent=1 // pred_fallthru
      _
    // Predicated region
    $region30: #{tpu_custom_call.1} parent=1 // pred_check
      _
    $region31: #{tpu_custom_call.1} parent=1 // pred_check_branch
      %73 = sbr.rel (0) target = $region33
    $region32: #{tpu_custom_call.1} parent=1 // pred_region
      %75 = dma.done [#allocation3], 128
    $region33: #{tpu_custom_call.1} parent=1 // pred_fallthru
      _
    // Predicated region
    $region34: #{tpu_custom_call.1} parent=1 // pred_check
      _
    $region35: #{tpu_custom_call.1} parent=1 // pred_check_branch
      %77 = sbr.rel (0) target = $region37
    $region36: #{tpu_custom_call.1} parent=1 // pred_region
      %79 = dma.done [#allocation6], 2048
    $region37: #{tpu_custom_call.1} parent=1 // pred_fallthru
      _
    // Predicated region
    $region38: #{tpu_custom_call.1} parent=1 // pred_check
      _
    $region39: #{tpu_custom_call.1} parent=1 // pred_check_branch
      %81 = sbr.rel (0) target = $region41
    $region40: #{tpu_custom_call.1} parent=1 // pred_region
      %83 = dma.done [#allocation6], 2048
    $region41: #{tpu_custom_call.1} parent=1 // pred_fallthru
      _
    // Predicated region
    $region42: #{tpu_custom_call.1} parent=1 // pred_check
      _
    $region43: #{tpu_custom_call.1} parent=1 // pred_check_branch
      %85 = sbr.rel (0) target = $region45
    $region44: #{tpu_custom_call.1} parent=1 // pred_region
      %87 = dma.done [#allocation9], 2048
    $region45: #{tpu_custom_call.1} parent=1 // pred_fallthru
      _
    %v88 = vld [vmem:[#allocation2] sm:$0xff]
    %v89 = vld [vmem:[#allocation5] sm:$0xff]
    %v90 = vld [vmem:[#allocation5 + $0x8] sm:$0xff]
    %v91 = vld [vmem:[#allocation5 + $0x10] sm:$0xff]
    %v92 = vld [vmem:[#allocation5 + $0x18] sm:$0xff]
    %v93 = vld [vmem:[#allocation5 + $0x20] sm:$0xff]
    %v94 = vld [vmem:[#allocation5 + $0x28] sm:$0xff]
    %v95 = vld [vmem:[#allocation5 + $0x30] sm:$0xff]
    %v96 = vld [vmem:[#allocation5 + $0x38] sm:$0xff]
    %v97 = vld [vmem:[#allocation5 + $0x40] sm:$0xff]
    %v98 = vld [vmem:[#allocation5 + $0x48] sm:$0xff]
    %v99 = vld [vmem:[#allocation5 + $0x50] sm:$0xff]
    %v100 = vld [vmem:[#allocation5 + $0x58] sm:$0xff]
    %v101 = vld [vmem:[#allocation5 + $0x60] sm:$0xff]
    %v102 = vld [vmem:[#allocation5 + $0x68] sm:$0xff]
    %v103 = vld [vmem:[#allocation5 + $0x70] sm:$0xff]
    %v104 = vld [vmem:[#allocation5 + $0x78] sm:$0xff]
    %v105 = vld [vmem:[#allocation7] sm:$0xff]
    %v106 = vld [vmem:[#allocation7 + $0x8] sm:$0xff]
    %v107 = vld [vmem:[#allocation7 + $0x10] sm:$0xff]
    %v108 = vld [vmem:[#allocation7 + $0x18] sm:$0xff]
    %v109 = vld [vmem:[#allocation7 + $0x20] sm:$0xff]
    %v110 = vld [vmem:[#allocation7 + $0x28] sm:$0xff]
    %v111 = vld [vmem:[#allocation7 + $0x30] sm:$0xff]
    %v112 = vld [vmem:[#allocation7 + $0x38] sm:$0xff]
    %v113 = vld [vmem:[#allocation7 + $0x40] sm:$0xff]
    %v114 = vld [vmem:[#allocation7 + $0x48] sm:$0xff]
    %v115 = vld [vmem:[#allocation7 + $0x50] sm:$0xff]
    %v116 = vld [vmem:[#allocation7 + $0x58] sm:$0xff]
    %v117 = vld [vmem:[#allocation7 + $0x60] sm:$0xff]
    %v118 = vld [vmem:[#allocation7 + $0x68] sm:$0xff]
    %v119 = vld [vmem:[#allocation7 + $0x70] sm:$0xff]
    %v120 = vld [vmem:[#allocation7 + $0x78] sm:$0xff]
    %v121 = vld [vmem:[#allocation8] sm:$0xff]
    %v122 = vld [vmem:[#allocation8 + $0x8] sm:$0xff]
    %v123 = vld [vmem:[#allocation8 + $0x10] sm:$0xff]
    %v124 = vld [vmem:[#allocation8 + $0x18] sm:$0xff]
    %v125 = vld [vmem:[#allocation8 + $0x20] sm:$0xff]
    %v126 = vld [vmem:[#allocation8 + $0x28] sm:$0xff]
    %v127 = vld [vmem:[#allocation8 + $0x30] sm:$0xff]
    %v128 = vld [vmem:[#allocation8 + $0x38] sm:$0xff]
    %v129 = vld [vmem:[#allocation8 + $0x40] sm:$0xff]
    %v130 = vld [vmem:[#allocation8 + $0x48] sm:$0xff]
    %v131 = vld [vmem:[#allocation8 + $0x50] sm:$0xff]
    %v132 = vld [vmem:[#allocation8 + $0x58] sm:$0xff]
    %v133 = vld [vmem:[#allocation8 + $0x60] sm:$0xff]
    %v134 = vld [vmem:[#allocation8 + $0x68] sm:$0xff]
    %v135 = vld [vmem:[#allocation8 + $0x70] sm:$0xff]
    %v136 = vld [vmem:[#allocation8 + $0x78] sm:$0xff]
    %v137 = vld [vmem:[%s2] sm:$0x1]
    %v139 = vperm.slane %v137, 0
    %v141 = vld [vmem:[%s4] sm:$0x1]
    %v143 = vperm.slane %v141, 0
    %v145 = vld [vmem:[%s6] sm:$0x1]
    %v147 = vperm.slane %v145, 0
    %149 = vmatpush.msra.mxu0 %v104
    %150 = vmatpush.msra.mxu0 %v103
    %151 = vmatpush.msra.mxu0 %v102
    %152 = vmatpush.msra.mxu0 %v101
    %153 = vmatpush.msra.mxu0 %v100
    %154 = vmatpush.msra.mxu0 %v99
    %155 = vmatpush.msra.mxu0 %v98
    %156 = vmatpush.msra.mxu0 %v97
    %157 = vmatpush.msra.mxu0 %v96
    %158 = vmatpush.msra.mxu0 %v95
    %159 = vmatpush.msra.mxu0 %v94
    %160 = vmatpush.msra.mxu0 %v93
    %161 = vmatpush.msra.mxu0 %v92
    %162 = vmatpush.msra.mxu0 %v91
    %163 = vmatpush.msra.mxu0 %v90
    %164 = vmatpush.msra.mxu0 %v89
    %165 = vmatmul.f32.gmra.mxu0 %v88
    %v166 = vpop.f32.mrf.mxu0
    %v167 = vadd.f32 %v139, %v166
    %168 = vdwg.mxu0
    %vm169 = vcmp.gt.f32.partialorder 0.0, 1.0
    %v170 = vsel %vm169, 1, 0
    %v171 = vcvt.s32.f32 %v170
    %v172 = vadd.f32 %v167, 0.0
    %v173 = vsub.f32 %v172, %v171
    %vm174 = vcmp.gt.f32.partialorder %v173, 1.0
    %v175 = vsel %vm174, 1, 0
    %v176 = vcvt.s32.f32 %v175
    %177 = vmatpush.msra.mxu0 %v120
    %178 = vmatpush.msra.mxu0 %v119
    %179 = vmatpush.msra.mxu0 %v118
    %180 = vmatpush.msra.mxu0 %v117
    %181 = vmatpush.msra.mxu0 %v116
    %182 = vmatpush.msra.mxu0 %v115
    %183 = vmatpush.msra.mxu0 %v114
    %184 = vmatpush.msra.mxu0 %v113
    %185 = vmatpush.msra.mxu0 %v112
    %186 = vmatpush.msra.mxu0 %v111
    %187 = vmatpush.msra.mxu0 %v110
    %188 = vmatpush.msra.mxu0 %v109
    %189 = vmatpush.msra.mxu0 %v108
    %190 = vmatpush.msra.mxu0 %v107
    %191 = vmatpush.msra.mxu0 %v106
    %192 = vmatpush.msra.mxu0 %v105
    %193 = vmatmul.f32.gmra.mxu0 %v176
    %v194 = vpop.f32.mrf.mxu0
    %v195 = vadd.f32 %v143, %v194
    %196 = vdwg.mxu0
    %v197 = vadd.f32 %v195, 0.0
    %v198 = vsub.f32 %v197, %v171
    %vm199 = vcmp.gt.f32.partialorder %v198, 1.0
    %v200 = vsel %vm199, 1, 0
    %v201 = vcvt.s32.f32 %v200
    %202 = vmatpush.msra.mxu0 %v136
    %203 = vmatpush.msra.mxu0 %v135
    %204 = vmatpush.msra.mxu0 %v134
    %205 = vmatpush.msra.mxu0 %v133
    %206 = vmatpush.msra.mxu0 %v132
    %207 = vmatpush.msra.mxu0 %v131
    %208 = vmatpush.msra.mxu0 %v130
    %209 = vmatpush.msra.mxu0 %v129
    %210 = vmatpush.msra.mxu0 %v128
    %211 = vmatpush.msra.mxu0 %v127
    %212 = vmatpush.msra.mxu0 %v126
    %213 = vmatpush.msra.mxu0 %v125
    %214 = vmatpush.msra.mxu0 %v124
    %215 = vmatpush.msra.mxu0 %v123
    %216 = vmatpush.msra.mxu0 %v122
    %217 = vmatpush.msra.mxu0 %v121
    %218 = vmatmul.f32.gmra.mxu0 %v201
    %v219 = vpop.f32.mrf.mxu0
    %v220 = vadd.f32 %v147, %v219
    %221 = vdwg.mxu0
    %v222 = vadd.f32 %v220, 0.0
    %v223 = vsub.f32 %v222, %v171
    %vm224 = vcmp.gt.f32.partialorder %v223, 1.0
    %v225 = vsel %vm224, 1, 0
    %v226 = vcvt.s32.f32 %v225
    %227 = vst [vmem:[#allocation10] sm:$0xff] %v226
    %228 = vst [vmem:[#allocation10 + $0x8] sm:$0xff] %v223
    %v229 = vmul.f32 %v173, 0.9
    %v230 = vadd.f32 %v229, %v167
    %v231 = vsub.f32 %v230, %v176
    %vm232 = vcmp.gt.f32.partialorder %v231, 1.0
    %v233 = vsel %vm232, 1, 0
    %v234 = vcvt.s32.f32 %v233
    %235 = vmatpush.msra.mxu0 %v120
    %236 = vmatpush.msra.mxu0 %v119
    %237 = vmatpush.msra.mxu0 %v118
    %238 = vmatpush.msra.mxu0 %v117
    %239 = vmatpush.msra.mxu0 %v116
    %240 = vmatpush.msra.mxu0 %v115
    %241 = vmatpush.msra.mxu0 %v114
    %242 = vmatpush.msra.mxu0 %v113
    %243 = vmatpush.msra.mxu0 %v112
    %244 = vmatpush.msra.mxu0 %v111
    %245 = vmatpush.msra.mxu0 %v110
    %246 = vmatpush.msra.mxu0 %v109
    %247 = vmatpush.msra.mxu0 %v108
    %248 = vmatpush.msra.mxu0 %v107
    %249 = vmatpush.msra.mxu0 %v106
    %250 = vmatpush.msra.mxu0 %v105
    %251 = vmatmul.f32.gmra.mxu0 %v234
    %v252 = vpop.f32.mrf.mxu0
    %v253 = vadd.f32 %v143, %v252
    %254 = vdwg.mxu0
    %v255 = vmul.f32 %v198, 0.9
    %v256 = vadd.f32 %v255, %v253
    %v257 = vsub.f32 %v256, %v201
    %vm258 = vcmp.gt.f32.partialorder %v257, 1.0
    %v259 = vsel %vm258, 1, 0
    %v260 = vcvt.s32.f32 %v259
    %261 = vmatpush.msra.mxu0 %v136
    %262 = vmatpush.msra.mxu0 %v135
    %263 = vmatpush.msra.mxu0 %v134
    %264 = vmatpush.msra.mxu0 %v133
    %265 = vmatpush.msra.mxu0 %v132
    %266 = vmatpush.msra.mxu0 %v131
    %267 = vmatpush.msra.mxu0 %v130
    %268 = vmatpush.msra.mxu0 %v129
    %269 = vmatpush.msra.mxu0 %v128
    %270 = vmatpush.msra.mxu0 %v127
    %271 = vmatpush.msra.mxu0 %v126
    %272 = vmatpush.msra.mxu0 %v125
    %273 = vmatpush.msra.mxu0 %v124
    %274 = vmatpush.msra.mxu0 %v123
    %275 = vmatpush.msra.mxu0 %v122
    %276 = vmatpush.msra.mxu0 %v121
    %277 = vmatmul.f32.gmra.mxu0 %v260
    %v278 = vpop.f32.mrf.mxu0
    %v279 = vadd.f32 %v147, %v278
    %280 = vdwg.mxu0
    %v281 = vmul.f32 %v223, 0.9
    %v282 = vadd.f32 %v281, %v279
    %v283 = vsub.f32 %v282, %v226
    %vm284 = vcmp.gt.f32.partialorder %v283, 1.0
    %v285 = vsel %vm284, 1, 0
    %v286 = vcvt.s32.f32 %v285
    %s287 = scalar_lea.vmem [#allocation10], 16
    %288 = vst [vmem:[%s287] sm:$0xff] %v286
    %289 = vst [vmem:[%s287 + $0x8] sm:$0xff] %v283
    %v290 = vmul.f32 %v231, 0.9
    %v291 = vadd.f32 %v290, %v167
    %v292 = vsub.f32 %v291, %v234
    %vm293 = vcmp.gt.f32.partialorder %v292, 1.0
    %v294 = vsel %vm293, 1, 0
    %v295 = vcvt.s32.f32 %v294
    %296 = vmatpush.msra.mxu0 %v120
    %297 = vmatpush.msra.mxu0 %v119
    %298 = vmatpush.msra.mxu0 %v118
    %299 = vmatpush.msra.mxu0 %v117
    %300 = vmatpush.msra.mxu0 %v116
    %301 = vmatpush.msra.mxu0 %v115
    %302 = vmatpush.msra.mxu0 %v114
    %303 = vmatpush.msra.mxu0 %v113
    %304 = vmatpush.msra.mxu0 %v112
    %305 = vmatpush.msra.mxu0 %v111
    %306 = vmatpush.msra.mxu0 %v110
    %307 = vmatpush.msra.mxu0 %v109
    %308 = vmatpush.msra.mxu0 %v108
    %309 = vmatpush.msra.mxu0 %v107
    %310 = vmatpush.msra.mxu0 %v106
    %311 = vmatpush.msra.mxu0 %v105
    %312 = vmatmul.f32.gmra.mxu0 %v295
    %v313 = vpop.f32.mrf.mxu0
    %v314 = vadd.f32 %v143, %v313
    %315 = vdwg.mxu0
    %v316 = vmul.f32 %v257, 0.9
    %v317 = vadd.f32 %v316, %v314
    %v318 = vsub.f32 %v317, %v260
    %vm319 = vcmp.gt.f32.partialorder %v318, 1.0
    %v320 = vsel %vm319, 1, 0
    %v321 = vcvt.s32.f32 %v320
    %322 = vmatpush.msra.mxu0 %v136
    %323 = vmatpush.msra.mxu0 %v135
    %324 = vmatpush.msra.mxu0 %v134
    %325 = vmatpush.msra.mxu0 %v133
    %326 = vmatpush.msra.mxu0 %v132
    %327 = vmatpush.msra.mxu0 %v131
    %328 = vmatpush.msra.mxu0 %v130
    %329 = vmatpush.msra.mxu0 %v129
    %330 = vmatpush.msra.mxu0 %v128
    %331 = vmatpush.msra.mxu0 %v127
    %332 = vmatpush.msra.mxu0 %v126
    %333 = vmatpush.msra.mxu0 %v125
    %334 = vmatpush.msra.mxu0 %v124
    %335 = vmatpush.msra.mxu0 %v123
    %336 = vmatpush.msra.mxu0 %v122
    %337 = vmatpush.msra.mxu0 %v121
    %338 = vmatmul.f32.gmra.mxu0 %v321
    %v339 = vpop.f32.mrf.mxu0
    %v340 = vadd.f32 %v147, %v339
    %341 = vdwg.mxu0
    %v342 = vmul.f32 %v283, 0.9
    %v343 = vadd.f32 %v342, %v340
    %v344 = vsub.f32 %v343, %v286
    %vm345 = vcmp.gt.f32.partialorder %v344, 1.0
    %v346 = vsel %vm345, 1, 0
    %v347 = vcvt.s32.f32 %v346
    %s348 = scalar_lea.vmem [#allocation10], 32
    %349 = vst [vmem:[%s348] sm:$0xff] %v347
    %350 = vst [vmem:[%s348 + $0x8] sm:$0xff] %v344
    %v351 = vmul.f32 %v292, 0.9
    %v352 = vadd.f32 %v351, %v167
    %v353 = vsub.f32 %v352, %v295
    %vm354 = vcmp.gt.f32.partialorder %v353, 1.0
    %v355 = vsel %vm354, 1, 0
    %v356 = vcvt.s32.f32 %v355
    %357 = vmatpush.msra.mxu0 %v120
    %358 = vmatpush.msra.mxu0 %v119
    %359 = vmatpush.msra.mxu0 %v118
    %360 = vmatpush.msra.mxu0 %v117
    %361 = vmatpush.msra.mxu0 %v116
    %362 = vmatpush.msra.mxu0 %v115
    %363 = vmatpush.msra.mxu0 %v114
    %364 = vmatpush.msra.mxu0 %v113
    %365 = vmatpush.msra.mxu0 %v112
    %366 = vmatpush.msra.mxu0 %v111
    %367 = vmatpush.msra.mxu0 %v110
    %368 = vmatpush.msra.mxu0 %v109
    %369 = vmatpush.msra.mxu0 %v108
    %370 = vmatpush.msra.mxu0 %v107
    %371 = vmatpush.msra.mxu0 %v106
    %372 = vmatpush.msra.mxu0 %v105
    %373 = vmatmul.f32.gmra.mxu0 %v356
    %v374 = vpop.f32.mrf.mxu0
    %v375 = vadd.f32 %v143, %v374
    %376 = vdwg.mxu0
    %v377 = vmul.f32 %v318, 0.9
    %v378 = vadd.f32 %v377, %v375
    %v379 = vsub.f32 %v378, %v321
    %vm380 = vcmp.gt.f32.partialorder %v379, 1.0
    %v381 = vsel %vm380, 1, 0
    %v382 = vcvt.s32.f32 %v381
    %383 = vmatpush.msra.mxu0 %v136
    %384 = vmatpush.msra.mxu0 %v135
    %385 = vmatpush.msra.mxu0 %v134
    %386 = vmatpush.msra.mxu0 %v133
    %387 = vmatpush.msra.mxu0 %v132
    %388 = vmatpush.msra.mxu0 %v131
    %389 = vmatpush.msra.mxu0 %v130
    %390 = vmatpush.msra.mxu0 %v129
    %391 = vmatpush.msra.mxu0 %v128
    %392 = vmatpush.msra.mxu0 %v127
    %393 = vmatpush.msra.mxu0 %v126
    %394 = vmatpush.msra.mxu0 %v125
    %395 = vmatpush.msra.mxu0 %v124
    %396 = vmatpush.msra.mxu0 %v123
    %397 = vmatpush.msra.mxu0 %v122
    %398 = vmatpush.msra.mxu0 %v121
    %399 = vmatmul.f32.gmra.mxu0 %v382
    %v400 = vpop.f32.mrf.mxu0
    %v401 = vadd.f32 %v147, %v400
    %402 = vdwg.mxu0
    %v403 = vmul.f32 %v344, 0.9
    %v404 = vadd.f32 %v403, %v401
    %v405 = vsub.f32 %v404, %v347
    %vm406 = vcmp.gt.f32.partialorder %v405, 1.0
    %v407 = vsel %vm406, 1, 0
    %v408 = vcvt.s32.f32 %v407
    %s409 = scalar_lea.vmem [#allocation10], 48
    %410 = vst [vmem:[%s409] sm:$0xff] %v408
    %411 = vst [vmem:[%s409 + $0x8] sm:$0xff] %v405
    %v412 = vmul.f32 %v353, 0.9
    %v413 = vadd.f32 %v412, %v167
    %v414 = vsub.f32 %v413, %v356
    %vm415 = vcmp.gt.f32.partialorder %v414, 1.0
    %v416 = vsel %vm415, 1, 0
    %v417 = vcvt.s32.f32 %v416
    %418 = vmatpush.msra.mxu0 %v120
    %419 = vmatpush.msra.mxu0 %v119
    %420 = vmatpush.msra.mxu0 %v118
    %421 = vmatpush.msra.mxu0 %v117
    %422 = vmatpush.msra.mxu0 %v116
    %423 = vmatpush.msra.mxu0 %v115
    %424 = vmatpush.msra.mxu0 %v114
    %425 = vmatpush.msra.mxu0 %v113
    %426 = vmatpush.msra.mxu0 %v112
    %427 = vmatpush.msra.mxu0 %v111
    %428 = vmatpush.msra.mxu0 %v110
    %429 = vmatpush.msra.mxu0 %v109
    %430 = vmatpush.msra.mxu0 %v108
    %431 = vmatpush.msra.mxu0 %v107
    %432 = vmatpush.msra.mxu0 %v106
    %433 = vmatpush.msra.mxu0 %v105
    %434 = vmatmul.f32.gmra.mxu0 %v417
    %v435 = vpop.f32.mrf.mxu0
    %v436 = vadd.f32 %v143, %v435
    %437 = vdwg.mxu0
    %v438 = vmul.f32 %v379, 0.9
    %v439 = vadd.f32 %v438, %v436
    %v440 = vsub.f32 %v439, %v382
    %vm441 = vcmp.gt.f32.partialorder %v440, 1.0
    %v442 = vsel %vm441, 1, 0
    %v443 = vcvt.s32.f32 %v442
    %444 = vmatpush.msra.mxu0 %v136
    %445 = vmatpush.msra.mxu0 %v135
    %446 = vmatpush.msra.mxu0 %v134
    %447 = vmatpush.msra.mxu0 %v133
    %448 = vmatpush.msra.mxu0 %v132
    %449 = vmatpush.msra.mxu0 %v131
    %450 = vmatpush.msra.mxu0 %v130
    %451 = vmatpush.msra.mxu0 %v129
    %452 = vmatpush.msra.mxu0 %v128
    %453 = vmatpush.msra.mxu0 %v127
    %454 = vmatpush.msra.mxu0 %v126
    %455 = vmatpush.msra.mxu0 %v125
    %456 = vmatpush.msra.mxu0 %v124
    %457 = vmatpush.msra.mxu0 %v123
    %458 = vmatpush.msra.mxu0 %v122
    %459 = vmatpush.msra.mxu0 %v121
    %460 = vmatmul.f32.gmra.mxu0 %v443
    %v461 = vpop.f32.mrf.mxu0
    %v462 = vadd.f32 %v147, %v461
    %463 = vdwg.mxu0
    %v464 = vmul.f32 %v405, 0.9
    %v465 = vadd.f32 %v464, %v462
    %v466 = vsub.f32 %v465, %v408
    %vm467 = vcmp.gt.f32.partialorder %v466, 1.0
    %v468 = vsel %vm467, 1, 0
    %v469 = vcvt.s32.f32 %v468
    %s470 = scalar_lea.vmem [#allocation10], 64
    %471 = vst [vmem:[%s470] sm:$0xff] %v469
    %472 = vst [vmem:[%s470 + $0x8] sm:$0xff] %v466
    %v473 = vmul.f32 %v414, 0.9
    %v474 = vadd.f32 %v473, %v167
    %v475 = vsub.f32 %v474, %v417
    %vm476 = vcmp.gt.f32.partialorder %v475, 1.0
    %v477 = vsel %vm476, 1, 0
    %v478 = vcvt.s32.f32 %v477
    %479 = vmatpush.msra.mxu0 %v120
    %480 = vmatpush.msra.mxu0 %v119
    %481 = vmatpush.msra.mxu0 %v118
    %482 = vmatpush.msra.mxu0 %v117
    %483 = vmatpush.msra.mxu0 %v116
    %484 = vmatpush.msra.mxu0 %v115
    %485 = vmatpush.msra.mxu0 %v114
    %486 = vmatpush.msra.mxu0 %v113
    %487 = vmatpush.msra.mxu0 %v112
    %488 = vmatpush.msra.mxu0 %v111
    %489 = vmatpush.msra.mxu0 %v110
    %490 = vmatpush.msra.mxu0 %v109
    %491 = vmatpush.msra.mxu0 %v108
    %492 = vmatpush.msra.mxu0 %v107
    %493 = vmatpush.msra.mxu0 %v106
    %494 = vmatpush.msra.mxu0 %v105
    %495 = vmatmul.f32.gmra.mxu0 %v478
    %v496 = vpop.f32.mrf.mxu0
    %v497 = vadd.f32 %v143, %v496
    %498 = vdwg.mxu0
    %v499 = vmul.f32 %v440, 0.9
    %v500 = vadd.f32 %v499, %v497
    %v501 = vsub.f32 %v500, %v443
    %vm502 = vcmp.gt.f32.partialorder %v501, 1.0
    %v503 = vsel %vm502, 1, 0
    %v504 = vcvt.s32.f32 %v503
    %505 = vmatpush.msra.mxu0 %v136
    %506 = vmatpush.msra.mxu0 %v135
    %507 = vmatpush.msra.mxu0 %v134
    %508 = vmatpush.msra.mxu0 %v133
    %509 = vmatpush.msra.mxu0 %v132
    %510 = vmatpush.msra.mxu0 %v131
    %511 = vmatpush.msra.mxu0 %v130
    %512 = vmatpush.msra.mxu0 %v129
    %513 = vmatpush.msra.mxu0 %v128
    %514 = vmatpush.msra.mxu0 %v127
    %515 = vmatpush.msra.mxu0 %v126
    %516 = vmatpush.msra.mxu0 %v125
    %517 = vmatpush.msra.mxu0 %v124
    %518 = vmatpush.msra.mxu0 %v123
    %519 = vmatpush.msra.mxu0 %v122
    %520 = vmatpush.msra.mxu0 %v121
    %521 = vmatmul.f32.gmra.mxu0 %v504
    %v522 = vpop.f32.mrf.mxu0
    %v523 = vadd.f32 %v147, %v522
    %524 = vdwg.mxu0
    %v525 = vmul.f32 %v466, 0.9
    %v526 = vadd.f32 %v525, %v523
    %v527 = vsub.f32 %v526, %v469
    %vm528 = vcmp.gt.f32.partialorder %v527, 1.0
    %v529 = vsel %vm528, 1, 0
    %v530 = vcvt.s32.f32 %v529
    %s531 = scalar_lea.vmem [#allocation10], 80
    %532 = vst [vmem:[%s531] sm:$0xff] %v530
    %533 = vst [vmem:[%s531 + $0x8] sm:$0xff] %v527
    %v534 = vmul.f32 %v475, 0.9
    %v535 = vadd.f32 %v534, %v167
    %v536 = vsub.f32 %v535, %v478
    %vm537 = vcmp.gt.f32.partialorder %v536, 1.0
    %v538 = vsel %vm537, 1, 0
    %v539 = vcvt.s32.f32 %v538
    %540 = vmatpush.msra.mxu0 %v120
    %541 = vmatpush.msra.mxu0 %v119
    %542 = vmatpush.msra.mxu0 %v118
    %543 = vmatpush.msra.mxu0 %v117
    %544 = vmatpush.msra.mxu0 %v116
    %545 = vmatpush.msra.mxu0 %v115
    %546 = vmatpush.msra.mxu0 %v114
    %547 = vmatpush.msra.mxu0 %v113
    %548 = vmatpush.msra.mxu0 %v112
    %549 = vmatpush.msra.mxu0 %v111
    %550 = vmatpush.msra.mxu0 %v110
    %551 = vmatpush.msra.mxu0 %v109
    %552 = vmatpush.msra.mxu0 %v108
    %553 = vmatpush.msra.mxu0 %v107
    %554 = vmatpush.msra.mxu0 %v106
    %555 = vmatpush.msra.mxu0 %v105
    %556 = vmatmul.f32.gmra.mxu0 %v539
    %v557 = vpop.f32.mrf.mxu0
    %v558 = vadd.f32 %v143, %v557
    %559 = vdwg.mxu0
    %v560 = vmul.f32 %v501, 0.9
    %v561 = vadd.f32 %v560, %v558
    %v562 = vsub.f32 %v561, %v504
    %vm563 = vcmp.gt.f32.partialorder %v562, 1.0
    %v564 = vsel %vm563, 1, 0
    %v565 = vcvt.s32.f32 %v564
    %566 = vmatpush.msra.mxu0 %v136
    %567 = vmatpush.msra.mxu0 %v135
    %568 = vmatpush.msra.mxu0 %v134
    %569 = vmatpush.msra.mxu0 %v133
    %570 = vmatpush.msra.mxu0 %v132
    %571 = vmatpush.msra.mxu0 %v131
    %572 = vmatpush.msra.mxu0 %v130
    %573 = vmatpush.msra.mxu0 %v129
    %574 = vmatpush.msra.mxu0 %v128
    %575 = vmatpush.msra.mxu0 %v127
    %576 = vmatpush.msra.mxu0 %v126
    %577 = vmatpush.msra.mxu0 %v125
    %578 = vmatpush.msra.mxu0 %v124
    %579 = vmatpush.msra.mxu0 %v123
    %580 = vmatpush.msra.mxu0 %v122
    %581 = vmatpush.msra.mxu0 %v121
    %582 = vmatmul.f32.gmra.mxu0 %v565
    %v583 = vpop.f32.mrf.mxu0
    %v584 = vadd.f32 %v147, %v583
    %585 = vdwg.mxu0
    %v586 = vmul.f32 %v527, 0.9
    %v587 = vadd.f32 %v586, %v584
    %v588 = vsub.f32 %v587, %v530
    %vm589 = vcmp.gt.f32.partialorder %v588, 1.0
    %v590 = vsel %vm589, 1, 0
    %v591 = vcvt.s32.f32 %v590
    %s592 = scalar_lea.vmem [#allocation10], 96
    %593 = vst [vmem:[%s592] sm:$0xff] %v591
    %594 = vst [vmem:[%s592 + $0x8] sm:$0xff] %v588
    %v595 = vmul.f32 %v536, 0.9
    %v596 = vadd.f32 %v595, %v167
    %v597 = vsub.f32 %v596, %v539
    %vm598 = vcmp.gt.f32.partialorder %v597, 1.0
    %v599 = vsel %vm598, 1, 0
    %v600 = vcvt.s32.f32 %v599
    %601 = vmatpush.msra.mxu0 %v120
    %602 = vmatpush.msra.mxu0 %v119
    %603 = vmatpush.msra.mxu0 %v118
    %604 = vmatpush.msra.mxu0 %v117
    %605 = vmatpush.msra.mxu0 %v116
    %606 = vmatpush.msra.mxu0 %v115
    %607 = vmatpush.msra.mxu0 %v114
    %608 = vmatpush.msra.mxu0 %v113
    %609 = vmatpush.msra.mxu0 %v112
    %610 = vmatpush.msra.mxu0 %v111
    %611 = vmatpush.msra.mxu0 %v110
    %612 = vmatpush.msra.mxu0 %v109
    %613 = vmatpush.msra.mxu0 %v108
    %614 = vmatpush.msra.mxu0 %v107
    %615 = vmatpush.msra.mxu0 %v106
    %616 = vmatpush.msra.mxu0 %v105
    %617 = vmatmul.f32.gmra.mxu0 %v600
    %v618 = vpop.f32.mrf.mxu0
    %v619 = vadd.f32 %v143, %v618
    %620 = vdwg.mxu0
    %v621 = vmul.f32 %v562, 0.9
    %v622 = vadd.f32 %v621, %v619
    %v623 = vsub.f32 %v622, %v565
    %vm624 = vcmp.gt.f32.partialorder %v623, 1.0
    %v625 = vsel %vm624, 1, 0
    %v626 = vcvt.s32.f32 %v625
    %627 = vmatpush.msra.mxu0 %v136
    %628 = vmatpush.msra.mxu0 %v135
    %629 = vmatpush.msra.mxu0 %v134
    %630 = vmatpush.msra.mxu0 %v133
    %631 = vmatpush.msra.mxu0 %v132
    %632 = vmatpush.msra.mxu0 %v131
    %633 = vmatpush.msra.mxu0 %v130
    %634 = vmatpush.msra.mxu0 %v129
    %635 = vmatpush.msra.mxu0 %v128
    %636 = vmatpush.msra.mxu0 %v127
    %637 = vmatpush.msra.mxu0 %v126
    %638 = vmatpush.msra.mxu0 %v125
    %639 = vmatpush.msra.mxu0 %v124
    %640 = vmatpush.msra.mxu0 %v123
    %641 = vmatpush.msra.mxu0 %v122
    %642 = vmatpush.msra.mxu0 %v121
    %643 = vmatmul.f32.gmra.mxu0 %v626
    %v644 = vpop.f32.mrf.mxu0
    %v645 = vadd.f32 %v147, %v644
    %646 = vdwg.mxu0
    %v647 = vmul.f32 %v588, 0.9
    %v648 = vadd.f32 %v647, %v645
    %v649 = vsub.f32 %v648, %v591
    %vm650 = vcmp.gt.f32.partialorder %v649, 1.0
    %v651 = vsel %vm650, 1, 0
    %v652 = vcvt.s32.f32 %v651
    %s653 = scalar_lea.vmem [#allocation10], 112
    %654 = vst [vmem:[%s653] sm:$0xff] %v652
    %655 = vst [vmem:[%s653 + $0x8] sm:$0xff] %v649
    %v656 = vmul.f32 %v597, 0.9
    %v657 = vadd.f32 %v656, %v167
    %v658 = vsub.f32 %v657, %v600
    %vm659 = vcmp.gt.f32.partialorder %v658, 1.0
    %v660 = vsel %vm659, 1, 0
    %v661 = vcvt.s32.f32 %v660
    %662 = vmatpush.msra.mxu0 %v120
    %663 = vmatpush.msra.mxu0 %v119
    %664 = vmatpush.msra.mxu0 %v118
    %665 = vmatpush.msra.mxu0 %v117
    %666 = vmatpush.msra.mxu0 %v116
    %667 = vmatpush.msra.mxu0 %v115
    %668 = vmatpush.msra.mxu0 %v114
    %669 = vmatpush.msra.mxu0 %v113
    %670 = vmatpush.msra.mxu0 %v112
    %671 = vmatpush.msra.mxu0 %v111
    %672 = vmatpush.msra.mxu0 %v110
    %673 = vmatpush.msra.mxu0 %v109
    %674 = vmatpush.msra.mxu0 %v108
    %675 = vmatpush.msra.mxu0 %v107
    %676 = vmatpush.msra.mxu0 %v106
    %677 = vmatpush.msra.mxu0 %v105
    %678 = vmatmul.f32.gmra.mxu0 %v661
    %v679 = vpop.f32.mrf.mxu0
    %v680 = vadd.f32 %v143, %v679
    %681 = vdwg.mxu0
    %v682 = vmul.f32 %v623, 0.9
    %v683 = vadd.f32 %v682, %v680
    %v684 = vsub.f32 %v683, %v626
    %vm685 = vcmp.gt.f32.partialorder %v684, 1.0
    %v686 = vsel %vm685, 1, 0
    %v687 = vcvt.s32.f32 %v686
    %688 = vmatpush.msra.mxu0 %v136
    %689 = vmatpush.msra.mxu0 %v135
    %690 = vmatpush.msra.mxu0 %v134
    %691 = vmatpush.msra.mxu0 %v133
    %692 = vmatpush.msra.mxu0 %v132
    %693 = vmatpush.msra.mxu0 %v131
    %694 = vmatpush.msra.mxu0 %v130
    %695 = vmatpush.msra.mxu0 %v129
    %696 = vmatpush.msra.mxu0 %v128
    %697 = vmatpush.msra.mxu0 %v127
    %698 = vmatpush.msra.mxu0 %v126
    %699 = vmatpush.msra.mxu0 %v125
    %700 = vmatpush.msra.mxu0 %v124
    %701 = vmatpush.msra.mxu0 %v123
    %702 = vmatpush.msra.mxu0 %v122
    %703 = vmatpush.msra.mxu0 %v121
    %704 = vmatmul.f32.gmra.mxu0 %v687
    %v705 = vpop.f32.mrf.mxu0
    %v706 = vadd.f32 %v147, %v705
    %707 = vdwg.mxu0
    %v708 = vmul.f32 %v649, 0.9
    %v709 = vadd.f32 %v708, %v706
    %v710 = vsub.f32 %v709, %v652
    %vm711 = vcmp.gt.f32.partialorder %v710, 1.0
    %v712 = vsel %vm711, 1, 0
    %v713 = vcvt.s32.f32 %v712
    %s714 = scalar_lea.vmem [#allocation10], 128
    %715 = vst [vmem:[%s714] sm:$0xff] %v713
    %716 = vst [vmem:[%s714 + $0x8] sm:$0xff] %v710
    %v717 = vmul.f32 %v658, 0.9
    %v718 = vadd.f32 %v717, %v167
    %v719 = vsub.f32 %v718, %v661
    %vm720 = vcmp.gt.f32.partialorder %v719, 1.0
    %v721 = vsel %vm720, 1, 0
    %v722 = vcvt.s32.f32 %v721
    %723 = vmatpush.msra.mxu0 %v120
    %724 = vmatpush.msra.mxu0 %v119
    %725 = vmatpush.msra.mxu0 %v118
    %726 = vmatpush.msra.mxu0 %v117
    %727 = vmatpush.msra.mxu0 %v116
    %728 = vmatpush.msra.mxu0 %v115
    %729 = vmatpush.msra.mxu0 %v114
    %730 = vmatpush.msra.mxu0 %v113
    %731 = vmatpush.msra.mxu0 %v112
    %732 = vmatpush.msra.mxu0 %v111
    %733 = vmatpush.msra.mxu0 %v110
    %734 = vmatpush.msra.mxu0 %v109
    %735 = vmatpush.msra.mxu0 %v108
    %736 = vmatpush.msra.mxu0 %v107
    %737 = vmatpush.msra.mxu0 %v106
    %738 = vmatpush.msra.mxu0 %v105
    %739 = vmatmul.f32.gmra.mxu0 %v722
    %v740 = vpop.f32.mrf.mxu0
    %v741 = vadd.f32 %v143, %v740
    %742 = vdwg.mxu0
    %v743 = vmul.f32 %v684, 0.9
    %v744 = vadd.f32 %v743, %v741
    %v745 = vsub.f32 %v744, %v687
    %vm746 = vcmp.gt.f32.partialorder %v745, 1.0
    %v747 = vsel %vm746, 1, 0
    %v748 = vcvt.s32.f32 %v747
    %749 = vmatpush.msra.mxu0 %v136
    %750 = vmatpush.msra.mxu0 %v135
    %751 = vmatpush.msra.mxu0 %v134
    %752 = vmatpush.msra.mxu0 %v133
    %753 = vmatpush.msra.mxu0 %v132
    %754 = vmatpush.msra.mxu0 %v131
    %755 = vmatpush.msra.mxu0 %v130
    %756 = vmatpush.msra.mxu0 %v129
    %757 = vmatpush.msra.mxu0 %v128
    %758 = vmatpush.msra.mxu0 %v127
    %759 = vmatpush.msra.mxu0 %v126
    %760 = vmatpush.msra.mxu0 %v125
    %761 = vmatpush.msra.mxu0 %v124
    %762 = vmatpush.msra.mxu0 %v123
    %763 = vmatpush.msra.mxu0 %v122
    %764 = vmatpush.msra.mxu0 %v121
    %765 = vmatmul.f32.gmra.mxu0 %v748
    %v766 = vpop.f32.mrf.mxu0
    %v767 = vadd.f32 %v147, %v766
    %768 = vdwg.mxu0
    %v769 = vmul.f32 %v710, 0.9
    %v770 = vadd.f32 %v769, %v767
    %v771 = vsub.f32 %v770, %v713
    %vm772 = vcmp.gt.f32.partialorder %v771, 1.0
    %v773 = vsel %vm772, 1, 0
    %v774 = vcvt.s32.f32 %v773
    %s775 = scalar_lea.vmem [#allocation10], 144
    %776 = vst [vmem:[%s775] sm:$0xff] %v774
    %777 = vst [vmem:[%s775 + $0x8] sm:$0xff] %v771
    %v778 = vmul.f32 %v719, 0.9
    %v779 = vadd.f32 %v778, %v167
    %v780 = vsub.f32 %v779, %v722
    %vm781 = vcmp.gt.f32.partialorder %v780, 1.0
    %v782 = vsel %vm781, 1, 0
    %v783 = vcvt.s32.f32 %v782
    %784 = vmatpush.msra.mxu0 %v120
    %785 = vmatpush.msra.mxu0 %v119
    %786 = vmatpush.msra.mxu0 %v118
    %787 = vmatpush.msra.mxu0 %v117
    %788 = vmatpush.msra.mxu0 %v116
    %789 = vmatpush.msra.mxu0 %v115
    %790 = vmatpush.msra.mxu0 %v114
    %791 = vmatpush.msra.mxu0 %v113
    %792 = vmatpush.msra.mxu0 %v112
    %793 = vmatpush.msra.mxu0 %v111
    %794 = vmatpush.msra.mxu0 %v110
    %795 = vmatpush.msra.mxu0 %v109
    %796 = vmatpush.msra.mxu0 %v108
    %797 = vmatpush.msra.mxu0 %v107
    %798 = vmatpush.msra.mxu0 %v106
    %799 = vmatpush.msra.mxu0 %v105
    %800 = vmatmul.f32.gmra.mxu0 %v783
    %v801 = vpop.f32.mrf.mxu0
    %v802 = vadd.f32 %v143, %v801
    %803 = vdwg.mxu0
    %v804 = vmul.f32 %v745, 0.9
    %v805 = vadd.f32 %v804, %v802
    %v806 = vsub.f32 %v805, %v748
    %vm807 = vcmp.gt.f32.partialorder %v806, 1.0
    %v808 = vsel %vm807, 1, 0
    %v809 = vcvt.s32.f32 %v808
    %810 = vmatpush.msra.mxu0 %v136
    %811 = vmatpush.msra.mxu0 %v135
    %812 = vmatpush.msra.mxu0 %v134
    %813 = vmatpush.msra.mxu0 %v133
    %814 = vmatpush.msra.mxu0 %v132
    %815 = vmatpush.msra.mxu0 %v131
    %816 = vmatpush.msra.mxu0 %v130
    %817 = vmatpush.msra.mxu0 %v129
    %818 = vmatpush.msra.mxu0 %v128
    %819 = vmatpush.msra.mxu0 %v127
    %820 = vmatpush.msra.mxu0 %v126
    %821 = vmatpush.msra.mxu0 %v125
    %822 = vmatpush.msra.mxu0 %v124
    %823 = vmatpush.msra.mxu0 %v123
    %824 = vmatpush.msra.mxu0 %v122
    %825 = vmatpush.msra.mxu0 %v121
    %826 = vmatmul.f32.gmra.mxu0 %v809
    %v827 = vpop.f32.mrf.mxu0
    %v828 = vadd.f32 %v147, %v827
    %829 = vdwg.mxu0
    %v830 = vmul.f32 %v771, 0.9
    %v831 = vadd.f32 %v830, %v828
    %v832 = vsub.f32 %v831, %v774
    %vm833 = vcmp.gt.f32.partialorder %v832, 1.0
    %v834 = vsel %vm833, 1, 0
    %v835 = vcvt.s32.f32 %v834
    %s836 = scalar_lea.vmem [#allocation10], 160
    %837 = vst [vmem:[%s836] sm:$0xff] %v835
    %838 = vst [vmem:[%s836 + $0x8] sm:$0xff] %v832
    %v839 = vmul.f32 %v780, 0.9
    %v840 = vadd.f32 %v839, %v167
    %v841 = vsub.f32 %v840, %v783
    %vm842 = vcmp.gt.f32.partialorder %v841, 1.0
    %v843 = vsel %vm842, 1, 0
    %v844 = vcvt.s32.f32 %v843
    %845 = vmatpush.msra.mxu0 %v120
    %846 = vmatpush.msra.mxu0 %v119
    %847 = vmatpush.msra.mxu0 %v118
    %848 = vmatpush.msra.mxu0 %v117
    %849 = vmatpush.msra.mxu0 %v116
    %850 = vmatpush.msra.mxu0 %v115
    %851 = vmatpush.msra.mxu0 %v114
    %852 = vmatpush.msra.mxu0 %v113
    %853 = vmatpush.msra.mxu0 %v112
    %854 = vmatpush.msra.mxu0 %v111
    %855 = vmatpush.msra.mxu0 %v110
    %856 = vmatpush.msra.mxu0 %v109
    %857 = vmatpush.msra.mxu0 %v108
    %858 = vmatpush.msra.mxu0 %v107
    %859 = vmatpush.msra.mxu0 %v106
    %860 = vmatpush.msra.mxu0 %v105
    %861 = vmatmul.f32.gmra.mxu0 %v844
    %v862 = vpop.f32.mrf.mxu0
    %v863 = vadd.f32 %v143, %v862
    %864 = vdwg.mxu0
    %v865 = vmul.f32 %v806, 0.9
    %v866 = vadd.f32 %v865, %v863
    %v867 = vsub.f32 %v866, %v809
    %vm868 = vcmp.gt.f32.partialorder %v867, 1.0
    %v869 = vsel %vm868, 1, 0
    %v870 = vcvt.s32.f32 %v869
    %871 = vmatpush.msra.mxu0 %v136
    %872 = vmatpush.msra.mxu0 %v135
    %873 = vmatpush.msra.mxu0 %v134
    %874 = vmatpush.msra.mxu0 %v133
    %875 = vmatpush.msra.mxu0 %v132
    %876 = vmatpush.msra.mxu0 %v131
    %877 = vmatpush.msra.mxu0 %v130
    %878 = vmatpush.msra.mxu0 %v129
    %879 = vmatpush.msra.mxu0 %v128
    %880 = vmatpush.msra.mxu0 %v127
    %881 = vmatpush.msra.mxu0 %v126
    %882 = vmatpush.msra.mxu0 %v125
    %883 = vmatpush.msra.mxu0 %v124
    %884 = vmatpush.msra.mxu0 %v123
    %885 = vmatpush.msra.mxu0 %v122
    %886 = vmatpush.msra.mxu0 %v121
    %887 = vmatmul.f32.gmra.mxu0 %v870
    %v888 = vpop.f32.mrf.mxu0
    %v889 = vadd.f32 %v147, %v888
    %890 = vdwg.mxu0
    %v891 = vmul.f32 %v832, 0.9
    %v892 = vadd.f32 %v891, %v889
    %v893 = vsub.f32 %v892, %v835
    %vm894 = vcmp.gt.f32.partialorder %v893, 1.0
    %v895 = vsel %vm894, 1, 0
    %v896 = vcvt.s32.f32 %v895
    %s897 = scalar_lea.vmem [#allocation10], 176
    %898 = vst [vmem:[%s897] sm:$0xff] %v896
    %899 = vst [vmem:[%s897 + $0x8] sm:$0xff] %v893
    %v900 = vmul.f32 %v841, 0.9
    %v901 = vadd.f32 %v900, %v167
    %v902 = vsub.f32 %v901, %v844
    %vm903 = vcmp.gt.f32.partialorder %v902, 1.0
    %v904 = vsel %vm903, 1, 0
    %v905 = vcvt.s32.f32 %v904
    %906 = vmatpush.msra.mxu0 %v120
    %907 = vmatpush.msra.mxu0 %v119
    %908 = vmatpush.msra.mxu0 %v118
    %909 = vmatpush.msra.mxu0 %v117
    %910 = vmatpush.msra.mxu0 %v116
    %911 = vmatpush.msra.mxu0 %v115
    %912 = vmatpush.msra.mxu0 %v114
    %913 = vmatpush.msra.mxu0 %v113
    %914 = vmatpush.msra.mxu0 %v112
    %915 = vmatpush.msra.mxu0 %v111
    %916 = vmatpush.msra.mxu0 %v110
    %917 = vmatpush.msra.mxu0 %v109
    %918 = vmatpush.msra.mxu0 %v108
    %919 = vmatpush.msra.mxu0 %v107
    %920 = vmatpush.msra.mxu0 %v106
    %921 = vmatpush.msra.mxu0 %v105
    %922 = vmatmul.f32.gmra.mxu0 %v905
    %v923 = vpop.f32.mrf.mxu0
    %v924 = vadd.f32 %v143, %v923
    %925 = vdwg.mxu0
    %v926 = vmul.f32 %v867, 0.9
    %v927 = vadd.f32 %v926, %v924
    %v928 = vsub.f32 %v927, %v870
    %vm929 = vcmp.gt.f32.partialorder %v928, 1.0
    %v930 = vsel %vm929, 1, 0
    %v931 = vcvt.s32.f32 %v930
    %932 = vmatpush.msra.mxu0 %v136
    %933 = vmatpush.msra.mxu0 %v135
    %934 = vmatpush.msra.mxu0 %v134
    %935 = vmatpush.msra.mxu0 %v133
    %936 = vmatpush.msra.mxu0 %v132
    %937 = vmatpush.msra.mxu0 %v131
    %938 = vmatpush.msra.mxu0 %v130
    %939 = vmatpush.msra.mxu0 %v129
    %940 = vmatpush.msra.mxu0 %v128
    %941 = vmatpush.msra.mxu0 %v127
    %942 = vmatpush.msra.mxu0 %v126
    %943 = vmatpush.msra.mxu0 %v125
    %944 = vmatpush.msra.mxu0 %v124
    %945 = vmatpush.msra.mxu0 %v123
    %946 = vmatpush.msra.mxu0 %v122
    %947 = vmatpush.msra.mxu0 %v121
    %948 = vmatmul.f32.gmra.mxu0 %v931
    %v949 = vpop.f32.mrf.mxu0
    %v950 = vadd.f32 %v147, %v949
    %951 = vdwg.mxu0
    %v952 = vmul.f32 %v893, 0.9
    %v953 = vadd.f32 %v952, %v950
    %v954 = vsub.f32 %v953, %v896
    %vm955 = vcmp.gt.f32.partialorder %v954, 1.0
    %v956 = vsel %vm955, 1, 0
    %v957 = vcvt.s32.f32 %v956
    %s958 = scalar_lea.vmem [#allocation10], 192
    %959 = vst [vmem:[%s958] sm:$0xff] %v957
    %960 = vst [vmem:[%s958 + $0x8] sm:$0xff] %v954
    %v961 = vmul.f32 %v902, 0.9
    %v962 = vadd.f32 %v961, %v167
    %v963 = vsub.f32 %v962, %v905
    %vm964 = vcmp.gt.f32.partialorder %v963, 1.0
    %v965 = vsel %vm964, 1, 0
    %v966 = vcvt.s32.f32 %v965
    %967 = vmatpush.msra.mxu0 %v120
    %968 = vmatpush.msra.mxu0 %v119
    %969 = vmatpush.msra.mxu0 %v118
    %970 = vmatpush.msra.mxu0 %v117
    %971 = vmatpush.msra.mxu0 %v116
    %972 = vmatpush.msra.mxu0 %v115
    %973 = vmatpush.msra.mxu0 %v114
    %974 = vmatpush.msra.mxu0 %v113
    %975 = vmatpush.msra.mxu0 %v112
    %976 = vmatpush.msra.mxu0 %v111
    %977 = vmatpush.msra.mxu0 %v110
    %978 = vmatpush.msra.mxu0 %v109
    %979 = vmatpush.msra.mxu0 %v108
    %980 = vmatpush.msra.mxu0 %v107
    %981 = vmatpush.msra.mxu0 %v106
    %982 = vmatpush.msra.mxu0 %v105
    %983 = vmatmul.f32.gmra.mxu0 %v966
    %v984 = vpop.f32.mrf.mxu0
    %v985 = vadd.f32 %v143, %v984
    %986 = vdwg.mxu0
    %v987 = vmul.f32 %v928, 0.9
    %v988 = vadd.f32 %v987, %v985
    %v989 = vsub.f32 %v988, %v931
    %vm990 = vcmp.gt.f32.partialorder %v989, 1.0
    %v991 = vsel %vm990, 1, 0
    %v992 = vcvt.s32.f32 %v991
    %993 = vmatpush.msra.mxu0 %v136
    %994 = vmatpush.msra.mxu0 %v135
    %995 = vmatpush.msra.mxu0 %v134
    %996 = vmatpush.msra.mxu0 %v133
    %997 = vmatpush.msra.mxu0 %v132
    %998 = vmatpush.msra.mxu0 %v131
    %999 = vmatpush.msra.mxu0 %v130
    %1000 = vmatpush.msra.mxu0 %v129
    %1001 = vmatpush.msra.mxu0 %v128
    %1002 = vmatpush.msra.mxu0 %v127
    %1003 = vmatpush.msra.mxu0 %v126
    %1004 = vmatpush.msra.mxu0 %v125
    %1005 = vmatpush.msra.mxu0 %v124
    %1006 = vmatpush.msra.mxu0 %v123
    %1007 = vmatpush.msra.mxu0 %v122
    %1008 = vmatpush.msra.mxu0 %v121
    %1009 = vmatmul.f32.gmra.mxu0 %v992
    %v1010 = vpop.f32.mrf.mxu0
    %v1011 = vadd.f32 %v147, %v1010
    %1012 = vdwg.mxu0
    %v1013 = vmul.f32 %v954, 0.9
    %v1014 = vadd.f32 %v1013, %v1011
    %v1015 = vsub.f32 %v1014, %v957
    %vm1016 = vcmp.gt.f32.partialorder %v1015, 1.0
    %v1017 = vsel %vm1016, 1, 0
    %v1018 = vcvt.s32.f32 %v1017
    %s1019 = scalar_lea.vmem [#allocation10], 208
    %1020 = vst [vmem:[%s1019] sm:$0xff] %v1018
    %1021 = vst [vmem:[%s1019 + $0x8] sm:$0xff] %v1015
    %v1022 = vmul.f32 %v963, 0.9
    %v1023 = vadd.f32 %v1022, %v167
    %v1024 = vsub.f32 %v1023, %v966
    %vm1025 = vcmp.gt.f32.partialorder %v1024, 1.0
    %v1026 = vsel %vm1025, 1, 0
    %v1027 = vcvt.s32.f32 %v1026
    %1028 = vmatpush.msra.mxu0 %v120
    %1029 = vmatpush.msra.mxu0 %v119
    %1030 = vmatpush.msra.mxu0 %v118
    %1031 = vmatpush.msra.mxu0 %v117
    %1032 = vmatpush.msra.mxu0 %v116
    %1033 = vmatpush.msra.mxu0 %v115
    %1034 = vmatpush.msra.mxu0 %v114
    %1035 = vmatpush.msra.mxu0 %v113
    %1036 = vmatpush.msra.mxu0 %v112
    %1037 = vmatpush.msra.mxu0 %v111
    %1038 = vmatpush.msra.mxu0 %v110
    %1039 = vmatpush.msra.mxu0 %v109
    %1040 = vmatpush.msra.mxu0 %v108
    %1041 = vmatpush.msra.mxu0 %v107
    %1042 = vmatpush.msra.mxu0 %v106
    %1043 = vmatpush.msra.mxu0 %v105
    %1044 = vmatmul.f32.gmra.mxu0 %v1027
    %v1045 = vpop.f32.mrf.mxu0
    %v1046 = vadd.f32 %v143, %v1045
    %1047 = vdwg.mxu0
    %v1048 = vmul.f32 %v989, 0.9
    %v1049 = vadd.f32 %v1048, %v1046
    %v1050 = vsub.f32 %v1049, %v992
    %vm1051 = vcmp.gt.f32.partialorder %v1050, 1.0
    %v1052 = vsel %vm1051, 1, 0
    %v1053 = vcvt.s32.f32 %v1052
    %1054 = vmatpush.msra.mxu0 %v136
    %1055 = vmatpush.msra.mxu0 %v135
    %1056 = vmatpush.msra.mxu0 %v134
    %1057 = vmatpush.msra.mxu0 %v133
    %1058 = vmatpush.msra.mxu0 %v132
    %1059 = vmatpush.msra.mxu0 %v131
    %1060 = vmatpush.msra.mxu0 %v130
    %1061 = vmatpush.msra.mxu0 %v129
    %1062 = vmatpush.msra.mxu0 %v128
    %1063 = vmatpush.msra.mxu0 %v127
    %1064 = vmatpush.msra.mxu0 %v126
    %1065 = vmatpush.msra.mxu0 %v125
    %1066 = vmatpush.msra.mxu0 %v124
    %1067 = vmatpush.msra.mxu0 %v123
    %1068 = vmatpush.msra.mxu0 %v122
    %1069 = vmatpush.msra.mxu0 %v121
    %1070 = vmatmul.f32.gmra.mxu0 %v1053
    %v1071 = vpop.f32.mrf.mxu0
    %v1072 = vadd.f32 %v147, %v1071
    %1073 = vdwg.mxu0
    %v1074 = vmul.f32 %v1015, 0.9
    %v1075 = vadd.f32 %v1074, %v1072
    %v1076 = vsub.f32 %v1075, %v1018
    %vm1077 = vcmp.gt.f32.partialorder %v1076, 1.0
    %v1078 = vsel %vm1077, 1, 0
    %v1079 = vcvt.s32.f32 %v1078
    %s1080 = scalar_lea.vmem [#allocation10], 224
    %1081 = vst [vmem:[%s1080] sm:$0xff] %v1079
    %1082 = vst [vmem:[%s1080 + $0x8] sm:$0xff] %v1076
    %v1083 = vmul.f32 %v1024, 0.9
    %v1084 = vadd.f32 %v1083, %v167
    %v1085 = vsub.f32 %v1084, %v1027
    %vm1086 = vcmp.gt.f32.partialorder %v1085, 1.0
    %v1087 = vsel %vm1086, 1, 0
    %v1088 = vcvt.s32.f32 %v1087
    %1089 = vmatpush.msra.mxu0 %v120
    %1090 = vmatpush.msra.mxu0 %v119
    %1091 = vmatpush.msra.mxu0 %v118
    %1092 = vmatpush.msra.mxu0 %v117
    %1093 = vmatpush.msra.mxu0 %v116
    %1094 = vmatpush.msra.mxu0 %v115
    %1095 = vmatpush.msra.mxu0 %v114
    %1096 = vmatpush.msra.mxu0 %v113
    %1097 = vmatpush.msra.mxu0 %v112
    %1098 = vmatpush.msra.mxu0 %v111
    %1099 = vmatpush.msra.mxu0 %v110
    %1100 = vmatpush.msra.mxu0 %v109
    %1101 = vmatpush.msra.mxu0 %v108
    %1102 = vmatpush.msra.mxu0 %v107
    %1103 = vmatpush.msra.mxu0 %v106
    %1104 = vmatpush.msra.mxu0 %v105
    %1105 = vmatmul.f32.gmra.mxu0 %v1088
    %v1106 = vpop.f32.mrf.mxu0
    %v1107 = vadd.f32 %v143, %v1106
    %1108 = vdwg.mxu0
    %v1109 = vmul.f32 %v1050, 0.9
    %v1110 = vadd.f32 %v1109, %v1107
    %v1111 = vsub.f32 %v1110, %v1053
    %vm1112 = vcmp.gt.f32.partialorder %v1111, 1.0
    %v1113 = vsel %vm1112, 1, 0
    %v1114 = vcvt.s32.f32 %v1113
    %1115 = vmatpush.msra.mxu0 %v136
    %1116 = vmatpush.msra.mxu0 %v135
    %1117 = vmatpush.msra.mxu0 %v134
    %1118 = vmatpush.msra.mxu0 %v133
    %1119 = vmatpush.msra.mxu0 %v132
    %1120 = vmatpush.msra.mxu0 %v131
    %1121 = vmatpush.msra.mxu0 %v130
    %1122 = vmatpush.msra.mxu0 %v129
    %1123 = vmatpush.msra.mxu0 %v128
    %1124 = vmatpush.msra.mxu0 %v127
    %1125 = vmatpush.msra.mxu0 %v126
    %1126 = vmatpush.msra.mxu0 %v125
    %1127 = vmatpush.msra.mxu0 %v124
    %1128 = vmatpush.msra.mxu0 %v123
    %1129 = vmatpush.msra.mxu0 %v122
    %1130 = vmatpush.msra.mxu0 %v121
    %1131 = vmatmul.f32.gmra.mxu0 %v1114
    %v1132 = vpop.f32.mrf.mxu0
    %v1133 = vadd.f32 %v147, %v1132
    %1134 = vdwg.mxu0
    %v1135 = vmul.f32 %v1076, 0.9
    %v1136 = vadd.f32 %v1135, %v1133
    %v1137 = vsub.f32 %v1136, %v1079
    %vm1138 = vcmp.gt.f32.partialorder %v1137, 1.0
    %v1139 = vsel %vm1138, 1, 0
    %v1140 = vcvt.s32.f32 %v1139
    %s1141 = scalar_lea.vmem [#allocation10], 240
    %1142 = vst [vmem:[%s1141] sm:$0xff] %v1140
    %1143 = vst [vmem:[%s1141 + $0x8] sm:$0xff] %v1137
    %v1144 = vmul.f32 %v1085, 0.9
    %v1145 = vadd.f32 %v1144, %v167
    %v1146 = vsub.f32 %v1145, %v1088
    %vm1147 = vcmp.gt.f32.partialorder %v1146, 1.0
    %v1148 = vsel %vm1147, 1, 0
    %v1149 = vcvt.s32.f32 %v1148
    %1150 = vmatpush.msra.mxu0 %v120
    %1151 = vmatpush.msra.mxu0 %v119
    %1152 = vmatpush.msra.mxu0 %v118
    %1153 = vmatpush.msra.mxu0 %v117
    %1154 = vmatpush.msra.mxu0 %v116
    %1155 = vmatpush.msra.mxu0 %v115
    %1156 = vmatpush.msra.mxu0 %v114
    %1157 = vmatpush.msra.mxu0 %v113
    %1158 = vmatpush.msra.mxu0 %v112
    %1159 = vmatpush.msra.mxu0 %v111
    %1160 = vmatpush.msra.mxu0 %v110
    %1161 = vmatpush.msra.mxu0 %v109
    %1162 = vmatpush.msra.mxu0 %v108
    %1163 = vmatpush.msra.mxu0 %v107
    %1164 = vmatpush.msra.mxu0 %v106
    %1165 = vmatpush.msra.mxu0 %v105
    %1166 = vmatmul.f32.gmra.mxu0 %v1149
    %v1167 = vpop.f32.mrf.mxu0
    %v1168 = vadd.f32 %v143, %v1167
    %1169 = vdwg.mxu0
    %v1170 = vmul.f32 %v1111, 0.9
    %v1171 = vadd.f32 %v1170, %v1168
    %v1172 = vsub.f32 %v1171, %v1114
    %vm1173 = vcmp.gt.f32.partialorder %v1172, 1.0
    %v1174 = vsel %vm1173, 1, 0
    %v1175 = vcvt.s32.f32 %v1174
    %1176 = vmatpush.msra.mxu0 %v136
    %1177 = vmatpush.msra.mxu0 %v135
    %1178 = vmatpush.msra.mxu0 %v134
    %1179 = vmatpush.msra.mxu0 %v133
    %1180 = vmatpush.msra.mxu0 %v132
    %1181 = vmatpush.msra.mxu0 %v131
    %1182 = vmatpush.msra.mxu0 %v130
    %1183 = vmatpush.msra.mxu0 %v129
    %1184 = vmatpush.msra.mxu0 %v128
    %1185 = vmatpush.msra.mxu0 %v127
    %1186 = vmatpush.msra.mxu0 %v126
    %1187 = vmatpush.msra.mxu0 %v125
    %1188 = vmatpush.msra.mxu0 %v124
    %1189 = vmatpush.msra.mxu0 %v123
    %1190 = vmatpush.msra.mxu0 %v122
    %1191 = vmatpush.msra.mxu0 %v121
    %1192 = vmatmul.f32.gmra.mxu0 %v1175
    %v1193 = vpop.f32.mrf.mxu0
    %v1194 = vadd.f32 %v147, %v1193
    %1195 = vdwg.mxu0
    %v1196 = vmul.f32 %v1137, 0.9
    %v1197 = vadd.f32 %v1196, %v1194
    %v1198 = vsub.f32 %v1197, %v1140
    %vm1199 = vcmp.gt.f32.partialorder %v1198, 1.0
    %v1200 = vsel %vm1199, 1, 0
    %v1201 = vcvt.s32.f32 %v1200
    %s1202 = scalar_lea.vmem [#allocation10], 256
    %1203 = vst [vmem:[%s1202] sm:$0xff] %v1201
    %1204 = vst [vmem:[%s1202 + $0x8] sm:$0xff] %v1198
    %v1205 = vmul.f32 %v1146, 0.9
    %v1206 = vadd.f32 %v1205, %v167
    %v1207 = vsub.f32 %v1206, %v1149
    %vm1208 = vcmp.gt.f32.partialorder %v1207, 1.0
    %v1209 = vsel %vm1208, 1, 0
    %v1210 = vcvt.s32.f32 %v1209
    %1211 = vmatpush.msra.mxu0 %v120
    %1212 = vmatpush.msra.mxu0 %v119
    %1213 = vmatpush.msra.mxu0 %v118
    %1214 = vmatpush.msra.mxu0 %v117
    %1215 = vmatpush.msra.mxu0 %v116
    %1216 = vmatpush.msra.mxu0 %v115
    %1217 = vmatpush.msra.mxu0 %v114
    %1218 = vmatpush.msra.mxu0 %v113
    %1219 = vmatpush.msra.mxu0 %v112
    %1220 = vmatpush.msra.mxu0 %v111
    %1221 = vmatpush.msra.mxu0 %v110
    %1222 = vmatpush.msra.mxu0 %v109
    %1223 = vmatpush.msra.mxu0 %v108
    %1224 = vmatpush.msra.mxu0 %v107
    %1225 = vmatpush.msra.mxu0 %v106
    %1226 = vmatpush.msra.mxu0 %v105
    %1227 = vmatmul.f32.gmra.mxu0 %v1210
    %v1228 = vpop.f32.mrf.mxu0
    %v1229 = vadd.f32 %v143, %v1228
    %1230 = vdwg.mxu0
    %v1231 = vmul.f32 %v1172, 0.9
    %v1232 = vadd.f32 %v1231, %v1229
    %v1233 = vsub.f32 %v1232, %v1175
    %vm1234 = vcmp.gt.f32.partialorder %v1233, 1.0
    %v1235 = vsel %vm1234, 1, 0
    %v1236 = vcvt.s32.f32 %v1235
    %1237 = vmatpush.msra.mxu0 %v136
    %1238 = vmatpush.msra.mxu0 %v135
    %1239 = vmatpush.msra.mxu0 %v134
    %1240 = vmatpush.msra.mxu0 %v133
    %1241 = vmatpush.msra.mxu0 %v132
    %1242 = vmatpush.msra.mxu0 %v131
    %1243 = vmatpush.msra.mxu0 %v130
    %1244 = vmatpush.msra.mxu0 %v129
    %1245 = vmatpush.msra.mxu0 %v128
    %1246 = vmatpush.msra.mxu0 %v127
    %1247 = vmatpush.msra.mxu0 %v126
    %1248 = vmatpush.msra.mxu0 %v125
    %1249 = vmatpush.msra.mxu0 %v124
    %1250 = vmatpush.msra.mxu0 %v123
    %1251 = vmatpush.msra.mxu0 %v122
    %1252 = vmatpush.msra.mxu0 %v121
    %1253 = vmatmul.f32.gmra.mxu0 %v1236
    %v1254 = vpop.f32.mrf.mxu0
    %v1255 = vadd.f32 %v147, %v1254
    %1256 = vdwg.mxu0
    %v1257 = vmul.f32 %v1198, 0.9
    %v1258 = vadd.f32 %v1257, %v1255
    %v1259 = vsub.f32 %v1258, %v1201
    %vm1260 = vcmp.gt.f32.partialorder %v1259, 1.0
    %v1261 = vsel %vm1260, 1, 0
    %v1262 = vcvt.s32.f32 %v1261
    %s1263 = scalar_lea.vmem [#allocation10], 272
    %1264 = vst [vmem:[%s1263] sm:$0xff] %v1262
    %1265 = vst [vmem:[%s1263 + $0x8] sm:$0xff] %v1259
    %v1266 = vmul.f32 %v1207, 0.9
    %v1267 = vadd.f32 %v1266, %v167
    %v1268 = vsub.f32 %v1267, %v1210
    %vm1269 = vcmp.gt.f32.partialorder %v1268, 1.0
    %v1270 = vsel %vm1269, 1, 0
    %v1271 = vcvt.s32.f32 %v1270
    %1272 = vmatpush.msra.mxu0 %v120
    %1273 = vmatpush.msra.mxu0 %v119
    %1274 = vmatpush.msra.mxu0 %v118
    %1275 = vmatpush.msra.mxu0 %v117
    %1276 = vmatpush.msra.mxu0 %v116
    %1277 = vmatpush.msra.mxu0 %v115
    %1278 = vmatpush.msra.mxu0 %v114
    %1279 = vmatpush.msra.mxu0 %v113
    %1280 = vmatpush.msra.mxu0 %v112
    %1281 = vmatpush.msra.mxu0 %v111
    %1282 = vmatpush.msra.mxu0 %v110
    %1283 = vmatpush.msra.mxu0 %v109
    %1284 = vmatpush.msra.mxu0 %v108
    %1285 = vmatpush.msra.mxu0 %v107
    %1286 = vmatpush.msra.mxu0 %v106
    %1287 = vmatpush.msra.mxu0 %v105
    %1288 = vmatmul.f32.gmra.mxu0 %v1271
    %v1289 = vpop.f32.mrf.mxu0
    %v1290 = vadd.f32 %v143, %v1289
    %1291 = vdwg.mxu0
    %v1292 = vmul.f32 %v1233, 0.9
    %v1293 = vadd.f32 %v1292, %v1290
    %v1294 = vsub.f32 %v1293, %v1236
    %vm1295 = vcmp.gt.f32.partialorder %v1294, 1.0
    %v1296 = vsel %vm1295, 1, 0
    %v1297 = vcvt.s32.f32 %v1296
    %1298 = vmatpush.msra.mxu0 %v136
    %1299 = vmatpush.msra.mxu0 %v135
    %1300 = vmatpush.msra.mxu0 %v134
    %1301 = vmatpush.msra.mxu0 %v133
    %1302 = vmatpush.msra.mxu0 %v132
    %1303 = vmatpush.msra.mxu0 %v131
    %1304 = vmatpush.msra.mxu0 %v130
    %1305 = vmatpush.msra.mxu0 %v129
    %1306 = vmatpush.msra.mxu0 %v128
    %1307 = vmatpush.msra.mxu0 %v127
    %1308 = vmatpush.msra.mxu0 %v126
    %1309 = vmatpush.msra.mxu0 %v125
    %1310 = vmatpush.msra.mxu0 %v124
    %1311 = vmatpush.msra.mxu0 %v123
    %1312 = vmatpush.msra.mxu0 %v122
    %1313 = vmatpush.msra.mxu0 %v121
    %1314 = vmatmul.f32.gmra.mxu0 %v1297
    %v1315 = vpop.f32.mrf.mxu0
    %v1316 = vadd.f32 %v147, %v1315
    %1317 = vdwg.mxu0
    %v1318 = vmul.f32 %v1259, 0.9
    %v1319 = vadd.f32 %v1318, %v1316
    %v1320 = vsub.f32 %v1319, %v1262
    %vm1321 = vcmp.gt.f32.partialorder %v1320, 1.0
    %v1322 = vsel %vm1321, 1, 0
    %v1323 = vcvt.s32.f32 %v1322
    %s1324 = scalar_lea.vmem [#allocation10], 288
    %1325 = vst [vmem:[%s1324] sm:$0xff] %v1323
    %1326 = vst [vmem:[%s1324 + $0x8] sm:$0xff] %v1320
    %v1327 = vmul.f32 %v1268, 0.9
    %v1328 = vadd.f32 %v1327, %v167
    %v1329 = vsub.f32 %v1328, %v1271
    %vm1330 = vcmp.gt.f32.partialorder %v1329, 1.0
    %v1331 = vsel %vm1330, 1, 0
    %v1332 = vcvt.s32.f32 %v1331
    %1333 = vmatpush.msra.mxu0 %v120
    %1334 = vmatpush.msra.mxu0 %v119
    %1335 = vmatpush.msra.mxu0 %v118
    %1336 = vmatpush.msra.mxu0 %v117
    %1337 = vmatpush.msra.mxu0 %v116
    %1338 = vmatpush.msra.mxu0 %v115
    %1339 = vmatpush.msra.mxu0 %v114
    %1340 = vmatpush.msra.mxu0 %v113
    %1341 = vmatpush.msra.mxu0 %v112
    %1342 = vmatpush.msra.mxu0 %v111
    %1343 = vmatpush.msra.mxu0 %v110
    %1344 = vmatpush.msra.mxu0 %v109
    %1345 = vmatpush.msra.mxu0 %v108
    %1346 = vmatpush.msra.mxu0 %v107
    %1347 = vmatpush.msra.mxu0 %v106
    %1348 = vmatpush.msra.mxu0 %v105
    %1349 = vmatmul.f32.gmra.mxu0 %v1332
    %v1350 = vpop.f32.mrf.mxu0
    %v1351 = vadd.f32 %v143, %v1350
    %1352 = vdwg.mxu0
    %v1353 = vmul.f32 %v1294, 0.9
    %v1354 = vadd.f32 %v1353, %v1351
    %v1355 = vsub.f32 %v1354, %v1297
    %vm1356 = vcmp.gt.f32.partialorder %v1355, 1.0
    %v1357 = vsel %vm1356, 1, 0
    %v1358 = vcvt.s32.f32 %v1357
    %1359 = vmatpush.msra.mxu0 %v136
    %1360 = vmatpush.msra.mxu0 %v135
    %1361 = vmatpush.msra.mxu0 %v134
    %1362 = vmatpush.msra.mxu0 %v133
    %1363 = vmatpush.msra.mxu0 %v132
    %1364 = vmatpush.msra.mxu0 %v131
    %1365 = vmatpush.msra.mxu0 %v130
    %1366 = vmatpush.msra.mxu0 %v129
    %1367 = vmatpush.msra.mxu0 %v128
    %1368 = vmatpush.msra.mxu0 %v127
    %1369 = vmatpush.msra.mxu0 %v126
    %1370 = vmatpush.msra.mxu0 %v125
    %1371 = vmatpush.msra.mxu0 %v124
    %1372 = vmatpush.msra.mxu0 %v123
    %1373 = vmatpush.msra.mxu0 %v122
    %1374 = vmatpush.msra.mxu0 %v121
    %1375 = vmatmul.f32.gmra.mxu0 %v1358
    %v1376 = vpop.f32.mrf.mxu0
    %v1377 = vadd.f32 %v147, %v1376
    %1378 = vdwg.mxu0
    %v1379 = vmul.f32 %v1320, 0.9
    %v1380 = vadd.f32 %v1379, %v1377
    %v1381 = vsub.f32 %v1380, %v1323
    %vm1382 = vcmp.gt.f32.partialorder %v1381, 1.0
    %v1383 = vsel %vm1382, 1, 0
    %v1384 = vcvt.s32.f32 %v1383
    %s1385 = scalar_lea.vmem [#allocation10], 304
    %1386 = vst [vmem:[%s1385] sm:$0xff] %v1384
    %1387 = vst [vmem:[%s1385 + $0x8] sm:$0xff] %v1381
    %v1388 = vmul.f32 %v1329, 0.9
    %v1389 = vadd.f32 %v1388, %v167
    %v1390 = vsub.f32 %v1389, %v1332
    %vm1391 = vcmp.gt.f32.partialorder %v1390, 1.0
    %v1392 = vsel %vm1391, 1, 0
    %v1393 = vcvt.s32.f32 %v1392
    %1394 = vmatpush.msra.mxu0 %v120
    %1395 = vmatpush.msra.mxu0 %v119
    %1396 = vmatpush.msra.mxu0 %v118
    %1397 = vmatpush.msra.mxu0 %v117
    %1398 = vmatpush.msra.mxu0 %v116
    %1399 = vmatpush.msra.mxu0 %v115
    %1400 = vmatpush.msra.mxu0 %v114
    %1401 = vmatpush.msra.mxu0 %v113
    %1402 = vmatpush.msra.mxu0 %v112
    %1403 = vmatpush.msra.mxu0 %v111
    %1404 = vmatpush.msra.mxu0 %v110
    %1405 = vmatpush.msra.mxu0 %v109
    %1406 = vmatpush.msra.mxu0 %v108
    %1407 = vmatpush.msra.mxu0 %v107
    %1408 = vmatpush.msra.mxu0 %v106
    %1409 = vmatpush.msra.mxu0 %v105
    %1410 = vmatmul.f32.gmra.mxu0 %v1393
    %v1411 = vpop.f32.mrf.mxu0
    %v1412 = vadd.f32 %v143, %v1411
    %1413 = vdwg.mxu0
    %v1414 = vmul.f32 %v1355, 0.9
    %v1415 = vadd.f32 %v1414, %v1412
    %v1416 = vsub.f32 %v1415, %v1358
    %vm1417 = vcmp.gt.f32.partialorder %v1416, 1.0
    %v1418 = vsel %vm1417, 1, 0
    %v1419 = vcvt.s32.f32 %v1418
    %1420 = vmatpush.msra.mxu0 %v136
    %1421 = vmatpush.msra.mxu0 %v135
    %1422 = vmatpush.msra.mxu0 %v134
    %1423 = vmatpush.msra.mxu0 %v133
    %1424 = vmatpush.msra.mxu0 %v132
    %1425 = vmatpush.msra.mxu0 %v131
    %1426 = vmatpush.msra.mxu0 %v130
    %1427 = vmatpush.msra.mxu0 %v129
    %1428 = vmatpush.msra.mxu0 %v128
    %1429 = vmatpush.msra.mxu0 %v127
    %1430 = vmatpush.msra.mxu0 %v126
    %1431 = vmatpush.msra.mxu0 %v125
    %1432 = vmatpush.msra.mxu0 %v124
    %1433 = vmatpush.msra.mxu0 %v123
    %1434 = vmatpush.msra.mxu0 %v122
    %1435 = vmatpush.msra.mxu0 %v121
    %1436 = vmatmul.f32.gmra.mxu0 %v1419
    %v1437 = vpop.f32.mrf.mxu0
    %v1438 = vadd.f32 %v147, %v1437
    %1439 = vdwg.mxu0
    %v1440 = vmul.f32 %v1381, 0.9
    %v1441 = vadd.f32 %v1440, %v1438
    %v1442 = vsub.f32 %v1441, %v1384
    %vm1443 = vcmp.gt.f32.partialorder %v1442, 1.0
    %v1444 = vsel %vm1443, 1, 0
    %v1445 = vcvt.s32.f32 %v1444
    %s1446 = scalar_lea.vmem [#allocation10], 320
    %1447 = vst [vmem:[%s1446] sm:$0xff] %v1445
    %1448 = vst [vmem:[%s1446 + $0x8] sm:$0xff] %v1442
    %v1449 = vmul.f32 %v1390, 0.9
    %v1450 = vadd.f32 %v1449, %v167
    %v1451 = vsub.f32 %v1450, %v1393
    %vm1452 = vcmp.gt.f32.partialorder %v1451, 1.0
    %v1453 = vsel %vm1452, 1, 0
    %v1454 = vcvt.s32.f32 %v1453
    %1455 = vmatpush.msra.mxu0 %v120
    %1456 = vmatpush.msra.mxu0 %v119
    %1457 = vmatpush.msra.mxu0 %v118
    %1458 = vmatpush.msra.mxu0 %v117
    %1459 = vmatpush.msra.mxu0 %v116
    %1460 = vmatpush.msra.mxu0 %v115
    %1461 = vmatpush.msra.mxu0 %v114
    %1462 = vmatpush.msra.mxu0 %v113
    %1463 = vmatpush.msra.mxu0 %v112
    %1464 = vmatpush.msra.mxu0 %v111
    %1465 = vmatpush.msra.mxu0 %v110
    %1466 = vmatpush.msra.mxu0 %v109
    %1467 = vmatpush.msra.mxu0 %v108
    %1468 = vmatpush.msra.mxu0 %v107
    %1469 = vmatpush.msra.mxu0 %v106
    %1470 = vmatpush.msra.mxu0 %v105
    %1471 = vmatmul.f32.gmra.mxu0 %v1454
    %v1472 = vpop.f32.mrf.mxu0
    %v1473 = vadd.f32 %v143, %v1472
    %1474 = vdwg.mxu0
    %v1475 = vmul.f32 %v1416, 0.9
    %v1476 = vadd.f32 %v1475, %v1473
    %v1477 = vsub.f32 %v1476, %v1419
    %vm1478 = vcmp.gt.f32.partialorder %v1477, 1.0
    %v1479 = vsel %vm1478, 1, 0
    %v1480 = vcvt.s32.f32 %v1479
    %1481 = vmatpush.msra.mxu0 %v136
    %1482 = vmatpush.msra.mxu0 %v135
    %1483 = vmatpush.msra.mxu0 %v134
    %1484 = vmatpush.msra.mxu0 %v133
    %1485 = vmatpush.msra.mxu0 %v132
    %1486 = vmatpush.msra.mxu0 %v131
    %1487 = vmatpush.msra.mxu0 %v130
    %1488 = vmatpush.msra.mxu0 %v129
    %1489 = vmatpush.msra.mxu0 %v128
    %1490 = vmatpush.msra.mxu0 %v127
    %1491 = vmatpush.msra.mxu0 %v126
    %1492 = vmatpush.msra.mxu0 %v125
    %1493 = vmatpush.msra.mxu0 %v124
    %1494 = vmatpush.msra.mxu0 %v123
    %1495 = vmatpush.msra.mxu0 %v122
    %1496 = vmatpush.msra.mxu0 %v121
    %1497 = vmatmul.f32.gmra.mxu0 %v1480
    %v1498 = vpop.f32.mrf.mxu0
    %v1499 = vadd.f32 %v147, %v1498
    %1500 = vdwg.mxu0
    %v1501 = vmul.f32 %v1442, 0.9
    %v1502 = vadd.f32 %v1501, %v1499
    %v1503 = vsub.f32 %v1502, %v1445
    %vm1504 = vcmp.gt.f32.partialorder %v1503, 1.0
    %v1505 = vsel %vm1504, 1, 0
    %v1506 = vcvt.s32.f32 %v1505
    %s1507 = scalar_lea.vmem [#allocation10], 336
    %1508 = vst [vmem:[%s1507] sm:$0xff] %v1506
    %1509 = vst [vmem:[%s1507 + $0x8] sm:$0xff] %v1503
    %v1510 = vmul.f32 %v1451, 0.9
    %v1511 = vadd.f32 %v1510, %v167
    %v1512 = vsub.f32 %v1511, %v1454
    %vm1513 = vcmp.gt.f32.partialorder %v1512, 1.0
    %v1514 = vsel %vm1513, 1, 0
    %v1515 = vcvt.s32.f32 %v1514
    %1516 = vmatpush.msra.mxu0 %v120
    %1517 = vmatpush.msra.mxu0 %v119
    %1518 = vmatpush.msra.mxu0 %v118
    %1519 = vmatpush.msra.mxu0 %v117
    %1520 = vmatpush.msra.mxu0 %v116
    %1521 = vmatpush.msra.mxu0 %v115
    %1522 = vmatpush.msra.mxu0 %v114
    %1523 = vmatpush.msra.mxu0 %v113
    %1524 = vmatpush.msra.mxu0 %v112
    %1525 = vmatpush.msra.mxu0 %v111
    %1526 = vmatpush.msra.mxu0 %v110
    %1527 = vmatpush.msra.mxu0 %v109
    %1528 = vmatpush.msra.mxu0 %v108
    %1529 = vmatpush.msra.mxu0 %v107
    %1530 = vmatpush.msra.mxu0 %v106
    %1531 = vmatpush.msra.mxu0 %v105
    %1532 = vmatmul.f32.gmra.mxu0 %v1515
    %v1533 = vpop.f32.mrf.mxu0
    %v1534 = vadd.f32 %v143, %v1533
    %1535 = vdwg.mxu0
    %v1536 = vmul.f32 %v1477, 0.9
    %v1537 = vadd.f32 %v1536, %v1534
    %v1538 = vsub.f32 %v1537, %v1480
    %vm1539 = vcmp.gt.f32.partialorder %v1538, 1.0
    %v1540 = vsel %vm1539, 1, 0
    %v1541 = vcvt.s32.f32 %v1540
    %1542 = vmatpush.msra.mxu0 %v136
    %1543 = vmatpush.msra.mxu0 %v135
    %1544 = vmatpush.msra.mxu0 %v134
    %1545 = vmatpush.msra.mxu0 %v133
    %1546 = vmatpush.msra.mxu0 %v132
    %1547 = vmatpush.msra.mxu0 %v131
    %1548 = vmatpush.msra.mxu0 %v130
    %1549 = vmatpush.msra.mxu0 %v129
    %1550 = vmatpush.msra.mxu0 %v128
    %1551 = vmatpush.msra.mxu0 %v127
    %1552 = vmatpush.msra.mxu0 %v126
    %1553 = vmatpush.msra.mxu0 %v125
    %1554 = vmatpush.msra.mxu0 %v124
    %1555 = vmatpush.msra.mxu0 %v123
    %1556 = vmatpush.msra.mxu0 %v122
    %1557 = vmatpush.msra.mxu0 %v121
    %1558 = vmatmul.f32.gmra.mxu0 %v1541
    %v1559 = vpop.f32.mrf.mxu0
    %v1560 = vadd.f32 %v147, %v1559
    %1561 = vdwg.mxu0
    %v1562 = vmul.f32 %v1503, 0.9
    %v1563 = vadd.f32 %v1562, %v1560
    %v1564 = vsub.f32 %v1563, %v1506
    %vm1565 = vcmp.gt.f32.partialorder %v1564, 1.0
    %v1566 = vsel %vm1565, 1, 0
    %v1567 = vcvt.s32.f32 %v1566
    %s1568 = scalar_lea.vmem [#allocation10], 352
    %1569 = vst [vmem:[%s1568] sm:$0xff] %v1567
    %1570 = vst [vmem:[%s1568 + $0x8] sm:$0xff] %v1564
    %v1571 = vmul.f32 %v1512, 0.9
    %v1572 = vadd.f32 %v1571, %v167
    %v1573 = vsub.f32 %v1572, %v1515
    %vm1574 = vcmp.gt.f32.partialorder %v1573, 1.0
    %v1575 = vsel %vm1574, 1, 0
    %v1576 = vcvt.s32.f32 %v1575
    %1577 = vmatpush.msra.mxu0 %v120
    %1578 = vmatpush.msra.mxu0 %v119
    %1579 = vmatpush.msra.mxu0 %v118
    %1580 = vmatpush.msra.mxu0 %v117
    %1581 = vmatpush.msra.mxu0 %v116
    %1582 = vmatpush.msra.mxu0 %v115
    %1583 = vmatpush.msra.mxu0 %v114
    %1584 = vmatpush.msra.mxu0 %v113
    %1585 = vmatpush.msra.mxu0 %v112
    %1586 = vmatpush.msra.mxu0 %v111
    %1587 = vmatpush.msra.mxu0 %v110
    %1588 = vmatpush.msra.mxu0 %v109
    %1589 = vmatpush.msra.mxu0 %v108
    %1590 = vmatpush.msra.mxu0 %v107
    %1591 = vmatpush.msra.mxu0 %v106
    %1592 = vmatpush.msra.mxu0 %v105
    %1593 = vmatmul.f32.gmra.mxu0 %v1576
    %v1594 = vpop.f32.mrf.mxu0
    %v1595 = vadd.f32 %v143, %v1594
    %1596 = vdwg.mxu0
    %v1597 = vmul.f32 %v1538, 0.9
    %v1598 = vadd.f32 %v1597, %v1595
    %v1599 = vsub.f32 %v1598, %v1541
    %vm1600 = vcmp.gt.f32.partialorder %v1599, 1.0
    %v1601 = vsel %vm1600, 1, 0
    %v1602 = vcvt.s32.f32 %v1601
    %1603 = vmatpush.msra.mxu0 %v136
    %1604 = vmatpush.msra.mxu0 %v135
    %1605 = vmatpush.msra.mxu0 %v134
    %1606 = vmatpush.msra.mxu0 %v133
    %1607 = vmatpush.msra.mxu0 %v132
    %1608 = vmatpush.msra.mxu0 %v131
    %1609 = vmatpush.msra.mxu0 %v130
    %1610 = vmatpush.msra.mxu0 %v129
    %1611 = vmatpush.msra.mxu0 %v128
    %1612 = vmatpush.msra.mxu0 %v127
    %1613 = vmatpush.msra.mxu0 %v126
    %1614 = vmatpush.msra.mxu0 %v125
    %1615 = vmatpush.msra.mxu0 %v124
    %1616 = vmatpush.msra.mxu0 %v123
    %1617 = vmatpush.msra.mxu0 %v122
    %1618 = vmatpush.msra.mxu0 %v121
    %1619 = vmatmul.f32.gmra.mxu0 %v1602
    %v1620 = vpop.f32.mrf.mxu0
    %v1621 = vadd.f32 %v147, %v1620
    %1622 = vdwg.mxu0
    %v1623 = vmul.f32 %v1564, 0.9
    %v1624 = vadd.f32 %v1623, %v1621
    %v1625 = vsub.f32 %v1624, %v1567
    %vm1626 = vcmp.gt.f32.partialorder %v1625, 1.0
    %v1627 = vsel %vm1626, 1, 0
    %v1628 = vcvt.s32.f32 %v1627
    %s1629 = scalar_lea.vmem [#allocation10], 368
    %1630 = vst [vmem:[%s1629] sm:$0xff] %v1628
    %1631 = vst [vmem:[%s1629 + $0x8] sm:$0xff] %v1625
    %v1632 = vmul.f32 %v1573, 0.9
    %v1633 = vadd.f32 %v1632, %v167
    %v1634 = vsub.f32 %v1633, %v1576
    %vm1635 = vcmp.gt.f32.partialorder %v1634, 1.0
    %v1636 = vsel %vm1635, 1, 0
    %v1637 = vcvt.s32.f32 %v1636
    %1638 = vmatpush.msra.mxu0 %v120
    %1639 = vmatpush.msra.mxu0 %v119
    %1640 = vmatpush.msra.mxu0 %v118
    %1641 = vmatpush.msra.mxu0 %v117
    %1642 = vmatpush.msra.mxu0 %v116
    %1643 = vmatpush.msra.mxu0 %v115
    %1644 = vmatpush.msra.mxu0 %v114
    %1645 = vmatpush.msra.mxu0 %v113
    %1646 = vmatpush.msra.mxu0 %v112
    %1647 = vmatpush.msra.mxu0 %v111
    %1648 = vmatpush.msra.mxu0 %v110
    %1649 = vmatpush.msra.mxu0 %v109
    %1650 = vmatpush.msra.mxu0 %v108
    %1651 = vmatpush.msra.mxu0 %v107
    %1652 = vmatpush.msra.mxu0 %v106
    %1653 = vmatpush.msra.mxu0 %v105
    %1654 = vmatmul.f32.gmra.mxu0 %v1637
    %v1655 = vpop.f32.mrf.mxu0
    %v1656 = vadd.f32 %v143, %v1655
    %1657 = vdwg.mxu0
    %v1658 = vmul.f32 %v1599, 0.9
    %v1659 = vadd.f32 %v1658, %v1656
    %v1660 = vsub.f32 %v1659, %v1602
    %vm1661 = vcmp.gt.f32.partialorder %v1660, 1.0
    %v1662 = vsel %vm1661, 1, 0
    %v1663 = vcvt.s32.f32 %v1662
    %1664 = vmatpush.msra.mxu0 %v136
    %1665 = vmatpush.msra.mxu0 %v135
    %1666 = vmatpush.msra.mxu0 %v134
    %1667 = vmatpush.msra.mxu0 %v133
    %1668 = vmatpush.msra.mxu0 %v132
    %1669 = vmatpush.msra.mxu0 %v131
    %1670 = vmatpush.msra.mxu0 %v130
    %1671 = vmatpush.msra.mxu0 %v129
    %1672 = vmatpush.msra.mxu0 %v128
    %1673 = vmatpush.msra.mxu0 %v127
    %1674 = vmatpush.msra.mxu0 %v126
    %1675 = vmatpush.msra.mxu0 %v125
    %1676 = vmatpush.msra.mxu0 %v124
    %1677 = vmatpush.msra.mxu0 %v123
    %1678 = vmatpush.msra.mxu0 %v122
    %1679 = vmatpush.msra.mxu0 %v121
    %1680 = vmatmul.f32.gmra.mxu0 %v1663
    %v1681 = vpop.f32.mrf.mxu0
    %v1682 = vadd.f32 %v147, %v1681
    %1683 = vdwg.mxu0
    %v1684 = vmul.f32 %v1625, 0.9
    %v1685 = vadd.f32 %v1684, %v1682
    %v1686 = vsub.f32 %v1685, %v1628
    %vm1687 = vcmp.gt.f32.partialorder %v1686, 1.0
    %v1688 = vsel %vm1687, 1, 0
    %v1689 = vcvt.s32.f32 %v1688
    %s1690 = scalar_lea.vmem [#allocation10], 384
    %1691 = vst [vmem:[%s1690] sm:$0xff] %v1689
    %1692 = vst [vmem:[%s1690 + $0x8] sm:$0xff] %v1686
    // Predicated region
    $region46: #{tpu_custom_call.1} parent=1 // pred_check
      _
    $region47: #{tpu_custom_call.1} parent=1 // pred_check_branch
      %1694 = sbr.rel (0) target = $region49
    $region48: #{tpu_custom_call.1} parent=1 // pred_region
      %1696 = vsyncadd [#allocation4], 0
      %s1697 = sshll.u32 [#allocation10], 4
      %s1698 = int_to_ptr.vmem [resolvable:$true] %s1697
      %s1699 = sshll.u32 %s7, 4
      %s1700 = int_to_ptr.hbm [resolvable:$true] %s1699
      %1705 = dma.vmem_to_hbm [thread:$0]  %s1698, 6400, %s1700, [#allocation4], 256, 256, 16
    $region49: #{tpu_custom_call.1} parent=1 // pred_fallthru
      _
    // Predicated region
    $region50: #{tpu_custom_call.1} parent=1 // pred_check
      _
    $region51: #{tpu_custom_call.1} parent=1 // pred_check_branch
      %1707 = sbr.rel (0) target = $region53
    $region52: #{tpu_custom_call.1} parent=1 // pred_region
      %1709 = dma.done [#allocation4], 6400
    $region53: #{tpu_custom_call.1} parent=1 // pred_fallthru
      _
    %1710 = vsyncpa [#allocation3], 1
    %1711 = vsyncpa [#allocation6], 1
    %1712 = vsyncpa [#allocation9], 1
    %1713 = vsyncpa [#allocation4], 1

</llo_original>
